<compile_context>
chip_gen: v5e
topology: v5e:2x2
jax: 0.10.0
libtpu: 0.0.40
codegen_flags: <defaults>
</compile_context>

<pallas_src>
import jax
import jax.numpy as jnp
from jax.experimental import pallas as pl
from jax.experimental.pallas import tpu as pltpu


# ----------------------------------------------------------------------------
# In-kernel building blocks (operate on [C, T] values, time on the lane axis).
# ----------------------------------------------------------------------------
def _elu(x):
    # ELU(alpha=1).  exp() runs on the EUP; a small-|x| Taylor branch avoids the
    # exp(x)-1 cancellation flagged in review (expm1 has no guaranteed lowering).
    e = jnp.exp(x) - 1.0
    return jnp.where(x > 0, x, jnp.where(jnp.abs(x) < 1e-4, x + 0.5 * x * x, e))


def _causal_pad(x, pad):
    if pad == 0:
        return x
    c = x.shape[0]
    return jnp.concatenate([jnp.zeros((c, pad), x.dtype), x], axis=1)


def _conv(x, w_ref, b_ref, *, pad, stride, act):
    """Causal Conv1d on a [Cin, T] tile.

    Per-tap matmuls on shifted lane slices (in-kernel im2col, no patch tensor).
    stride>1: compute the stride-1 result and decimate with a 0/1 selection
    matmul so time stays lane-dense and everything stays on the MXU.
    """
    cin, tin = x.shape
    k_taps, cout, _ = w_ref.shape
    xp = _causal_pad(x, pad).astype(jnp.bfloat16)
    tf = tin + pad - k_taps + 1
    acc = jnp.zeros((cout, tf), jnp.float32)
    for k in range(k_taps):
        wk = w_ref[k]                          # [Cout, Cin] bf16
        sl = xp[:, k:k + tf]                   # shifted read of the resident tile
        if cin == 1:
            part = wk.astype(jnp.float32) * sl.astype(jnp.float32)
        else:
            part = jnp.dot(wk, sl, preferred_element_type=jnp.float32)
        acc = acc + part
    if stride > 1:
        tout = (tin + pad - k_taps) // stride + 1
        rows = jax.lax.broadcasted_iota(jnp.int32, (tf, tout), 0)
        cols = jax.lax.broadcasted_iota(jnp.int32, (tf, tout), 1)
        dec = (rows == stride * cols).astype(jnp.bfloat16)
        acc = jnp.dot(acc.astype(jnp.bfloat16), dec,
                      preferred_element_type=jnp.float32)
    acc = acc + b_ref[...]                     # bias [Cout, 1], f32 epilogue
    return _elu(acc) if act else acc


def _tconv_s2(x, w_ref, b_ref, *, act):
    """ConvTranspose1d, stride 2, causal-trimmed to 2*T, via polyphase taps.

    Phase p in {0,1}:  y_p[u] = sum_m W[2m+p] @ x[u-m]  (no zero-upsampled
    intermediate, half the MACs).  The two phases are interleaved on the
    lane/time axis with 0/1 selection matmuls.
    """
    cin, tin = x.shape
    k_taps, cout, _ = w_ref.shape
    half = k_taps // 2
    xp = _causal_pad(x, half - 1).astype(jnp.bfloat16)
    phases = []
    for p in range(2):
        acc = jnp.zeros((cout, tin), jnp.float32)
        for m in range(half):
            wk = w_ref[2 * m + p]                          # [Cout, Cin]
            sl = xp[:, half - 1 - m:half - 1 - m + tin]    # x[u - m]
            acc = acc + jnp.dot(wk, sl, preferred_element_type=jnp.float32)
        phases.append(acc)
    tout = 2 * tin
    rows = jax.lax.broadcasted_iota(jnp.int32, (tin, tout), 0)
    cols = jax.lax.broadcasted_iota(jnp.int32, (tin, tout), 1)
    even = (cols == 2 * rows).astype(jnp.bfloat16)
    odd = (cols == 2 * rows + 1).astype(jnp.bfloat16)
    y = (jnp.dot(phases[0].astype(jnp.bfloat16), even,
                 preferred_element_type=jnp.float32)
         + jnp.dot(phases[1].astype(jnp.bfloat16), odd,
                   preferred_element_type=jnp.float32))
    y = y + b_ref[...]
    return _elu(y) if act else y


def _rvq(e, cb_ref, cbt_ref, cbsq_ref):
    """Fused residual-VQ encode + decode on a [D, N] tile (N = time, on lanes).

    Distances are [bins, N] (reduce over sublanes); codebook squared norms are
    precomputed outside the kernel; codes are stored once as [n_q, N].
    """
    _, n = e.shape
    n_q, bins, _ = cb_ref.shape
    resid = e
    quant = jnp.zeros_like(e)
    code_rows = []
    iota_b = jax.lax.broadcasted_iota(jnp.int32, (bins, n), 0)
    for q in range(n_q):
        cb = cb_ref[q]                                       # [bins, D]
        dots = jnp.dot(cb, resid, preferred_element_type=jnp.float32)   # [bins, N]
        dist = cbsq_ref[q] - 2.0 * dots                      # ||c||^2 - 2 r.c
        mind = jnp.min(dist, axis=0, keepdims=True)          # [1, N]
        idx = jnp.min(jnp.where(dist <= mind, iota_b, bins), axis=0, keepdims=True)
        idx = jnp.minimum(idx, bins - 1)                     # non-finite-input guard
        code_rows.append(idx)
        onehot = (iota_b == idx).astype(jnp.float32)         # [bins, N]
        sel = jnp.dot(cbt_ref[q], onehot,
                      preferred_element_type=jnp.float32)    # [D, N]
        resid = resid - sel
        quant = quant + sel
    codes = jnp.concatenate(code_rows, axis=0)               # [n_q, N] int32
    return codes, quant


# ----------------------------------------------------------------------------
# The single fused forward kernel: encoder -> RVQ -> decoder for one batch item.
# ----------------------------------------------------------------------------
def _forward_kernel(x_ref,
                    ew1, eb1, ew2, eb2, ew3, eb3, ew4, eb4,
                    cb_ref, cbt_ref, cbsq_ref,
                    dw1, db1, dw2, db2, dw3, db3, dw4, db4,
                    wav_ref, codes_ref):
    x = x_ref[...][0].astype(jnp.float32)                    # [C=1, T], time on lanes

    # --- SEANet-style causal encoder (Conv1d + ELU stack, downsample x4) ---
    h = _conv(x, ew1, eb1, pad=6, stride=1, act=True)        # [16, T]
    h = _conv(h, ew2, eb2, pad=2, stride=2, act=True)        # [32, T/2]
    h = _conv(h, ew3, eb3, pad=2, stride=2, act=True)        # [32, T/4]
    e = _conv(h, ew4, eb4, pad=2, stride=1, act=False)       # [D,  Te]

    # --- residual vector quantizer: encode (argmin search) + decode (gather-sum) ---
    codes, quant = _rvq(e, cb_ref, cbt_ref, cbsq_ref)        # [n_q, Te], [D, Te]

    # --- SEANet-style decoder (polyphase ConvTranspose1d upsample x4) ---
    h = _conv(quant, dw1, db1, pad=2, stride=1, act=True)    # [32, Te]
    h = _tconv_s2(h, dw2, db2, act=True)                     # [16, T/2]
    h = _tconv_s2(h, dw3, db3, act=True)                     # [16, T]
    y = _conv(h, dw4, db4, pad=6, stride=1, act=False)       # [1,  T]  lane-dense

    wav_ref[...] = y[None].astype(wav_ref.dtype)             # single [1,1,T] store
    codes_ref[...] = codes[None]                             # single [1,n_q,Te] store


# ----------------------------------------------------------------------------
# EncodecModel.forward:  encode(x) -> decode(frames)[:, :, :T]
# (segment=None -> one frame for the full signal; normalize=False -> scale=None)
# ----------------------------------------------------------------------------
def encodec_forward(params, x_bct):
    B, C, T = x_bct.shape
    assert C == 1 and T % 4 == 0

    def wt(w):    # [K, Cin, Cout] -> [K, Cout, Cin], bf16 for the MXU
        return jnp.transpose(w, (0, 2, 1)).astype(jnp.bfloat16)

    def bt(b):    # [Cout] -> [Cout, 1], f32 epilogue
        return b.reshape(-1, 1).astype(jnp.float32)

    cb = params["codebooks"].astype(jnp.float32)              # [n_q, bins, D]
    cbt = jnp.transpose(cb, (0, 2, 1))                        # [n_q, D, bins]
    cbsq = jnp.sum(cb * cb, axis=-1, keepdims=True)           # [n_q, bins, 1] hoisted

    n_q, bins, D = cb.shape
    Te = T // 4
    Tout = Te * 4

    args = [
        x_bct.astype(jnp.float32),
        wt(params["enc_w1"]), bt(params["enc_b1"]),
        wt(params["enc_w2"]), bt(params["enc_b2"]),
        wt(params["enc_w3"]), bt(params["enc_b3"]),
        wt(params["enc_w4"]), bt(params["enc_b4"]),
        cb, cbt, cbsq,
        wt(params["dec_w1"]), bt(params["dec_b1"]),
        wt(params["dec_w2"]), bt(params["dec_b2"]),
        wt(params["dec_w3"]), bt(params["dec_b3"]),
        wt(params["dec_w4"]), bt(params["dec_b4"]),
    ]

    def bcast_spec(a):
        nd = a.ndim
        return pl.BlockSpec(a.shape, lambda b, _nd=nd: (0,) * _nd)

    in_specs = ([pl.BlockSpec((1, C, T), lambda b: (b, 0, 0))]
                + [bcast_spec(a) for a in args[1:]])

    out_shape = (jax.ShapeDtypeStruct((B, 1, Tout), jnp.float32),
                 jax.ShapeDtypeStruct((B, n_q, Te), jnp.int32))
    out_specs = (pl.BlockSpec((1, 1, Tout), lambda b: (b, 0, 0)),
                 pl.BlockSpec((1, n_q, Te), lambda b: (b, 0, 0)))

    wav, _codes = pl.pallas_call(
        _forward_kernel,
        grid=(B,),
        in_specs=in_specs,
        out_specs=out_specs,
        out_shape=out_shape,
        compiler_params=pltpu.CompilerParams(
            dimension_semantics=("parallel",)),   # shards batch across TCs on v7x
    )(*args)

    return wav[:, :, :T]


# ----------------------------------------------------------------------------
# Deterministic synthetic parameters (same shapes/semantics as the reference).
# ----------------------------------------------------------------------------
def init_params(key):
    D = 32      # latent dimension
    n_q = 4     # number of codebooks
    bins = 16   # codebook cardinality (power of 2, matches model assert)
    ks = jax.random.split(key, 20)

    def w(k, shape, scale=0.2):
        return scale * jax.random.normal(k, shape, jnp.float32)

    return {
        "enc_w1": w(ks[0], (7, 1, 16)),   "enc_b1": w(ks[1], (16,), 0.05),
        "enc_w2": w(ks[2], (4, 16, 32)),  "enc_b2": w(ks[3], (32,), 0.05),
        "enc_w3": w(ks[4], (4, 32, 32)),  "enc_b3": w(ks[5], (32,), 0.05),
        "enc_w4": w(ks[6], (3, 32, D)),   "enc_b4": w(ks[7], (D,), 0.05),
        "codebooks": w(ks[8], (n_q, bins, D), 1.0),
        "dec_w1": w(ks[9], (3, D, 32)),   "dec_b1": w(ks[10], (32,), 0.05),
        "dec_w2": w(ks[11], (4, 32, 16)), "dec_b2": w(ks[12], (16,), 0.05),
        "dec_w3": w(ks[13], (4, 16, 16)), "dec_b3": w(ks[14], (16,), 0.05),
        "dec_w4": w(ks[15], (7, 16, 1)),  "dec_b4": w(ks[16], (1,), 0.05),
    }


if __name__ == "__main__":
    key = jax.random.PRNGKey(0)
    pkey, xkey = jax.random.split(key)
    params = init_params(pkey)

    # Input waveform, PyTorch layout [B, C, T]: batch=2, channels=1, samples=64.
    x = jax.random.normal(xkey, (2, 1, 64), jnp.float32)

    y = jax.jit(encodec_forward)(params, x)
    y = jax.block_until_ready(y)

    assert y.shape == x.shape, (y.shape, x.shape)
    assert bool(jnp.all(jnp.isfinite(y)))
    print("KERNEL_OK")
</pallas_src>

<mosaic_0001>
module attributes {stable_mosaic.version = 11 : i64} {
  func.func @_forward_kernel(%arg0: i32, %arg1: memref<1x1x64xf32, #tpu.memory_space<vmem>>, %arg2: memref<7x16x1xbf16, #tpu.memory_space<vmem>>, %arg3: memref<16x1xf32, #tpu.memory_space<vmem>>, %arg4: memref<4x32x16xbf16, #tpu.memory_space<vmem>>, %arg5: memref<32x1xf32, #tpu.memory_space<vmem>>, %arg6: memref<4x32x32xbf16, #tpu.memory_space<vmem>>, %arg7: memref<32x1xf32, #tpu.memory_space<vmem>>, %arg8: memref<3x32x32xbf16, #tpu.memory_space<vmem>>, %arg9: memref<32x1xf32, #tpu.memory_space<vmem>>, %arg10: memref<4x16x32xf32, #tpu.memory_space<vmem>>, %arg11: memref<4x32x16xf32, #tpu.memory_space<vmem>>, %arg12: memref<4x16x1xf32, #tpu.memory_space<vmem>>, %arg13: memref<3x32x32xbf16, #tpu.memory_space<vmem>>, %arg14: memref<32x1xf32, #tpu.memory_space<vmem>>, %arg15: memref<4x16x32xbf16, #tpu.memory_space<vmem>>, %arg16: memref<16x1xf32, #tpu.memory_space<vmem>>, %arg17: memref<4x16x16xbf16, #tpu.memory_space<vmem>>, %arg18: memref<16x1xf32, #tpu.memory_space<vmem>>, %arg19: memref<7x1x16xbf16, #tpu.memory_space<vmem>>, %arg20: memref<1x1xf32, #tpu.memory_space<vmem>>, %arg21: memref<1x1x64xf32, #tpu.memory_space<vmem>>, %arg22: memref<1x4x16xi32, #tpu.memory_space<vmem>>) attributes {dimension_semantics = [#tpu.dimension_semantics<parallel>], iteration_bounds = array<i64: 2>, scalar_prefetch = 0 : i64, scratch_operands = 0 : i64, tpu.core_type = #tpu.core_type<tc>, window_params = [{transform_indices = @transform_0, window_bounds = array<i64: 1, 1, 64>}, {pipeline_mode = #tpu.pipeline_mode<synchronous>, transform_indices = @transform_1, window_bounds = array<i64: 7, 16, 1>}, {pipeline_mode = #tpu.pipeline_mode<synchronous>, transform_indices = @transform_2, window_bounds = array<i64: 16, 1>}, {pipeline_mode = #tpu.pipeline_mode<synchronous>, transform_indices = @transform_3, window_bounds = array<i64: 4, 32, 16>}, {pipeline_mode = #tpu.pipeline_mode<synchronous>, transform_indices = @transform_4, window_bounds = array<i64: 32, 1>}, {pipeline_mode = #tpu.pipeline_mode<synchronous>, transform_indices = @transform_5, window_bounds = array<i64: 4, 32, 32>}, {pipeline_mode = #tpu.pipeline_mode<synchronous>, transform_indices = @transform_6, window_bounds = array<i64: 32, 1>}, {pipeline_mode = #tpu.pipeline_mode<synchronous>, transform_indices = @transform_7, window_bounds = array<i64: 3, 32, 32>}, {pipeline_mode = #tpu.pipeline_mode<synchronous>, transform_indices = @transform_8, window_bounds = array<i64: 32, 1>}, {pipeline_mode = #tpu.pipeline_mode<synchronous>, transform_indices = @transform_9, window_bounds = array<i64: 4, 16, 32>}, {pipeline_mode = #tpu.pipeline_mode<synchronous>, transform_indices = @transform_10, window_bounds = array<i64: 4, 32, 16>}, {pipeline_mode = #tpu.pipeline_mode<synchronous>, transform_indices = @transform_11, window_bounds = array<i64: 4, 16, 1>}, {pipeline_mode = #tpu.pipeline_mode<synchronous>, transform_indices = @transform_12, window_bounds = array<i64: 3, 32, 32>}, {pipeline_mode = #tpu.pipeline_mode<synchronous>, transform_indices = @transform_13, window_bounds = array<i64: 32, 1>}, {pipeline_mode = #tpu.pipeline_mode<synchronous>, transform_indices = @transform_14, window_bounds = array<i64: 4, 16, 32>}, {pipeline_mode = #tpu.pipeline_mode<synchronous>, transform_indices = @transform_15, window_bounds = array<i64: 16, 1>}, {pipeline_mode = #tpu.pipeline_mode<synchronous>, transform_indices = @transform_16, window_bounds = array<i64: 4, 16, 16>}, {pipeline_mode = #tpu.pipeline_mode<synchronous>, transform_indices = @transform_17, window_bounds = array<i64: 16, 1>}, {pipeline_mode = #tpu.pipeline_mode<synchronous>, transform_indices = @transform_18, window_bounds = array<i64: 7, 1, 16>}, {pipeline_mode = #tpu.pipeline_mode<synchronous>, transform_indices = @transform_19, window_bounds = array<i64: 1, 1>}, {transform_indices = @transform_20, window_bounds = array<i64: 1, 1, 64>}, {transform_indices = @transform_21, window_bounds = array<i64: 1, 4, 16>}]} {
    %c0 = arith.constant 0 : index
    %c0_0 = arith.constant 0 : index
    %c0_1 = arith.constant 0 : index
    %0 = vector.load %arg1[%c0, %c0_0, %c0_1] : memref<1x1x64xf32, #tpu.memory_space<vmem>>, vector<1x1x64xf32>
    %1 = vector.shape_cast %0 : vector<1x1x64xf32> to vector<1x64xf32>
    %cst = arith.constant 0.000000e+00 : f32
    %2 = vector.broadcast %cst : f32 to vector<1x6xf32>
    %3 = tpu.concatenate %2, %1 in 1 : vector<1x6xf32>, vector<1x64xf32> -> vector<1x70xf32>
    %4 = arith.truncf %3 : vector<1x70xf32> to vector<1x70xbf16>
    %cst_2 = arith.constant 0.000000e+00 : f32
    %5 = vector.broadcast %cst_2 : f32 to vector<16x64xf32>
    %c0_3 = arith.constant 0 : index
    %c0_4 = arith.constant 0 : index
    %c0_5 = arith.constant 0 : index
    %6 = vector.load %arg2[%c0_3, %c0_4, %c0_5] : memref<7x16x1xbf16, #tpu.memory_space<vmem>>, vector<1x16x1xbf16>
    %7 = vector.shape_cast %6 : vector<1x16x1xbf16> to vector<16x1xbf16>
    %8 = vector.extract_strided_slice %4 {offsets = [0, 0], sizes = [1, 64], strides = [1, 1]} : vector<1x70xbf16> to vector<1x64xbf16>
    %9 = arith.extf %7 : vector<16x1xbf16> to vector<16x1xf32>
    %10 = arith.extf %8 : vector<1x64xbf16> to vector<1x64xf32>
    %11 = vector.broadcast %9 : vector<16x1xf32> to vector<16x64xf32>
    %12 = vector.broadcast %10 : vector<1x64xf32> to vector<16x64xf32>
    %13 = arith.mulf %11, %12 : vector<16x64xf32>
    %14 = arith.addf %5, %13 : vector<16x64xf32>
    %c1 = arith.constant 1 : index
    %c0_6 = arith.constant 0 : index
    %c0_7 = arith.constant 0 : index
    %15 = vector.load %arg2[%c1, %c0_6, %c0_7] : memref<7x16x1xbf16, #tpu.memory_space<vmem>>, vector<1x16x1xbf16>
    %16 = vector.shape_cast %15 : vector<1x16x1xbf16> to vector<16x1xbf16>
    %17 = vector.extract_strided_slice %4 {offsets = [0, 1], sizes = [1, 64], strides = [1, 1]} : vector<1x70xbf16> to vector<1x64xbf16>
    %18 = arith.extf %16 : vector<16x1xbf16> to vector<16x1xf32>
    %19 = arith.extf %17 : vector<1x64xbf16> to vector<1x64xf32>
    %20 = vector.broadcast %18 : vector<16x1xf32> to vector<16x64xf32>
    %21 = vector.broadcast %19 : vector<1x64xf32> to vector<16x64xf32>
    %22 = arith.mulf %20, %21 : vector<16x64xf32>
    %23 = arith.addf %14, %22 : vector<16x64xf32>
    %c2 = arith.constant 2 : index
    %c0_8 = arith.constant 0 : index
    %c0_9 = arith.constant 0 : index
    %24 = vector.load %arg2[%c2, %c0_8, %c0_9] : memref<7x16x1xbf16, #tpu.memory_space<vmem>>, vector<1x16x1xbf16>
    %25 = vector.shape_cast %24 : vector<1x16x1xbf16> to vector<16x1xbf16>
    %26 = vector.extract_strided_slice %4 {offsets = [0, 2], sizes = [1, 64], strides = [1, 1]} : vector<1x70xbf16> to vector<1x64xbf16>
    %27 = arith.extf %25 : vector<16x1xbf16> to vector<16x1xf32>
    %28 = arith.extf %26 : vector<1x64xbf16> to vector<1x64xf32>
    %29 = vector.broadcast %27 : vector<16x1xf32> to vector<16x64xf32>
    %30 = vector.broadcast %28 : vector<1x64xf32> to vector<16x64xf32>
    %31 = arith.mulf %29, %30 : vector<16x64xf32>
    %32 = arith.addf %23, %31 : vector<16x64xf32>
    %c3 = arith.constant 3 : index
    %c0_10 = arith.constant 0 : index
    %c0_11 = arith.constant 0 : index
    %33 = vector.load %arg2[%c3, %c0_10, %c0_11] : memref<7x16x1xbf16, #tpu.memory_space<vmem>>, vector<1x16x1xbf16>
    %34 = vector.shape_cast %33 : vector<1x16x1xbf16> to vector<16x1xbf16>
    %35 = vector.extract_strided_slice %4 {offsets = [0, 3], sizes = [1, 64], strides = [1, 1]} : vector<1x70xbf16> to vector<1x64xbf16>
    %36 = arith.extf %34 : vector<16x1xbf16> to vector<16x1xf32>
    %37 = arith.extf %35 : vector<1x64xbf16> to vector<1x64xf32>
    %38 = vector.broadcast %36 : vector<16x1xf32> to vector<16x64xf32>
    %39 = vector.broadcast %37 : vector<1x64xf32> to vector<16x64xf32>
    %40 = arith.mulf %38, %39 : vector<16x64xf32>
    %41 = arith.addf %32, %40 : vector<16x64xf32>
    %c4 = arith.constant 4 : index
    %c0_12 = arith.constant 0 : index
    %c0_13 = arith.constant 0 : index
    %42 = vector.load %arg2[%c4, %c0_12, %c0_13] : memref<7x16x1xbf16, #tpu.memory_space<vmem>>, vector<1x16x1xbf16>
    %43 = vector.shape_cast %42 : vector<1x16x1xbf16> to vector<16x1xbf16>
    %44 = vector.extract_strided_slice %4 {offsets = [0, 4], sizes = [1, 64], strides = [1, 1]} : vector<1x70xbf16> to vector<1x64xbf16>
    %45 = arith.extf %43 : vector<16x1xbf16> to vector<16x1xf32>
    %46 = arith.extf %44 : vector<1x64xbf16> to vector<1x64xf32>
    %47 = vector.broadcast %45 : vector<16x1xf32> to vector<16x64xf32>
    %48 = vector.broadcast %46 : vector<1x64xf32> to vector<16x64xf32>
    %49 = arith.mulf %47, %48 : vector<16x64xf32>
    %50 = arith.addf %41, %49 : vector<16x64xf32>
    %c5 = arith.constant 5 : index
    %c0_14 = arith.constant 0 : index
    %c0_15 = arith.constant 0 : index
    %51 = vector.load %arg2[%c5, %c0_14, %c0_15] : memref<7x16x1xbf16, #tpu.memory_space<vmem>>, vector<1x16x1xbf16>
    %52 = vector.shape_cast %51 : vector<1x16x1xbf16> to vector<16x1xbf16>
    %53 = vector.extract_strided_slice %4 {offsets = [0, 5], sizes = [1, 64], strides = [1, 1]} : vector<1x70xbf16> to vector<1x64xbf16>
    %54 = arith.extf %52 : vector<16x1xbf16> to vector<16x1xf32>
    %55 = arith.extf %53 : vector<1x64xbf16> to vector<1x64xf32>
    %56 = vector.broadcast %54 : vector<16x1xf32> to vector<16x64xf32>
    %57 = vector.broadcast %55 : vector<1x64xf32> to vector<16x64xf32>
    %58 = arith.mulf %56, %57 : vector<16x64xf32>
    %59 = arith.addf %50, %58 : vector<16x64xf32>
    %c6 = arith.constant 6 : index
    %c0_16 = arith.constant 0 : index
    %c0_17 = arith.constant 0 : index
    %60 = vector.load %arg2[%c6, %c0_16, %c0_17] : memref<7x16x1xbf16, #tpu.memory_space<vmem>>, vector<1x16x1xbf16>
    %61 = vector.shape_cast %60 : vector<1x16x1xbf16> to vector<16x1xbf16>
    %62 = vector.extract_strided_slice %4 {offsets = [0, 6], sizes = [1, 64], strides = [1, 1]} : vector<1x70xbf16> to vector<1x64xbf16>
    %63 = arith.extf %61 : vector<16x1xbf16> to vector<16x1xf32>
    %64 = arith.extf %62 : vector<1x64xbf16> to vector<1x64xf32>
    %65 = vector.broadcast %63 : vector<16x1xf32> to vector<16x64xf32>
    %66 = vector.broadcast %64 : vector<1x64xf32> to vector<16x64xf32>
    %67 = arith.mulf %65, %66 : vector<16x64xf32>
    %68 = arith.addf %59, %67 : vector<16x64xf32>
    %c0_18 = arith.constant 0 : index
    %c0_19 = arith.constant 0 : index
    %69 = vector.load %arg3[%c0_18, %c0_19] : memref<16x1xf32, #tpu.memory_space<vmem>>, vector<16x1xf32>
    %70 = vector.broadcast %69 : vector<16x1xf32> to vector<16x64xf32>
    %71 = arith.addf %68, %70 : vector<16x64xf32>
    %72 = math.exp %71 : vector<16x64xf32>
    %cst_20 = arith.constant 1.000000e+00 : f32
    %73 = vector.broadcast %cst_20 : f32 to vector<16x64xf32>
    %74 = arith.subf %72, %73 : vector<16x64xf32>
    %cst_21 = arith.constant 0.000000e+00 : f32
    %75 = vector.broadcast %cst_21 : f32 to vector<16x64xf32>
    %76 = arith.cmpf ogt, %71, %75 : vector<16x64xf32>
    %77 = math.absf %71 : vector<16x64xf32>
    %cst_22 = arith.constant 9.99999974E-5 : f32
    %78 = vector.broadcast %cst_22 : f32 to vector<16x64xf32>
    %79 = arith.cmpf olt, %77, %78 : vector<16x64xf32>
    %cst_23 = arith.constant 5.000000e-01 : f32
    %80 = vector.broadcast %cst_23 : f32 to vector<16x64xf32>
    %81 = arith.mulf %80, %71 : vector<16x64xf32>
    %82 = arith.mulf %81, %71 : vector<16x64xf32>
    %83 = arith.addf %71, %82 : vector<16x64xf32>
    %84 = arith.select %79, %83, %74 : vector<16x64xi1>, vector<16x64xf32>
    %85 = arith.select %76, %71, %84 : vector<16x64xi1>, vector<16x64xf32>
    %cst_24 = arith.constant 0.000000e+00 : f32
    %86 = vector.broadcast %cst_24 : f32 to vector<16x2xf32>
    %87 = tpu.concatenate %86, %85 in 1 : vector<16x2xf32>, vector<16x64xf32> -> vector<16x66xf32>
    %88 = arith.truncf %87 : vector<16x66xf32> to vector<16x66xbf16>
    %cst_25 = arith.constant 0.000000e+00 : f32
    %89 = vector.broadcast %cst_25 : f32 to vector<32x63xf32>
    %c0_26 = arith.constant 0 : index
    %c0_27 = arith.constant 0 : index
    %c0_28 = arith.constant 0 : index
    %90 = vector.load %arg4[%c0_26, %c0_27, %c0_28] : memref<4x32x16xbf16, #tpu.memory_space<vmem>>, vector<1x32x16xbf16>
    %91 = vector.shape_cast %90 : vector<1x32x16xbf16> to vector<32x16xbf16>
    %92 = vector.extract_strided_slice %88 {offsets = [0, 0], sizes = [16, 63], strides = [1, 1]} : vector<16x66xbf16> to vector<16x63xbf16>
    %cst_29 = arith.constant dense<0.000000e+00> : vector<32x63xf32>
    %93 = tpu.matmul %91, %92, %cst_29 {dimension_numbers = #tpu.dot_dimension_numbers<[1], [0], [0], [1], [0, 0, 1, 1], [], []>} : vector<32x16xbf16>, vector<16x63xbf16>, vector<32x63xf32> -> vector<32x63xf32>
    %94 = arith.addf %89, %93 : vector<32x63xf32>
    %c1_30 = arith.constant 1 : index
    %c0_31 = arith.constant 0 : index
    %c0_32 = arith.constant 0 : index
    %95 = vector.load %arg4[%c1_30, %c0_31, %c0_32] : memref<4x32x16xbf16, #tpu.memory_space<vmem>>, vector<1x32x16xbf16>
    %96 = vector.shape_cast %95 : vector<1x32x16xbf16> to vector<32x16xbf16>
    %97 = vector.extract_strided_slice %88 {offsets = [0, 1], sizes = [16, 63], strides = [1, 1]} : vector<16x66xbf16> to vector<16x63xbf16>
    %cst_33 = arith.constant dense<0.000000e+00> : vector<32x63xf32>
    %98 = tpu.matmul %96, %97, %cst_33 {dimension_numbers = #tpu.dot_dimension_numbers<[1], [0], [0], [1], [0, 0, 1, 1], [], []>} : vector<32x16xbf16>, vector<16x63xbf16>, vector<32x63xf32> -> vector<32x63xf32>
    %99 = arith.addf %94, %98 : vector<32x63xf32>
    %c2_34 = arith.constant 2 : index
    %c0_35 = arith.constant 0 : index
    %c0_36 = arith.constant 0 : index
    %100 = vector.load %arg4[%c2_34, %c0_35, %c0_36] : memref<4x32x16xbf16, #tpu.memory_space<vmem>>, vector<1x32x16xbf16>
    %101 = vector.shape_cast %100 : vector<1x32x16xbf16> to vector<32x16xbf16>
    %102 = vector.extract_strided_slice %88 {offsets = [0, 2], sizes = [16, 63], strides = [1, 1]} : vector<16x66xbf16> to vector<16x63xbf16>
    %cst_37 = arith.constant dense<0.000000e+00> : vector<32x63xf32>
    %103 = tpu.matmul %101, %102, %cst_37 {dimension_numbers = #tpu.dot_dimension_numbers<[1], [0], [0], [1], [0, 0, 1, 1], [], []>} : vector<32x16xbf16>, vector<16x63xbf16>, vector<32x63xf32> -> vector<32x63xf32>
    %104 = arith.addf %99, %103 : vector<32x63xf32>
    %c3_38 = arith.constant 3 : index
    %c0_39 = arith.constant 0 : index
    %c0_40 = arith.constant 0 : index
    %105 = vector.load %arg4[%c3_38, %c0_39, %c0_40] : memref<4x32x16xbf16, #tpu.memory_space<vmem>>, vector<1x32x16xbf16>
    %106 = vector.shape_cast %105 : vector<1x32x16xbf16> to vector<32x16xbf16>
    %107 = vector.extract_strided_slice %88 {offsets = [0, 3], sizes = [16, 63], strides = [1, 1]} : vector<16x66xbf16> to vector<16x63xbf16>
    %cst_41 = arith.constant dense<0.000000e+00> : vector<32x63xf32>
    %108 = tpu.matmul %106, %107, %cst_41 {dimension_numbers = #tpu.dot_dimension_numbers<[1], [0], [0], [1], [0, 0, 1, 1], [], []>} : vector<32x16xbf16>, vector<16x63xbf16>, vector<32x63xf32> -> vector<32x63xf32>
    %109 = arith.addf %104, %108 : vector<32x63xf32>
    %110 = tpu.iota {dimensions = array<i32: 0>} : vector<63x32xi32>
    %111 = tpu.iota {dimensions = array<i32: 1>} : vector<63x32xi32>
    %c2_i32 = arith.constant 2 : i32
    %112 = vector.broadcast %c2_i32 : i32 to vector<63x32xi32>
    %113 = arith.muli %112, %111 : vector<63x32xi32>
    %114 = arith.cmpi eq, %110, %113 : vector<63x32xi32>
    %115 = arith.extui %114 : vector<63x32xi1> to vector<63x32xi32>
    %116 = arith.sitofp %115 : vector<63x32xi32> to vector<63x32xf32>
    %117 = arith.truncf %116 : vector<63x32xf32> to vector<63x32xbf16>
    %118 = arith.truncf %109 : vector<32x63xf32> to vector<32x63xbf16>
    %cst_42 = arith.constant dense<0.000000e+00> : vector<32x32xf32>
    %119 = tpu.matmul %118, %117, %cst_42 {dimension_numbers = #tpu.dot_dimension_numbers<[1], [0], [0], [1], [0, 0, 1, 1], [], []>} : vector<32x63xbf16>, vector<63x32xbf16>, vector<32x32xf32> -> vector<32x32xf32>
    %c0_43 = arith.constant 0 : index
    %c0_44 = arith.constant 0 : index
    %120 = vector.load %arg5[%c0_43, %c0_44] : memref<32x1xf32, #tpu.memory_space<vmem>>, vector<32x1xf32>
    %121 = vector.broadcast %120 : vector<32x1xf32> to vector<32x32xf32>
    %122 = arith.addf %119, %121 : vector<32x32xf32>
    %123 = math.exp %122 : vector<32x32xf32>
    %cst_45 = arith.constant 1.000000e+00 : f32
    %124 = vector.broadcast %cst_45 : f32 to vector<32x32xf32>
    %125 = arith.subf %123, %124 : vector<32x32xf32>
    %cst_46 = arith.constant 0.000000e+00 : f32
    %126 = vector.broadcast %cst_46 : f32 to vector<32x32xf32>
    %127 = arith.cmpf ogt, %122, %126 : vector<32x32xf32>
    %128 = math.absf %122 : vector<32x32xf32>
    %cst_47 = arith.constant 9.99999974E-5 : f32
    %129 = vector.broadcast %cst_47 : f32 to vector<32x32xf32>
    %130 = arith.cmpf olt, %128, %129 : vector<32x32xf32>
    %cst_48 = arith.constant 5.000000e-01 : f32
    %131 = vector.broadcast %cst_48 : f32 to vector<32x32xf32>
    %132 = arith.mulf %131, %122 : vector<32x32xf32>
    %133 = arith.mulf %132, %122 : vector<32x32xf32>
    %134 = arith.addf %122, %133 : vector<32x32xf32>
    %135 = arith.select %130, %134, %125 : vector<32x32xi1>, vector<32x32xf32>
    %136 = arith.select %127, %122, %135 : vector<32x32xi1>, vector<32x32xf32>
    %cst_49 = arith.constant 0.000000e+00 : f32
    %137 = vector.broadcast %cst_49 : f32 to vector<32x2xf32>
    %138 = tpu.concatenate %137, %136 in 1 : vector<32x2xf32>, vector<32x32xf32> -> vector<32x34xf32>
    %139 = arith.truncf %138 : vector<32x34xf32> to vector<32x34xbf16>
    %cst_50 = arith.constant 0.000000e+00 : f32
    %140 = vector.broadcast %cst_50 : f32 to vector<32x31xf32>
    %c0_51 = arith.constant 0 : index
    %c0_52 = arith.constant 0 : index
    %c0_53 = arith.constant 0 : index
    %141 = vector.load %arg6[%c0_51, %c0_52, %c0_53] : memref<4x32x32xbf16, #tpu.memory_space<vmem>>, vector<1x32x32xbf16>
    %142 = vector.shape_cast %141 : vector<1x32x32xbf16> to vector<32x32xbf16>
    %143 = vector.extract_strided_slice %139 {offsets = [0, 0], sizes = [32, 31], strides = [1, 1]} : vector<32x34xbf16> to vector<32x31xbf16>
    %cst_54 = arith.constant dense<0.000000e+00> : vector<32x31xf32>
    %144 = tpu.matmul %142, %143, %cst_54 {dimension_numbers = #tpu.dot_dimension_numbers<[1], [0], [0], [1], [0, 0, 1, 1], [], []>} : vector<32x32xbf16>, vector<32x31xbf16>, vector<32x31xf32> -> vector<32x31xf32>
    %145 = arith.addf %140, %144 : vector<32x31xf32>
    %c1_55 = arith.constant 1 : index
    %c0_56 = arith.constant 0 : index
    %c0_57 = arith.constant 0 : index
    %146 = vector.load %arg6[%c1_55, %c0_56, %c0_57] : memref<4x32x32xbf16, #tpu.memory_space<vmem>>, vector<1x32x32xbf16>
    %147 = vector.shape_cast %146 : vector<1x32x32xbf16> to vector<32x32xbf16>
    %148 = vector.extract_strided_slice %139 {offsets = [0, 1], sizes = [32, 31], strides = [1, 1]} : vector<32x34xbf16> to vector<32x31xbf16>
    %cst_58 = arith.constant dense<0.000000e+00> : vector<32x31xf32>
    %149 = tpu.matmul %147, %148, %cst_58 {dimension_numbers = #tpu.dot_dimension_numbers<[1], [0], [0], [1], [0, 0, 1, 1], [], []>} : vector<32x32xbf16>, vector<32x31xbf16>, vector<32x31xf32> -> vector<32x31xf32>
    %150 = arith.addf %145, %149 : vector<32x31xf32>
    %c2_59 = arith.constant 2 : index
    %c0_60 = arith.constant 0 : index
    %c0_61 = arith.constant 0 : index
    %151 = vector.load %arg6[%c2_59, %c0_60, %c0_61] : memref<4x32x32xbf16, #tpu.memory_space<vmem>>, vector<1x32x32xbf16>
    %152 = vector.shape_cast %151 : vector<1x32x32xbf16> to vector<32x32xbf16>
    %153 = vector.extract_strided_slice %139 {offsets = [0, 2], sizes = [32, 31], strides = [1, 1]} : vector<32x34xbf16> to vector<32x31xbf16>
    %cst_62 = arith.constant dense<0.000000e+00> : vector<32x31xf32>
    %154 = tpu.matmul %152, %153, %cst_62 {dimension_numbers = #tpu.dot_dimension_numbers<[1], [0], [0], [1], [0, 0, 1, 1], [], []>} : vector<32x32xbf16>, vector<32x31xbf16>, vector<32x31xf32> -> vector<32x31xf32>
    %155 = arith.addf %150, %154 : vector<32x31xf32>
    %c3_63 = arith.constant 3 : index
    %c0_64 = arith.constant 0 : index
    %c0_65 = arith.constant 0 : index
    %156 = vector.load %arg6[%c3_63, %c0_64, %c0_65] : memref<4x32x32xbf16, #tpu.memory_space<vmem>>, vector<1x32x32xbf16>
    %157 = vector.shape_cast %156 : vector<1x32x32xbf16> to vector<32x32xbf16>
    %158 = vector.extract_strided_slice %139 {offsets = [0, 3], sizes = [32, 31], strides = [1, 1]} : vector<32x34xbf16> to vector<32x31xbf16>
    %cst_66 = arith.constant dense<0.000000e+00> : vector<32x31xf32>
    %159 = tpu.matmul %157, %158, %cst_66 {dimension_numbers = #tpu.dot_dimension_numbers<[1], [0], [0], [1], [0, 0, 1, 1], [], []>} : vector<32x32xbf16>, vector<32x31xbf16>, vector<32x31xf32> -> vector<32x31xf32>
    %160 = arith.addf %155, %159 : vector<32x31xf32>
    %161 = tpu.iota {dimensions = array<i32: 0>} : vector<31x16xi32>
    %162 = tpu.iota {dimensions = array<i32: 1>} : vector<31x16xi32>
    %c2_i32_67 = arith.constant 2 : i32
    %163 = vector.broadcast %c2_i32_67 : i32 to vector<31x16xi32>
    %164 = arith.muli %163, %162 : vector<31x16xi32>
    %165 = arith.cmpi eq, %161, %164 : vector<31x16xi32>
    %166 = arith.extui %165 : vector<31x16xi1> to vector<31x16xi32>
    %167 = arith.sitofp %166 : vector<31x16xi32> to vector<31x16xf32>
    %168 = arith.truncf %167 : vector<31x16xf32> to vector<31x16xbf16>
    %169 = arith.truncf %160 : vector<32x31xf32> to vector<32x31xbf16>
    %cst_68 = arith.constant dense<0.000000e+00> : vector<32x16xf32>
    %170 = tpu.matmul %169, %168, %cst_68 {dimension_numbers = #tpu.dot_dimension_numbers<[1], [0], [0], [1], [0, 0, 1, 1], [], []>} : vector<32x31xbf16>, vector<31x16xbf16>, vector<32x16xf32> -> vector<32x16xf32>
    %c0_69 = arith.constant 0 : index
    %c0_70 = arith.constant 0 : index
    %171 = vector.load %arg7[%c0_69, %c0_70] : memref<32x1xf32, #tpu.memory_space<vmem>>, vector<32x1xf32>
    %172 = vector.broadcast %171 : vector<32x1xf32> to vector<32x16xf32>
    %173 = arith.addf %170, %172 : vector<32x16xf32>
    %174 = math.exp %173 : vector<32x16xf32>
    %cst_71 = arith.constant 1.000000e+00 : f32
    %175 = vector.broadcast %cst_71 : f32 to vector<32x16xf32>
    %176 = arith.subf %174, %175 : vector<32x16xf32>
    %cst_72 = arith.constant 0.000000e+00 : f32
    %177 = vector.broadcast %cst_72 : f32 to vector<32x16xf32>
    %178 = arith.cmpf ogt, %173, %177 : vector<32x16xf32>
    %179 = math.absf %173 : vector<32x16xf32>
    %cst_73 = arith.constant 9.99999974E-5 : f32
    %180 = vector.broadcast %cst_73 : f32 to vector<32x16xf32>
    %181 = arith.cmpf olt, %179, %180 : vector<32x16xf32>
    %cst_74 = arith.constant 5.000000e-01 : f32
    %182 = vector.broadcast %cst_74 : f32 to vector<32x16xf32>
    %183 = arith.mulf %182, %173 : vector<32x16xf32>
    %184 = arith.mulf %183, %173 : vector<32x16xf32>
    %185 = arith.addf %173, %184 : vector<32x16xf32>
    %186 = arith.select %181, %185, %176 : vector<32x16xi1>, vector<32x16xf32>
    %187 = arith.select %178, %173, %186 : vector<32x16xi1>, vector<32x16xf32>
    %cst_75 = arith.constant 0.000000e+00 : f32
    %188 = vector.broadcast %cst_75 : f32 to vector<32x2xf32>
    %189 = tpu.concatenate %188, %187 in 1 : vector<32x2xf32>, vector<32x16xf32> -> vector<32x18xf32>
    %190 = arith.truncf %189 : vector<32x18xf32> to vector<32x18xbf16>
    %cst_76 = arith.constant 0.000000e+00 : f32
    %191 = vector.broadcast %cst_76 : f32 to vector<32x16xf32>
    %c0_77 = arith.constant 0 : index
    %c0_78 = arith.constant 0 : index
    %c0_79 = arith.constant 0 : index
    %192 = vector.load %arg8[%c0_77, %c0_78, %c0_79] : memref<3x32x32xbf16, #tpu.memory_space<vmem>>, vector<1x32x32xbf16>
    %193 = vector.shape_cast %192 : vector<1x32x32xbf16> to vector<32x32xbf16>
    %194 = vector.extract_strided_slice %190 {offsets = [0, 0], sizes = [32, 16], strides = [1, 1]} : vector<32x18xbf16> to vector<32x16xbf16>
    %cst_80 = arith.constant dense<0.000000e+00> : vector<32x16xf32>
    %195 = tpu.matmul %193, %194, %cst_80 {dimension_numbers = #tpu.dot_dimension_numbers<[1], [0], [0], [1], [0, 0, 1, 1], [], []>} : vector<32x32xbf16>, vector<32x16xbf16>, vector<32x16xf32> -> vector<32x16xf32>
    %196 = arith.addf %191, %195 : vector<32x16xf32>
    %c1_81 = arith.constant 1 : index
    %c0_82 = arith.constant 0 : index
    %c0_83 = arith.constant 0 : index
    %197 = vector.load %arg8[%c1_81, %c0_82, %c0_83] : memref<3x32x32xbf16, #tpu.memory_space<vmem>>, vector<1x32x32xbf16>
    %198 = vector.shape_cast %197 : vector<1x32x32xbf16> to vector<32x32xbf16>
    %199 = vector.extract_strided_slice %190 {offsets = [0, 1], sizes = [32, 16], strides = [1, 1]} : vector<32x18xbf16> to vector<32x16xbf16>
    %cst_84 = arith.constant dense<0.000000e+00> : vector<32x16xf32>
    %200 = tpu.matmul %198, %199, %cst_84 {dimension_numbers = #tpu.dot_dimension_numbers<[1], [0], [0], [1], [0, 0, 1, 1], [], []>} : vector<32x32xbf16>, vector<32x16xbf16>, vector<32x16xf32> -> vector<32x16xf32>
    %201 = arith.addf %196, %200 : vector<32x16xf32>
    %c2_85 = arith.constant 2 : index
    %c0_86 = arith.constant 0 : index
    %c0_87 = arith.constant 0 : index
    %202 = vector.load %arg8[%c2_85, %c0_86, %c0_87] : memref<3x32x32xbf16, #tpu.memory_space<vmem>>, vector<1x32x32xbf16>
    %203 = vector.shape_cast %202 : vector<1x32x32xbf16> to vector<32x32xbf16>
    %204 = vector.extract_strided_slice %190 {offsets = [0, 2], sizes = [32, 16], strides = [1, 1]} : vector<32x18xbf16> to vector<32x16xbf16>
    %cst_88 = arith.constant dense<0.000000e+00> : vector<32x16xf32>
    %205 = tpu.matmul %203, %204, %cst_88 {dimension_numbers = #tpu.dot_dimension_numbers<[1], [0], [0], [1], [0, 0, 1, 1], [], []>} : vector<32x32xbf16>, vector<32x16xbf16>, vector<32x16xf32> -> vector<32x16xf32>
    %206 = arith.addf %201, %205 : vector<32x16xf32>
    %c0_89 = arith.constant 0 : index
    %c0_90 = arith.constant 0 : index
    %207 = vector.load %arg9[%c0_89, %c0_90] : memref<32x1xf32, #tpu.memory_space<vmem>>, vector<32x1xf32>
    %208 = vector.broadcast %207 : vector<32x1xf32> to vector<32x16xf32>
    %209 = arith.addf %206, %208 : vector<32x16xf32>
    %cst_91 = arith.constant 0.000000e+00 : f32
    %210 = vector.broadcast %cst_91 : f32 to vector<32x16xf32>
    %211 = tpu.iota {dimensions = array<i32: 0>} : vector<16x16xi32>
    %c0_92 = arith.constant 0 : index
    %c0_93 = arith.constant 0 : index
    %c0_94 = arith.constant 0 : index
    %212 = vector.load %arg10[%c0_92, %c0_93, %c0_94] : memref<4x16x32xf32, #tpu.memory_space<vmem>>, vector<1x16x32xf32>
    %213 = vector.shape_cast %212 : vector<1x16x32xf32> to vector<16x32xf32>
    %cst_95 = arith.constant dense<0.000000e+00> : vector<16x16xf32>
    %214 = tpu.matmul %213, %209, %cst_95 {dimension_numbers = #tpu.dot_dimension_numbers<[1], [0], [0], [1], [0, 0, 1, 1], [], []>} : vector<16x32xf32>, vector<32x16xf32>, vector<16x16xf32> -> vector<16x16xf32>
    %c0_96 = arith.constant 0 : index
    %c0_97 = arith.constant 0 : index
    %c0_98 = arith.constant 0 : index
    %215 = vector.load %arg12[%c0_96, %c0_97, %c0_98] : memref<4x16x1xf32, #tpu.memory_space<vmem>>, vector<1x16x1xf32>
    %216 = vector.shape_cast %215 : vector<1x16x1xf32> to vector<16x1xf32>
    %cst_99 = arith.constant 2.000000e+00 : f32
    %217 = vector.broadcast %cst_99 : f32 to vector<16x16xf32>
    %218 = arith.mulf %217, %214 : vector<16x16xf32>
    %219 = vector.broadcast %216 : vector<16x1xf32> to vector<16x16xf32>
    %220 = arith.subf %219, %218 : vector<16x16xf32>
    %cst_100 = arith.constant dense<0x7F800000> : vector<16xf32>
    %221 = vector.multi_reduction <minimumf>, %220, %cst_100 [0] : vector<16x16xf32> to vector<16xf32>
    %222 = vector.shape_cast %221 : vector<16xf32> to vector<1x16xf32>
    %223 = vector.broadcast %222 : vector<1x16xf32> to vector<16x16xf32>
    %224 = arith.cmpf ole, %220, %223 : vector<16x16xf32>
    %c16_i32 = arith.constant 16 : i32
    %225 = vector.broadcast %c16_i32 : i32 to vector<16x16xi32>
    %226 = arith.select %224, %211, %225 : vector<16x16xi1>, vector<16x16xi32>
    %cst_101 = arith.constant dense<2147483647> : vector<16xi32>
    %227 = vector.multi_reduction <minsi>, %226, %cst_101 [0] : vector<16x16xi32> to vector<16xi32>
    %228 = vector.shape_cast %227 : vector<16xi32> to vector<1x16xi32>
    %c15_i32 = arith.constant 15 : i32
    %229 = vector.broadcast %c15_i32 : i32 to vector<1x16xi32>
    %230 = arith.minsi %228, %229 : vector<1x16xi32>
    %231 = vector.broadcast %230 : vector<1x16xi32> to vector<16x16xi32>
    %232 = arith.cmpi eq, %211, %231 : vector<16x16xi32>
    %233 = arith.extui %232 : vector<16x16xi1> to vector<16x16xi32>
    %234 = arith.sitofp %233 : vector<16x16xi32> to vector<16x16xf32>
    %c0_102 = arith.constant 0 : index
    %c0_103 = arith.constant 0 : index
    %c0_104 = arith.constant 0 : index
    %235 = vector.load %arg11[%c0_102, %c0_103, %c0_104] : memref<4x32x16xf32, #tpu.memory_space<vmem>>, vector<1x32x16xf32>
    %236 = vector.shape_cast %235 : vector<1x32x16xf32> to vector<32x16xf32>
    %cst_105 = arith.constant dense<0.000000e+00> : vector<32x16xf32>
    %237 = tpu.matmul %236, %234, %cst_105 {dimension_numbers = #tpu.dot_dimension_numbers<[1], [0], [0], [1], [0, 0, 1, 1], [], []>} : vector<32x16xf32>, vector<16x16xf32>, vector<32x16xf32> -> vector<32x16xf32>
    %238 = arith.subf %209, %237 : vector<32x16xf32>
    %239 = arith.addf %210, %237 : vector<32x16xf32>
    %c1_106 = arith.constant 1 : index
    %c0_107 = arith.constant 0 : index
    %c0_108 = arith.constant 0 : index
    %240 = vector.load %arg10[%c1_106, %c0_107, %c0_108] : memref<4x16x32xf32, #tpu.memory_space<vmem>>, vector<1x16x32xf32>
    %241 = vector.shape_cast %240 : vector<1x16x32xf32> to vector<16x32xf32>
    %cst_109 = arith.constant dense<0.000000e+00> : vector<16x16xf32>
    %242 = tpu.matmul %241, %238, %cst_109 {dimension_numbers = #tpu.dot_dimension_numbers<[1], [0], [0], [1], [0, 0, 1, 1], [], []>} : vector<16x32xf32>, vector<32x16xf32>, vector<16x16xf32> -> vector<16x16xf32>
    %c1_110 = arith.constant 1 : index
    %c0_111 = arith.constant 0 : index
    %c0_112 = arith.constant 0 : index
    %243 = vector.load %arg12[%c1_110, %c0_111, %c0_112] : memref<4x16x1xf32, #tpu.memory_space<vmem>>, vector<1x16x1xf32>
    %244 = vector.shape_cast %243 : vector<1x16x1xf32> to vector<16x1xf32>
    %cst_113 = arith.constant 2.000000e+00 : f32
    %245 = vector.broadcast %cst_113 : f32 to vector<16x16xf32>
    %246 = arith.mulf %245, %242 : vector<16x16xf32>
    %247 = vector.broadcast %244 : vector<16x1xf32> to vector<16x16xf32>
    %248 = arith.subf %247, %246 : vector<16x16xf32>
    %cst_114 = arith.constant dense<0x7F800000> : vector<16xf32>
    %249 = vector.multi_reduction <minimumf>, %248, %cst_114 [0] : vector<16x16xf32> to vector<16xf32>
    %250 = vector.shape_cast %249 : vector<16xf32> to vector<1x16xf32>
    %251 = vector.broadcast %250 : vector<1x16xf32> to vector<16x16xf32>
    %252 = arith.cmpf ole, %248, %251 : vector<16x16xf32>
    %c16_i32_115 = arith.constant 16 : i32
    %253 = vector.broadcast %c16_i32_115 : i32 to vector<16x16xi32>
    %254 = arith.select %252, %211, %253 : vector<16x16xi1>, vector<16x16xi32>
    %cst_116 = arith.constant dense<2147483647> : vector<16xi32>
    %255 = vector.multi_reduction <minsi>, %254, %cst_116 [0] : vector<16x16xi32> to vector<16xi32>
    %256 = vector.shape_cast %255 : vector<16xi32> to vector<1x16xi32>
    %c15_i32_117 = arith.constant 15 : i32
    %257 = vector.broadcast %c15_i32_117 : i32 to vector<1x16xi32>
    %258 = arith.minsi %256, %257 : vector<1x16xi32>
    %259 = vector.broadcast %258 : vector<1x16xi32> to vector<16x16xi32>
    %260 = arith.cmpi eq, %211, %259 : vector<16x16xi32>
    %261 = arith.extui %260 : vector<16x16xi1> to vector<16x16xi32>
    %262 = arith.sitofp %261 : vector<16x16xi32> to vector<16x16xf32>
    %c1_118 = arith.constant 1 : index
    %c0_119 = arith.constant 0 : index
    %c0_120 = arith.constant 0 : index
    %263 = vector.load %arg11[%c1_118, %c0_119, %c0_120] : memref<4x32x16xf32, #tpu.memory_space<vmem>>, vector<1x32x16xf32>
    %264 = vector.shape_cast %263 : vector<1x32x16xf32> to vector<32x16xf32>
    %cst_121 = arith.constant dense<0.000000e+00> : vector<32x16xf32>
    %265 = tpu.matmul %264, %262, %cst_121 {dimension_numbers = #tpu.dot_dimension_numbers<[1], [0], [0], [1], [0, 0, 1, 1], [], []>} : vector<32x16xf32>, vector<16x16xf32>, vector<32x16xf32> -> vector<32x16xf32>
    %266 = arith.subf %238, %265 : vector<32x16xf32>
    %267 = arith.addf %239, %265 : vector<32x16xf32>
    %c2_122 = arith.constant 2 : index
    %c0_123 = arith.constant 0 : index
    %c0_124 = arith.constant 0 : index
    %268 = vector.load %arg10[%c2_122, %c0_123, %c0_124] : memref<4x16x32xf32, #tpu.memory_space<vmem>>, vector<1x16x32xf32>
    %269 = vector.shape_cast %268 : vector<1x16x32xf32> to vector<16x32xf32>
    %cst_125 = arith.constant dense<0.000000e+00> : vector<16x16xf32>
    %270 = tpu.matmul %269, %266, %cst_125 {dimension_numbers = #tpu.dot_dimension_numbers<[1], [0], [0], [1], [0, 0, 1, 1], [], []>} : vector<16x32xf32>, vector<32x16xf32>, vector<16x16xf32> -> vector<16x16xf32>
    %c2_126 = arith.constant 2 : index
    %c0_127 = arith.constant 0 : index
    %c0_128 = arith.constant 0 : index
    %271 = vector.load %arg12[%c2_126, %c0_127, %c0_128] : memref<4x16x1xf32, #tpu.memory_space<vmem>>, vector<1x16x1xf32>
    %272 = vector.shape_cast %271 : vector<1x16x1xf32> to vector<16x1xf32>
    %cst_129 = arith.constant 2.000000e+00 : f32
    %273 = vector.broadcast %cst_129 : f32 to vector<16x16xf32>
    %274 = arith.mulf %273, %270 : vector<16x16xf32>
    %275 = vector.broadcast %272 : vector<16x1xf32> to vector<16x16xf32>
    %276 = arith.subf %275, %274 : vector<16x16xf32>
    %cst_130 = arith.constant dense<0x7F800000> : vector<16xf32>
    %277 = vector.multi_reduction <minimumf>, %276, %cst_130 [0] : vector<16x16xf32> to vector<16xf32>
    %278 = vector.shape_cast %277 : vector<16xf32> to vector<1x16xf32>
    %279 = vector.broadcast %278 : vector<1x16xf32> to vector<16x16xf32>
    %280 = arith.cmpf ole, %276, %279 : vector<16x16xf32>
    %c16_i32_131 = arith.constant 16 : i32
    %281 = vector.broadcast %c16_i32_131 : i32 to vector<16x16xi32>
    %282 = arith.select %280, %211, %281 : vector<16x16xi1>, vector<16x16xi32>
    %cst_132 = arith.constant dense<2147483647> : vector<16xi32>
    %283 = vector.multi_reduction <minsi>, %282, %cst_132 [0] : vector<16x16xi32> to vector<16xi32>
    %284 = vector.shape_cast %283 : vector<16xi32> to vector<1x16xi32>
    %c15_i32_133 = arith.constant 15 : i32
    %285 = vector.broadcast %c15_i32_133 : i32 to vector<1x16xi32>
    %286 = arith.minsi %284, %285 : vector<1x16xi32>
    %287 = vector.broadcast %286 : vector<1x16xi32> to vector<16x16xi32>
    %288 = arith.cmpi eq, %211, %287 : vector<16x16xi32>
    %289 = arith.extui %288 : vector<16x16xi1> to vector<16x16xi32>
    %290 = arith.sitofp %289 : vector<16x16xi32> to vector<16x16xf32>
    %c2_134 = arith.constant 2 : index
    %c0_135 = arith.constant 0 : index
    %c0_136 = arith.constant 0 : index
    %291 = vector.load %arg11[%c2_134, %c0_135, %c0_136] : memref<4x32x16xf32, #tpu.memory_space<vmem>>, vector<1x32x16xf32>
    %292 = vector.shape_cast %291 : vector<1x32x16xf32> to vector<32x16xf32>
    %cst_137 = arith.constant dense<0.000000e+00> : vector<32x16xf32>
    %293 = tpu.matmul %292, %290, %cst_137 {dimension_numbers = #tpu.dot_dimension_numbers<[1], [0], [0], [1], [0, 0, 1, 1], [], []>} : vector<32x16xf32>, vector<16x16xf32>, vector<32x16xf32> -> vector<32x16xf32>
    %294 = arith.subf %266, %293 : vector<32x16xf32>
    %295 = arith.addf %267, %293 : vector<32x16xf32>
    %c3_138 = arith.constant 3 : index
    %c0_139 = arith.constant 0 : index
    %c0_140 = arith.constant 0 : index
    %296 = vector.load %arg10[%c3_138, %c0_139, %c0_140] : memref<4x16x32xf32, #tpu.memory_space<vmem>>, vector<1x16x32xf32>
    %297 = vector.shape_cast %296 : vector<1x16x32xf32> to vector<16x32xf32>
    %cst_141 = arith.constant dense<0.000000e+00> : vector<16x16xf32>
    %298 = tpu.matmul %297, %294, %cst_141 {dimension_numbers = #tpu.dot_dimension_numbers<[1], [0], [0], [1], [0, 0, 1, 1], [], []>} : vector<16x32xf32>, vector<32x16xf32>, vector<16x16xf32> -> vector<16x16xf32>
    %c3_142 = arith.constant 3 : index
    %c0_143 = arith.constant 0 : index
    %c0_144 = arith.constant 0 : index
    %299 = vector.load %arg12[%c3_142, %c0_143, %c0_144] : memref<4x16x1xf32, #tpu.memory_space<vmem>>, vector<1x16x1xf32>
    %300 = vector.shape_cast %299 : vector<1x16x1xf32> to vector<16x1xf32>
    %cst_145 = arith.constant 2.000000e+00 : f32
    %301 = vector.broadcast %cst_145 : f32 to vector<16x16xf32>
    %302 = arith.mulf %301, %298 : vector<16x16xf32>
    %303 = vector.broadcast %300 : vector<16x1xf32> to vector<16x16xf32>
    %304 = arith.subf %303, %302 : vector<16x16xf32>
    %cst_146 = arith.constant dense<0x7F800000> : vector<16xf32>
    %305 = vector.multi_reduction <minimumf>, %304, %cst_146 [0] : vector<16x16xf32> to vector<16xf32>
    %306 = vector.shape_cast %305 : vector<16xf32> to vector<1x16xf32>
    %307 = vector.broadcast %306 : vector<1x16xf32> to vector<16x16xf32>
    %308 = arith.cmpf ole, %304, %307 : vector<16x16xf32>
    %c16_i32_147 = arith.constant 16 : i32
    %309 = vector.broadcast %c16_i32_147 : i32 to vector<16x16xi32>
    %310 = arith.select %308, %211, %309 : vector<16x16xi1>, vector<16x16xi32>
    %cst_148 = arith.constant dense<2147483647> : vector<16xi32>
    %311 = vector.multi_reduction <minsi>, %310, %cst_148 [0] : vector<16x16xi32> to vector<16xi32>
    %312 = vector.shape_cast %311 : vector<16xi32> to vector<1x16xi32>
    %c15_i32_149 = arith.constant 15 : i32
    %313 = vector.broadcast %c15_i32_149 : i32 to vector<1x16xi32>
    %314 = arith.minsi %312, %313 : vector<1x16xi32>
    %315 = vector.broadcast %314 : vector<1x16xi32> to vector<16x16xi32>
    %316 = arith.cmpi eq, %211, %315 : vector<16x16xi32>
    %317 = arith.extui %316 : vector<16x16xi1> to vector<16x16xi32>
    %318 = arith.sitofp %317 : vector<16x16xi32> to vector<16x16xf32>
    %c3_150 = arith.constant 3 : index
    %c0_151 = arith.constant 0 : index
    %c0_152 = arith.constant 0 : index
    %319 = vector.load %arg11[%c3_150, %c0_151, %c0_152] : memref<4x32x16xf32, #tpu.memory_space<vmem>>, vector<1x32x16xf32>
    %320 = vector.shape_cast %319 : vector<1x32x16xf32> to vector<32x16xf32>
    %cst_153 = arith.constant dense<0.000000e+00> : vector<32x16xf32>
    %321 = tpu.matmul %320, %318, %cst_153 {dimension_numbers = #tpu.dot_dimension_numbers<[1], [0], [0], [1], [0, 0, 1, 1], [], []>} : vector<32x16xf32>, vector<16x16xf32>, vector<32x16xf32> -> vector<32x16xf32>
    %322 = arith.addf %295, %321 : vector<32x16xf32>
    %323 = tpu.concatenate %230, %258, %286, %314 in 0 : vector<1x16xi32>, vector<1x16xi32>, vector<1x16xi32>, vector<1x16xi32> -> vector<4x16xi32>
    %cst_154 = arith.constant 0.000000e+00 : f32
    %324 = vector.broadcast %cst_154 : f32 to vector<32x2xf32>
    %325 = tpu.concatenate %324, %322 in 1 : vector<32x2xf32>, vector<32x16xf32> -> vector<32x18xf32>
    %326 = arith.truncf %325 : vector<32x18xf32> to vector<32x18xbf16>
    %cst_155 = arith.constant 0.000000e+00 : f32
    %327 = vector.broadcast %cst_155 : f32 to vector<32x16xf32>
    %c0_156 = arith.constant 0 : index
    %c0_157 = arith.constant 0 : index
    %c0_158 = arith.constant 0 : index
    %328 = vector.load %arg13[%c0_156, %c0_157, %c0_158] : memref<3x32x32xbf16, #tpu.memory_space<vmem>>, vector<1x32x32xbf16>
    %329 = vector.shape_cast %328 : vector<1x32x32xbf16> to vector<32x32xbf16>
    %330 = vector.extract_strided_slice %326 {offsets = [0, 0], sizes = [32, 16], strides = [1, 1]} : vector<32x18xbf16> to vector<32x16xbf16>
    %cst_159 = arith.constant dense<0.000000e+00> : vector<32x16xf32>
    %331 = tpu.matmul %329, %330, %cst_159 {dimension_numbers = #tpu.dot_dimension_numbers<[1], [0], [0], [1], [0, 0, 1, 1], [], []>} : vector<32x32xbf16>, vector<32x16xbf16>, vector<32x16xf32> -> vector<32x16xf32>
    %332 = arith.addf %327, %331 : vector<32x16xf32>
    %c1_160 = arith.constant 1 : index
    %c0_161 = arith.constant 0 : index
    %c0_162 = arith.constant 0 : index
    %333 = vector.load %arg13[%c1_160, %c0_161, %c0_162] : memref<3x32x32xbf16, #tpu.memory_space<vmem>>, vector<1x32x32xbf16>
    %334 = vector.shape_cast %333 : vector<1x32x32xbf16> to vector<32x32xbf16>
    %335 = vector.extract_strided_slice %326 {offsets = [0, 1], sizes = [32, 16], strides = [1, 1]} : vector<32x18xbf16> to vector<32x16xbf16>
    %cst_163 = arith.constant dense<0.000000e+00> : vector<32x16xf32>
    %336 = tpu.matmul %334, %335, %cst_163 {dimension_numbers = #tpu.dot_dimension_numbers<[1], [0], [0], [1], [0, 0, 1, 1], [], []>} : vector<32x32xbf16>, vector<32x16xbf16>, vector<32x16xf32> -> vector<32x16xf32>
    %337 = arith.addf %332, %336 : vector<32x16xf32>
    %c2_164 = arith.constant 2 : index
    %c0_165 = arith.constant 0 : index
    %c0_166 = arith.constant 0 : index
    %338 = vector.load %arg13[%c2_164, %c0_165, %c0_166] : memref<3x32x32xbf16, #tpu.memory_space<vmem>>, vector<1x32x32xbf16>
    %339 = vector.shape_cast %338 : vector<1x32x32xbf16> to vector<32x32xbf16>
    %340 = vector.extract_strided_slice %326 {offsets = [0, 2], sizes = [32, 16], strides = [1, 1]} : vector<32x18xbf16> to vector<32x16xbf16>
    %cst_167 = arith.constant dense<0.000000e+00> : vector<32x16xf32>
    %341 = tpu.matmul %339, %340, %cst_167 {dimension_numbers = #tpu.dot_dimension_numbers<[1], [0], [0], [1], [0, 0, 1, 1], [], []>} : vector<32x32xbf16>, vector<32x16xbf16>, vector<32x16xf32> -> vector<32x16xf32>
    %342 = arith.addf %337, %341 : vector<32x16xf32>
    %c0_168 = arith.constant 0 : index
    %c0_169 = arith.constant 0 : index
    %343 = vector.load %arg14[%c0_168, %c0_169] : memref<32x1xf32, #tpu.memory_space<vmem>>, vector<32x1xf32>
    %344 = vector.broadcast %343 : vector<32x1xf32> to vector<32x16xf32>
    %345 = arith.addf %342, %344 : vector<32x16xf32>
    %346 = math.exp %345 : vector<32x16xf32>
    %cst_170 = arith.constant 1.000000e+00 : f32
    %347 = vector.broadcast %cst_170 : f32 to vector<32x16xf32>
    %348 = arith.subf %346, %347 : vector<32x16xf32>
    %cst_171 = arith.constant 0.000000e+00 : f32
    %349 = vector.broadcast %cst_171 : f32 to vector<32x16xf32>
    %350 = arith.cmpf ogt, %345, %349 : vector<32x16xf32>
    %351 = math.absf %345 : vector<32x16xf32>
    %cst_172 = arith.constant 9.99999974E-5 : f32
    %352 = vector.broadcast %cst_172 : f32 to vector<32x16xf32>
    %353 = arith.cmpf olt, %351, %352 : vector<32x16xf32>
    %cst_173 = arith.constant 5.000000e-01 : f32
    %354 = vector.broadcast %cst_173 : f32 to vector<32x16xf32>
    %355 = arith.mulf %354, %345 : vector<32x16xf32>
    %356 = arith.mulf %355, %345 : vector<32x16xf32>
    %357 = arith.addf %345, %356 : vector<32x16xf32>
    %358 = arith.select %353, %357, %348 : vector<32x16xi1>, vector<32x16xf32>
    %359 = arith.select %350, %345, %358 : vector<32x16xi1>, vector<32x16xf32>
    %cst_174 = arith.constant 0.000000e+00 : f32
    %360 = vector.broadcast %cst_174 : f32 to vector<32x1xf32>
    %361 = tpu.concatenate %360, %359 in 1 : vector<32x1xf32>, vector<32x16xf32> -> vector<32x17xf32>
    %362 = arith.truncf %361 : vector<32x17xf32> to vector<32x17xbf16>
    %cst_175 = arith.constant 0.000000e+00 : f32
    %363 = vector.broadcast %cst_175 : f32 to vector<16x16xf32>
    %c0_176 = arith.constant 0 : index
    %c0_177 = arith.constant 0 : index
    %c0_178 = arith.constant 0 : index
    %364 = vector.load %arg15[%c0_176, %c0_177, %c0_178] : memref<4x16x32xbf16, #tpu.memory_space<vmem>>, vector<1x16x32xbf16>
    %365 = vector.shape_cast %364 : vector<1x16x32xbf16> to vector<16x32xbf16>
    %366 = vector.extract_strided_slice %362 {offsets = [0, 1], sizes = [32, 16], strides = [1, 1]} : vector<32x17xbf16> to vector<32x16xbf16>
    %cst_179 = arith.constant dense<0.000000e+00> : vector<16x16xf32>
    %367 = tpu.matmul %365, %366, %cst_179 {dimension_numbers = #tpu.dot_dimension_numbers<[1], [0], [0], [1], [0, 0, 1, 1], [], []>} : vector<16x32xbf16>, vector<32x16xbf16>, vector<16x16xf32> -> vector<16x16xf32>
    %368 = arith.addf %363, %367 : vector<16x16xf32>
    %c2_180 = arith.constant 2 : index
    %c0_181 = arith.constant 0 : index
    %c0_182 = arith.constant 0 : index
    %369 = vector.load %arg15[%c2_180, %c0_181, %c0_182] : memref<4x16x32xbf16, #tpu.memory_space<vmem>>, vector<1x16x32xbf16>
    %370 = vector.shape_cast %369 : vector<1x16x32xbf16> to vector<16x32xbf16>
    %371 = vector.extract_strided_slice %362 {offsets = [0, 0], sizes = [32, 16], strides = [1, 1]} : vector<32x17xbf16> to vector<32x16xbf16>
    %cst_183 = arith.constant dense<0.000000e+00> : vector<16x16xf32>
    %372 = tpu.matmul %370, %371, %cst_183 {dimension_numbers = #tpu.dot_dimension_numbers<[1], [0], [0], [1], [0, 0, 1, 1], [], []>} : vector<16x32xbf16>, vector<32x16xbf16>, vector<16x16xf32> -> vector<16x16xf32>
    %373 = arith.addf %368, %372 : vector<16x16xf32>
    %cst_184 = arith.constant 0.000000e+00 : f32
    %374 = vector.broadcast %cst_184 : f32 to vector<16x16xf32>
    %c1_185 = arith.constant 1 : index
    %c0_186 = arith.constant 0 : index
    %c0_187 = arith.constant 0 : index
    %375 = vector.load %arg15[%c1_185, %c0_186, %c0_187] : memref<4x16x32xbf16, #tpu.memory_space<vmem>>, vector<1x16x32xbf16>
    %376 = vector.shape_cast %375 : vector<1x16x32xbf16> to vector<16x32xbf16>
    %377 = vector.extract_strided_slice %362 {offsets = [0, 1], sizes = [32, 16], strides = [1, 1]} : vector<32x17xbf16> to vector<32x16xbf16>
    %cst_188 = arith.constant dense<0.000000e+00> : vector<16x16xf32>
    %378 = tpu.matmul %376, %377, %cst_188 {dimension_numbers = #tpu.dot_dimension_numbers<[1], [0], [0], [1], [0, 0, 1, 1], [], []>} : vector<16x32xbf16>, vector<32x16xbf16>, vector<16x16xf32> -> vector<16x16xf32>
    %379 = arith.addf %374, %378 : vector<16x16xf32>
    %c3_189 = arith.constant 3 : index
    %c0_190 = arith.constant 0 : index
    %c0_191 = arith.constant 0 : index
    %380 = vector.load %arg15[%c3_189, %c0_190, %c0_191] : memref<4x16x32xbf16, #tpu.memory_space<vmem>>, vector<1x16x32xbf16>
    %381 = vector.shape_cast %380 : vector<1x16x32xbf16> to vector<16x32xbf16>
    %382 = vector.extract_strided_slice %362 {offsets = [0, 0], sizes = [32, 16], strides = [1, 1]} : vector<32x17xbf16> to vector<32x16xbf16>
    %cst_192 = arith.constant dense<0.000000e+00> : vector<16x16xf32>
    %383 = tpu.matmul %381, %382, %cst_192 {dimension_numbers = #tpu.dot_dimension_numbers<[1], [0], [0], [1], [0, 0, 1, 1], [], []>} : vector<16x32xbf16>, vector<32x16xbf16>, vector<16x16xf32> -> vector<16x16xf32>
    %384 = arith.addf %379, %383 : vector<16x16xf32>
    %385 = tpu.iota {dimensions = array<i32: 0>} : vector<16x32xi32>
    %386 = tpu.iota {dimensions = array<i32: 1>} : vector<16x32xi32>
    %c2_i32_193 = arith.constant 2 : i32
    %387 = vector.broadcast %c2_i32_193 : i32 to vector<16x32xi32>
    %388 = arith.muli %387, %385 : vector<16x32xi32>
    %389 = arith.cmpi eq, %386, %388 : vector<16x32xi32>
    %390 = arith.extui %389 : vector<16x32xi1> to vector<16x32xi32>
    %391 = arith.sitofp %390 : vector<16x32xi32> to vector<16x32xf32>
    %392 = arith.truncf %391 : vector<16x32xf32> to vector<16x32xbf16>
    %c2_i32_194 = arith.constant 2 : i32
    %393 = vector.broadcast %c2_i32_194 : i32 to vector<16x32xi32>
    %394 = arith.muli %393, %385 : vector<16x32xi32>
    %c1_i32 = arith.constant 1 : i32
    %395 = vector.broadcast %c1_i32 : i32 to vector<16x32xi32>
    %396 = arith.addi %394, %395 : vector<16x32xi32>
    %397 = arith.cmpi eq, %386, %396 : vector<16x32xi32>
    %398 = arith.extui %397 : vector<16x32xi1> to vector<16x32xi32>
    %399 = arith.sitofp %398 : vector<16x32xi32> to vector<16x32xf32>
    %400 = arith.truncf %399 : vector<16x32xf32> to vector<16x32xbf16>
    %401 = arith.truncf %373 : vector<16x16xf32> to vector<16x16xbf16>
    %cst_195 = arith.constant dense<0.000000e+00> : vector<16x32xf32>
    %402 = tpu.matmul %401, %392, %cst_195 {dimension_numbers = #tpu.dot_dimension_numbers<[1], [0], [0], [1], [0, 0, 1, 1], [], []>} : vector<16x16xbf16>, vector<16x32xbf16>, vector<16x32xf32> -> vector<16x32xf32>
    %403 = arith.truncf %384 : vector<16x16xf32> to vector<16x16xbf16>
    %cst_196 = arith.constant dense<0.000000e+00> : vector<16x32xf32>
    %404 = tpu.matmul %403, %400, %cst_196 {dimension_numbers = #tpu.dot_dimension_numbers<[1], [0], [0], [1], [0, 0, 1, 1], [], []>} : vector<16x16xbf16>, vector<16x32xbf16>, vector<16x32xf32> -> vector<16x32xf32>
    %405 = arith.addf %402, %404 : vector<16x32xf32>
    %c0_197 = arith.constant 0 : index
    %c0_198 = arith.constant 0 : index
    %406 = vector.load %arg16[%c0_197, %c0_198] : memref<16x1xf32, #tpu.memory_space<vmem>>, vector<16x1xf32>
    %407 = vector.broadcast %406 : vector<16x1xf32> to vector<16x32xf32>
    %408 = arith.addf %405, %407 : vector<16x32xf32>
    %409 = math.exp %408 : vector<16x32xf32>
    %cst_199 = arith.constant 1.000000e+00 : f32
    %410 = vector.broadcast %cst_199 : f32 to vector<16x32xf32>
    %411 = arith.subf %409, %410 : vector<16x32xf32>
    %cst_200 = arith.constant 0.000000e+00 : f32
    %412 = vector.broadcast %cst_200 : f32 to vector<16x32xf32>
    %413 = arith.cmpf ogt, %408, %412 : vector<16x32xf32>
    %414 = math.absf %408 : vector<16x32xf32>
    %cst_201 = arith.constant 9.99999974E-5 : f32
    %415 = vector.broadcast %cst_201 : f32 to vector<16x32xf32>
    %416 = arith.cmpf olt, %414, %415 : vector<16x32xf32>
    %cst_202 = arith.constant 5.000000e-01 : f32
    %417 = vector.broadcast %cst_202 : f32 to vector<16x32xf32>
    %418 = arith.mulf %417, %408 : vector<16x32xf32>
    %419 = arith.mulf %418, %408 : vector<16x32xf32>
    %420 = arith.addf %408, %419 : vector<16x32xf32>
    %421 = arith.select %416, %420, %411 : vector<16x32xi1>, vector<16x32xf32>
    %422 = arith.select %413, %408, %421 : vector<16x32xi1>, vector<16x32xf32>
    %cst_203 = arith.constant 0.000000e+00 : f32
    %423 = vector.broadcast %cst_203 : f32 to vector<16x1xf32>
    %424 = tpu.concatenate %423, %422 in 1 : vector<16x1xf32>, vector<16x32xf32> -> vector<16x33xf32>
    %425 = arith.truncf %424 : vector<16x33xf32> to vector<16x33xbf16>
    %cst_204 = arith.constant 0.000000e+00 : f32
    %426 = vector.broadcast %cst_204 : f32 to vector<16x32xf32>
    %c0_205 = arith.constant 0 : index
    %c0_206 = arith.constant 0 : index
    %c0_207 = arith.constant 0 : index
    %427 = vector.load %arg17[%c0_205, %c0_206, %c0_207] : memref<4x16x16xbf16, #tpu.memory_space<vmem>>, vector<1x16x16xbf16>
    %428 = vector.shape_cast %427 : vector<1x16x16xbf16> to vector<16x16xbf16>
    %429 = vector.extract_strided_slice %425 {offsets = [0, 1], sizes = [16, 32], strides = [1, 1]} : vector<16x33xbf16> to vector<16x32xbf16>
    %cst_208 = arith.constant dense<0.000000e+00> : vector<16x32xf32>
    %430 = tpu.matmul %428, %429, %cst_208 {dimension_numbers = #tpu.dot_dimension_numbers<[1], [0], [0], [1], [0, 0, 1, 1], [], []>} : vector<16x16xbf16>, vector<16x32xbf16>, vector<16x32xf32> -> vector<16x32xf32>
    %431 = arith.addf %426, %430 : vector<16x32xf32>
    %c2_209 = arith.constant 2 : index
    %c0_210 = arith.constant 0 : index
    %c0_211 = arith.constant 0 : index
    %432 = vector.load %arg17[%c2_209, %c0_210, %c0_211] : memref<4x16x16xbf16, #tpu.memory_space<vmem>>, vector<1x16x16xbf16>
    %433 = vector.shape_cast %432 : vector<1x16x16xbf16> to vector<16x16xbf16>
    %434 = vector.extract_strided_slice %425 {offsets = [0, 0], sizes = [16, 32], strides = [1, 1]} : vector<16x33xbf16> to vector<16x32xbf16>
    %cst_212 = arith.constant dense<0.000000e+00> : vector<16x32xf32>
    %435 = tpu.matmul %433, %434, %cst_212 {dimension_numbers = #tpu.dot_dimension_numbers<[1], [0], [0], [1], [0, 0, 1, 1], [], []>} : vector<16x16xbf16>, vector<16x32xbf16>, vector<16x32xf32> -> vector<16x32xf32>
    %436 = arith.addf %431, %435 : vector<16x32xf32>
    %cst_213 = arith.constant 0.000000e+00 : f32
    %437 = vector.broadcast %cst_213 : f32 to vector<16x32xf32>
    %c1_214 = arith.constant 1 : index
    %c0_215 = arith.constant 0 : index
    %c0_216 = arith.constant 0 : index
    %438 = vector.load %arg17[%c1_214, %c0_215, %c0_216] : memref<4x16x16xbf16, #tpu.memory_space<vmem>>, vector<1x16x16xbf16>
    %439 = vector.shape_cast %438 : vector<1x16x16xbf16> to vector<16x16xbf16>
    %440 = vector.extract_strided_slice %425 {offsets = [0, 1], sizes = [16, 32], strides = [1, 1]} : vector<16x33xbf16> to vector<16x32xbf16>
    %cst_217 = arith.constant dense<0.000000e+00> : vector<16x32xf32>
    %441 = tpu.matmul %439, %440, %cst_217 {dimension_numbers = #tpu.dot_dimension_numbers<[1], [0], [0], [1], [0, 0, 1, 1], [], []>} : vector<16x16xbf16>, vector<16x32xbf16>, vector<16x32xf32> -> vector<16x32xf32>
    %442 = arith.addf %437, %441 : vector<16x32xf32>
    %c3_218 = arith.constant 3 : index
    %c0_219 = arith.constant 0 : index
    %c0_220 = arith.constant 0 : index
    %443 = vector.load %arg17[%c3_218, %c0_219, %c0_220] : memref<4x16x16xbf16, #tpu.memory_space<vmem>>, vector<1x16x16xbf16>
    %444 = vector.shape_cast %443 : vector<1x16x16xbf16> to vector<16x16xbf16>
    %445 = vector.extract_strided_slice %425 {offsets = [0, 0], sizes = [16, 32], strides = [1, 1]} : vector<16x33xbf16> to vector<16x32xbf16>
    %cst_221 = arith.constant dense<0.000000e+00> : vector<16x32xf32>
    %446 = tpu.matmul %444, %445, %cst_221 {dimension_numbers = #tpu.dot_dimension_numbers<[1], [0], [0], [1], [0, 0, 1, 1], [], []>} : vector<16x16xbf16>, vector<16x32xbf16>, vector<16x32xf32> -> vector<16x32xf32>
    %447 = arith.addf %442, %446 : vector<16x32xf32>
    %448 = tpu.iota {dimensions = array<i32: 0>} : vector<32x64xi32>
    %449 = tpu.iota {dimensions = array<i32: 1>} : vector<32x64xi32>
    %c2_i32_222 = arith.constant 2 : i32
    %450 = vector.broadcast %c2_i32_222 : i32 to vector<32x64xi32>
    %451 = arith.muli %450, %448 : vector<32x64xi32>
    %452 = arith.cmpi eq, %449, %451 : vector<32x64xi32>
    %453 = arith.extui %452 : vector<32x64xi1> to vector<32x64xi32>
    %454 = arith.sitofp %453 : vector<32x64xi32> to vector<32x64xf32>
    %455 = arith.truncf %454 : vector<32x64xf32> to vector<32x64xbf16>
    %c2_i32_223 = arith.constant 2 : i32
    %456 = vector.broadcast %c2_i32_223 : i32 to vector<32x64xi32>
    %457 = arith.muli %456, %448 : vector<32x64xi32>
    %c1_i32_224 = arith.constant 1 : i32
    %458 = vector.broadcast %c1_i32_224 : i32 to vector<32x64xi32>
    %459 = arith.addi %457, %458 : vector<32x64xi32>
    %460 = arith.cmpi eq, %449, %459 : vector<32x64xi32>
    %461 = arith.extui %460 : vector<32x64xi1> to vector<32x64xi32>
    %462 = arith.sitofp %461 : vector<32x64xi32> to vector<32x64xf32>
    %463 = arith.truncf %462 : vector<32x64xf32> to vector<32x64xbf16>
    %464 = arith.truncf %436 : vector<16x32xf32> to vector<16x32xbf16>
    %cst_225 = arith.constant dense<0.000000e+00> : vector<16x64xf32>
    %465 = tpu.matmul %464, %455, %cst_225 {dimension_numbers = #tpu.dot_dimension_numbers<[1], [0], [0], [1], [0, 0, 1, 1], [], []>} : vector<16x32xbf16>, vector<32x64xbf16>, vector<16x64xf32> -> vector<16x64xf32>
    %466 = arith.truncf %447 : vector<16x32xf32> to vector<16x32xbf16>
    %cst_226 = arith.constant dense<0.000000e+00> : vector<16x64xf32>
    %467 = tpu.matmul %466, %463, %cst_226 {dimension_numbers = #tpu.dot_dimension_numbers<[1], [0], [0], [1], [0, 0, 1, 1], [], []>} : vector<16x32xbf16>, vector<32x64xbf16>, vector<16x64xf32> -> vector<16x64xf32>
    %468 = arith.addf %465, %467 : vector<16x64xf32>
    %c0_227 = arith.constant 0 : index
    %c0_228 = arith.constant 0 : index
    %469 = vector.load %arg18[%c0_227, %c0_228] : memref<16x1xf32, #tpu.memory_space<vmem>>, vector<16x1xf32>
    %470 = vector.broadcast %469 : vector<16x1xf32> to vector<16x64xf32>
    %471 = arith.addf %468, %470 : vector<16x64xf32>
    %472 = math.exp %471 : vector<16x64xf32>
    %cst_229 = arith.constant 1.000000e+00 : f32
    %473 = vector.broadcast %cst_229 : f32 to vector<16x64xf32>
    %474 = arith.subf %472, %473 : vector<16x64xf32>
    %cst_230 = arith.constant 0.000000e+00 : f32
    %475 = vector.broadcast %cst_230 : f32 to vector<16x64xf32>
    %476 = arith.cmpf ogt, %471, %475 : vector<16x64xf32>
    %477 = math.absf %471 : vector<16x64xf32>
    %cst_231 = arith.constant 9.99999974E-5 : f32
    %478 = vector.broadcast %cst_231 : f32 to vector<16x64xf32>
    %479 = arith.cmpf olt, %477, %478 : vector<16x64xf32>
    %cst_232 = arith.constant 5.000000e-01 : f32
    %480 = vector.broadcast %cst_232 : f32 to vector<16x64xf32>
    %481 = arith.mulf %480, %471 : vector<16x64xf32>
    %482 = arith.mulf %481, %471 : vector<16x64xf32>
    %483 = arith.addf %471, %482 : vector<16x64xf32>
    %484 = arith.select %479, %483, %474 : vector<16x64xi1>, vector<16x64xf32>
    %485 = arith.select %476, %471, %484 : vector<16x64xi1>, vector<16x64xf32>
    %cst_233 = arith.constant 0.000000e+00 : f32
    %486 = vector.broadcast %cst_233 : f32 to vector<16x6xf32>
    %487 = tpu.concatenate %486, %485 in 1 : vector<16x6xf32>, vector<16x64xf32> -> vector<16x70xf32>
    %488 = arith.truncf %487 : vector<16x70xf32> to vector<16x70xbf16>
    %cst_234 = arith.constant 0.000000e+00 : f32
    %489 = vector.broadcast %cst_234 : f32 to vector<1x64xf32>
    %c0_235 = arith.constant 0 : index
    %c0_236 = arith.constant 0 : index
    %c0_237 = arith.constant 0 : index
    %490 = vector.load %arg19[%c0_235, %c0_236, %c0_237] : memref<7x1x16xbf16, #tpu.memory_space<vmem>>, vector<1x1x16xbf16>
    %491 = vector.shape_cast %490 : vector<1x1x16xbf16> to vector<1x16xbf16>
    %492 = vector.extract_strided_slice %488 {offsets = [0, 0], sizes = [16, 64], strides = [1, 1]} : vector<16x70xbf16> to vector<16x64xbf16>
    %cst_238 = arith.constant dense<0.000000e+00> : vector<1x64xf32>
    %493 = tpu.matmul %491, %492, %cst_238 {dimension_numbers = #tpu.dot_dimension_numbers<[1], [0], [0], [1], [0, 0, 1, 1], [], []>} : vector<1x16xbf16>, vector<16x64xbf16>, vector<1x64xf32> -> vector<1x64xf32>
    %494 = arith.addf %489, %493 : vector<1x64xf32>
    %c1_239 = arith.constant 1 : index
    %c0_240 = arith.constant 0 : index
    %c0_241 = arith.constant 0 : index
    %495 = vector.load %arg19[%c1_239, %c0_240, %c0_241] : memref<7x1x16xbf16, #tpu.memory_space<vmem>>, vector<1x1x16xbf16>
    %496 = vector.shape_cast %495 : vector<1x1x16xbf16> to vector<1x16xbf16>
    %497 = vector.extract_strided_slice %488 {offsets = [0, 1], sizes = [16, 64], strides = [1, 1]} : vector<16x70xbf16> to vector<16x64xbf16>
    %cst_242 = arith.constant dense<0.000000e+00> : vector<1x64xf32>
    %498 = tpu.matmul %496, %497, %cst_242 {dimension_numbers = #tpu.dot_dimension_numbers<[1], [0], [0], [1], [0, 0, 1, 1], [], []>} : vector<1x16xbf16>, vector<16x64xbf16>, vector<1x64xf32> -> vector<1x64xf32>
    %499 = arith.addf %494, %498 : vector<1x64xf32>
    %c2_243 = arith.constant 2 : index
    %c0_244 = arith.constant 0 : index
    %c0_245 = arith.constant 0 : index
    %500 = vector.load %arg19[%c2_243, %c0_244, %c0_245] : memref<7x1x16xbf16, #tpu.memory_space<vmem>>, vector<1x1x16xbf16>
    %501 = vector.shape_cast %500 : vector<1x1x16xbf16> to vector<1x16xbf16>
    %502 = vector.extract_strided_slice %488 {offsets = [0, 2], sizes = [16, 64], strides = [1, 1]} : vector<16x70xbf16> to vector<16x64xbf16>
    %cst_246 = arith.constant dense<0.000000e+00> : vector<1x64xf32>
    %503 = tpu.matmul %501, %502, %cst_246 {dimension_numbers = #tpu.dot_dimension_numbers<[1], [0], [0], [1], [0, 0, 1, 1], [], []>} : vector<1x16xbf16>, vector<16x64xbf16>, vector<1x64xf32> -> vector<1x64xf32>
    %504 = arith.addf %499, %503 : vector<1x64xf32>
    %c3_247 = arith.constant 3 : index
    %c0_248 = arith.constant 0 : index
    %c0_249 = arith.constant 0 : index
    %505 = vector.load %arg19[%c3_247, %c0_248, %c0_249] : memref<7x1x16xbf16, #tpu.memory_space<vmem>>, vector<1x1x16xbf16>
    %506 = vector.shape_cast %505 : vector<1x1x16xbf16> to vector<1x16xbf16>
    %507 = vector.extract_strided_slice %488 {offsets = [0, 3], sizes = [16, 64], strides = [1, 1]} : vector<16x70xbf16> to vector<16x64xbf16>
    %cst_250 = arith.constant dense<0.000000e+00> : vector<1x64xf32>
    %508 = tpu.matmul %506, %507, %cst_250 {dimension_numbers = #tpu.dot_dimension_numbers<[1], [0], [0], [1], [0, 0, 1, 1], [], []>} : vector<1x16xbf16>, vector<16x64xbf16>, vector<1x64xf32> -> vector<1x64xf32>
    %509 = arith.addf %504, %508 : vector<1x64xf32>
    %c4_251 = arith.constant 4 : index
    %c0_252 = arith.constant 0 : index
    %c0_253 = arith.constant 0 : index
    %510 = vector.load %arg19[%c4_251, %c0_252, %c0_253] : memref<7x1x16xbf16, #tpu.memory_space<vmem>>, vector<1x1x16xbf16>
    %511 = vector.shape_cast %510 : vector<1x1x16xbf16> to vector<1x16xbf16>
    %512 = vector.extract_strided_slice %488 {offsets = [0, 4], sizes = [16, 64], strides = [1, 1]} : vector<16x70xbf16> to vector<16x64xbf16>
    %cst_254 = arith.constant dense<0.000000e+00> : vector<1x64xf32>
    %513 = tpu.matmul %511, %512, %cst_254 {dimension_numbers = #tpu.dot_dimension_numbers<[1], [0], [0], [1], [0, 0, 1, 1], [], []>} : vector<1x16xbf16>, vector<16x64xbf16>, vector<1x64xf32> -> vector<1x64xf32>
    %514 = arith.addf %509, %513 : vector<1x64xf32>
    %c5_255 = arith.constant 5 : index
    %c0_256 = arith.constant 0 : index
    %c0_257 = arith.constant 0 : index
    %515 = vector.load %arg19[%c5_255, %c0_256, %c0_257] : memref<7x1x16xbf16, #tpu.memory_space<vmem>>, vector<1x1x16xbf16>
    %516 = vector.shape_cast %515 : vector<1x1x16xbf16> to vector<1x16xbf16>
    %517 = vector.extract_strided_slice %488 {offsets = [0, 5], sizes = [16, 64], strides = [1, 1]} : vector<16x70xbf16> to vector<16x64xbf16>
    %cst_258 = arith.constant dense<0.000000e+00> : vector<1x64xf32>
    %518 = tpu.matmul %516, %517, %cst_258 {dimension_numbers = #tpu.dot_dimension_numbers<[1], [0], [0], [1], [0, 0, 1, 1], [], []>} : vector<1x16xbf16>, vector<16x64xbf16>, vector<1x64xf32> -> vector<1x64xf32>
    %519 = arith.addf %514, %518 : vector<1x64xf32>
    %c6_259 = arith.constant 6 : index
    %c0_260 = arith.constant 0 : index
    %c0_261 = arith.constant 0 : index
    %520 = vector.load %arg19[%c6_259, %c0_260, %c0_261] : memref<7x1x16xbf16, #tpu.memory_space<vmem>>, vector<1x1x16xbf16>
    %521 = vector.shape_cast %520 : vector<1x1x16xbf16> to vector<1x16xbf16>
    %522 = vector.extract_strided_slice %488 {offsets = [0, 6], sizes = [16, 64], strides = [1, 1]} : vector<16x70xbf16> to vector<16x64xbf16>
    %cst_262 = arith.constant dense<0.000000e+00> : vector<1x64xf32>
    %523 = tpu.matmul %521, %522, %cst_262 {dimension_numbers = #tpu.dot_dimension_numbers<[1], [0], [0], [1], [0, 0, 1, 1], [], []>} : vector<1x16xbf16>, vector<16x64xbf16>, vector<1x64xf32> -> vector<1x64xf32>
    %524 = arith.addf %519, %523 : vector<1x64xf32>
    %c0_263 = arith.constant 0 : index
    %c0_264 = arith.constant 0 : index
    %525 = vector.load %arg20[%c0_263, %c0_264] : memref<1x1xf32, #tpu.memory_space<vmem>>, vector<1x1xf32>
    %526 = vector.broadcast %525 : vector<1x1xf32> to vector<1x64xf32>
    %527 = arith.addf %524, %526 : vector<1x64xf32>
    %528 = vector.shape_cast %527 : vector<1x64xf32> to vector<1x1x64xf32>
    %c0_265 = arith.constant 0 : index
    %c0_266 = arith.constant 0 : index
    %c0_267 = arith.constant 0 : index
    %529 = vector.load %arg21[%c0_265, %c0_266, %c0_267] : memref<1x1x64xf32, #tpu.memory_space<vmem>>, vector<1x1x64xf32>
    tpu.vector_store %arg21[%c0_265, %c0_266, %c0_267], %528 {strides = array<i32>} : memref<1x1x64xf32, #tpu.memory_space<vmem>>, vector<1x1x64xf32>,
    %530 = vector.shape_cast %323 : vector<4x16xi32> to vector<1x4x16xi32>
    %c0_268 = arith.constant 0 : index
    %c0_269 = arith.constant 0 : index
    %c0_270 = arith.constant 0 : index
    %531 = vector.load %arg22[%c0_268, %c0_269, %c0_270] : memref<1x4x16xi32, #tpu.memory_space<vmem>>, vector<1x4x16xi32>
    tpu.vector_store %arg22[%c0_268, %c0_269, %c0_270], %530 {strides = array<i32>} : memref<1x4x16xi32, #tpu.memory_space<vmem>>, vector<1x4x16xi32>,
    return
  }
  func.func @transform_0(%arg0: i32) -> (i32, i32, i32) {
    %c0_i32 = arith.constant 0 : i32
    %c0_i32_0 = arith.constant 0 : i32
    %c0_i32_1 = arith.constant 0 : i32
    return %arg0, %c0_i32, %c0_i32_0 : i32, i32, i32
  }
  func.func @transform_1(%arg0: i32) -> (i32, i32, i32) {
    %c0_i32 = arith.constant 0 : i32
    %c0_i32_0 = arith.constant 0 : i32
    %c0_i32_1 = arith.constant 0 : i32
    %c0_i32_2 = arith.constant 0 : i32
    return %c0_i32, %c0_i32_0, %c0_i32_1 : i32, i32, i32
  }
  func.func @transform_2(%arg0: i32) -> (i32, i32) {
    %c0_i32 = arith.constant 0 : i32
    %c0_i32_0 = arith.constant 0 : i32
    %c0_i32_1 = arith.constant 0 : i32
    return %c0_i32, %c0_i32_0 : i32, i32
  }
  func.func @transform_3(%arg0: i32) -> (i32, i32, i32) {
    %c0_i32 = arith.constant 0 : i32
    %c0_i32_0 = arith.constant 0 : i32
    %c0_i32_1 = arith.constant 0 : i32
    %c0_i32_2 = arith.constant 0 : i32
    return %c0_i32, %c0_i32_0, %c0_i32_1 : i32, i32, i32
  }
  func.func @transform_4(%arg0: i32) -> (i32, i32) {
    %c0_i32 = arith.constant 0 : i32
    %c0_i32_0 = arith.constant 0 : i32
    %c0_i32_1 = arith.constant 0 : i32
    return %c0_i32, %c0_i32_0 : i32, i32
  }
  func.func @transform_5(%arg0: i32) -> (i32, i32, i32) {
    %c0_i32 = arith.constant 0 : i32
    %c0_i32_0 = arith.constant 0 : i32
    %c0_i32_1 = arith.constant 0 : i32
    %c0_i32_2 = arith.constant 0 : i32
    return %c0_i32, %c0_i32_0, %c0_i32_1 : i32, i32, i32
  }
  func.func @transform_6(%arg0: i32) -> (i32, i32) {
    %c0_i32 = arith.constant 0 : i32
    %c0_i32_0 = arith.constant 0 : i32
    %c0_i32_1 = arith.constant 0 : i32
    return %c0_i32, %c0_i32_0 : i32, i32
  }
  func.func @transform_7(%arg0: i32) -> (i32, i32, i32) {
    %c0_i32 = arith.constant 0 : i32
    %c0_i32_0 = arith.constant 0 : i32
    %c0_i32_1 = arith.constant 0 : i32
    %c0_i32_2 = arith.constant 0 : i32
    return %c0_i32, %c0_i32_0, %c0_i32_1 : i32, i32, i32
  }
  func.func @transform_8(%arg0: i32) -> (i32, i32) {
    %c0_i32 = arith.constant 0 : i32
    %c0_i32_0 = arith.constant 0 : i32
    %c0_i32_1 = arith.constant 0 : i32
    return %c0_i32, %c0_i32_0 : i32, i32
  }
  func.func @transform_9(%arg0: i32) -> (i32, i32, i32) {
    %c0_i32 = arith.constant 0 : i32
    %c0_i32_0 = arith.constant 0 : i32
    %c0_i32_1 = arith.constant 0 : i32
    %c0_i32_2 = arith.constant 0 : i32
    return %c0_i32, %c0_i32_0, %c0_i32_1 : i32, i32, i32
  }
  func.func @transform_10(%arg0: i32) -> (i32, i32, i32) {
    %c0_i32 = arith.constant 0 : i32
    %c0_i32_0 = arith.constant 0 : i32
    %c0_i32_1 = arith.constant 0 : i32
    %c0_i32_2 = arith.constant 0 : i32
    return %c0_i32, %c0_i32_0, %c0_i32_1 : i32, i32, i32
  }
  func.func @transform_11(%arg0: i32) -> (i32, i32, i32) {
    %c0_i32 = arith.constant 0 : i32
    %c0_i32_0 = arith.constant 0 : i32
    %c0_i32_1 = arith.constant 0 : i32
    %c0_i32_2 = arith.constant 0 : i32
    return %c0_i32, %c0_i32_0, %c0_i32_1 : i32, i32, i32
  }
  func.func @transform_12(%arg0: i32) -> (i32, i32, i32) {
    %c0_i32 = arith.constant 0 : i32
    %c0_i32_0 = arith.constant 0 : i32
    %c0_i32_1 = arith.constant 0 : i32
    %c0_i32_2 = arith.constant 0 : i32
    return %c0_i32, %c0_i32_0, %c0_i32_1 : i32, i32, i32
  }
  func.func @transform_13(%arg0: i32) -> (i32, i32) {
    %c0_i32 = arith.constant 0 : i32
    %c0_i32_0 = arith.constant 0 : i32
    %c0_i32_1 = arith.constant 0 : i32
    return %c0_i32, %c0_i32_0 : i32, i32
  }
  func.func @transform_14(%arg0: i32) -> (i32, i32, i32) {
    %c0_i32 = arith.constant 0 : i32
    %c0_i32_0 = arith.constant 0 : i32
    %c0_i32_1 = arith.constant 0 : i32
    %c0_i32_2 = arith.constant 0 : i32
    return %c0_i32, %c0_i32_0, %c0_i32_1 : i32, i32, i32
  }
  func.func @transform_15(%arg0: i32) -> (i32, i32) {
    %c0_i32 = arith.constant 0 : i32
    %c0_i32_0 = arith.constant 0 : i32
    %c0_i32_1 = arith.constant 0 : i32
    return %c0_i32, %c0_i32_0 : i32, i32
  }
  func.func @transform_16(%arg0: i32) -> (i32, i32, i32) {
    %c0_i32 = arith.constant 0 : i32
    %c0_i32_0 = arith.constant 0 : i32
    %c0_i32_1 = arith.constant 0 : i32
    %c0_i32_2 = arith.constant 0 : i32
    return %c0_i32, %c0_i32_0, %c0_i32_1 : i32, i32, i32
  }
  func.func @transform_17(%arg0: i32) -> (i32, i32) {
    %c0_i32 = arith.constant 0 : i32
    %c0_i32_0 = arith.constant 0 : i32
    %c0_i32_1 = arith.constant 0 : i32
    return %c0_i32, %c0_i32_0 : i32, i32
  }
  func.func @transform_18(%arg0: i32) -> (i32, i32, i32) {
    %c0_i32 = arith.constant 0 : i32
    %c0_i32_0 = arith.constant 0 : i32
    %c0_i32_1 = arith.constant 0 : i32
    %c0_i32_2 = arith.constant 0 : i32
    return %c0_i32, %c0_i32_0, %c0_i32_1 : i32, i32, i32
  }
  func.func @transform_19(%arg0: i32) -> (i32, i32) {
    %c0_i32 = arith.constant 0 : i32
    %c0_i32_0 = arith.constant 0 : i32
    %c0_i32_1 = arith.constant 0 : i32
    return %c0_i32, %c0_i32_0 : i32, i32
  }
  func.func @transform_20(%arg0: i32) -> (i32, i32, i32) {
    %c0_i32 = arith.constant 0 : i32
    %c0_i32_0 = arith.constant 0 : i32
    %c0_i32_1 = arith.constant 0 : i32
    return %arg0, %c0_i32, %c0_i32_0 : i32, i32, i32
  }
  func.func @transform_21(%arg0: i32) -> (i32, i32, i32) {
    %c0_i32 = arith.constant 0 : i32
    %c0_i32_0 = arith.constant 0 : i32
    %c0_i32_1 = arith.constant 0 : i32
    return %arg0, %c0_i32, %c0_i32_0 : i32, i32, i32
  }
}

</mosaic_0001>

<llo_original>
// kernel: encodec_forward.1
$region0: #{encodec_forward.1}
  #allocation0 [shape = 'u32[]', space=smem, size = 0x4, offset = 0x4, fixed_abs, tag = 'smem constant byte address 0x4 - core index']
  #allocation1 [shape = 'u32[72,128]{1,0:T(1,128)}', space=vmem, size = 0x9000, scoped, tag = 'internal scratch']
  #allocation2 [shape = 'f32[1,1]{1,0:T(1,128)S(1)}', space=vmem, size = 0x200, scoped, tag = 'scoped memory for encodec_forward.1']
  %s0 = inlined_call_operand.vmem [shape: f32[2,1,64], index: 0, kind: input, shape index: {}]
  %s1 = inlined_call_operand.vmem [shape: bf16[7,16,1], index: 1, kind: input, shape index: {}]
  %s2 = inlined_call_operand.vmem [shape: f32[16,1], index: 2, kind: input, shape index: {}]
  %s3 = inlined_call_operand.vmem [shape: bf16[4,32,16], index: 3, kind: input, shape index: {}]
  %s4 = inlined_call_operand.vmem [shape: f32[32,1], index: 4, kind: input, shape index: {}]
  %s5 = inlined_call_operand.vmem [shape: bf16[4,32,32], index: 5, kind: input, shape index: {}]
  %s6 = inlined_call_operand.vmem [shape: f32[32,1], index: 6, kind: input, shape index: {}]
  %s7 = inlined_call_operand.vmem [shape: bf16[3,32,32], index: 7, kind: input, shape index: {}]
  %s8 = inlined_call_operand.vmem [shape: f32[32,1], index: 8, kind: input, shape index: {}]
  %s9 = inlined_call_operand.vmem [shape: f32[4,16,32], index: 9, kind: input, shape index: {}]
  %s10 = inlined_call_operand.vmem [shape: f32[4,32,16], index: 10, kind: input, shape index: {}]
  %s11 = inlined_call_operand.vmem [shape: f32[4,16,1], index: 11, kind: input, shape index: {}]
  %s12 = inlined_call_operand.vmem [shape: bf16[3,32,32], index: 12, kind: input, shape index: {}]
  %s13 = inlined_call_operand.vmem [shape: f32[32,1], index: 13, kind: input, shape index: {}]
  %s14 = inlined_call_operand.vmem [shape: bf16[4,16,32], index: 14, kind: input, shape index: {}]
  %s15 = inlined_call_operand.vmem [shape: f32[16,1], index: 15, kind: input, shape index: {}]
  %s16 = inlined_call_operand.vmem [shape: bf16[4,16,16], index: 16, kind: input, shape index: {}]
  %s17 = inlined_call_operand.vmem [shape: f32[16,1], index: 17, kind: input, shape index: {}]
  %s18 = inlined_call_operand.vmem [shape: bf16[7,1,16], index: 18, kind: input, shape index: {}]
  %s19 = inlined_call_operand.<no memory space> [shape: f32[1,1], index: 19, kind: input, shape index: {}]
  %s20 = inlined_call_operand.hbm [shape: f32[2,1,64], index: 20, kind: output, shape index: {0}]
  %s21 = inlined_call_operand.hbm [shape: s32[2,4,16], index: 21, kind: output, shape index: {1}]
  %22 = xla_tuple %s20, %s21
  %s23 = sld [smem:[#allocation0]]
  $region121: #{encodec_forward.1} parent=0
    _
  %s25 = ssub.s32 1, %s23
  %s26 = scalar_select 0, %s25, %s23
  %v27 = vstv %s19
  %28 = vst [vmem:[#allocation2] sm:$0x1] %v27
  $region1: #{encodec_forward.1} parent=0
    #allocation3 [shape = 'u8[1024]{0}', space=vmem, size = 0x400, scoped, tag = 'output window, operand 0']
    #allocation4 [shape = 's32[2]{0}', space=sflag, size = 0x8, scoped, tag = 'scoped memory for encodec_forward.1']
    #allocation5 [shape = 'u8[4096]{0}', space=vmem, size = 0x1000, scoped, tag = 'output window, operand 1']
    #allocation6 [shape = 's32[2]{0}', space=sflag, size = 0x8, scoped, tag = 'scoped memory for encodec_forward.1']
    %29 = vsyncpa [#allocation4], 0
    %s30 = scalar_lea.sflag [#allocation4], 1
    %31 = vsyncpa %s30, 0
    %32 = vsyncpa [#allocation6], 0
    %s33 = scalar_lea.sflag [#allocation6], 1
    %34 = vsyncpa %s33, 0
    loop: start=0, step=1, limit=4
    $region2: #{encodec_forward.1} parent=1 // loop_pre_header
      _
    $region3: #{encodec_forward.1} parent=1 // loop_header
      %s36 = sphi 0, %s40
      %p37 = scmp.ge.s32.totalorder %s36, 4
      %s46 = sphi 0, %s48
      %s49 = sphi 0, %s46
      %s50 = sphi 0, %s49
      %s66 = sphi 0, %s50
      %s70 = sphi 0, %s70
      %s72 = sphi 0, %s70
      %s73 = sphi 0, %s72
      %s87 = sphi 0, %s73
      %s91 = sphi 0, %s91
      %s93 = sphi 0, %s91
      %s94 = sphi 0, %s93
      %s108 = sphi 0, %s94
      %s112 = sphi 0, %s112
      %s114 = sphi 0, %s112
      %s115 = sphi 0, %s114
      %s129 = sphi 0, %s115
      %s133 = sphi 0, %s133
      %s135 = sphi 0, %s133
      %s136 = sphi 0, %s135
      %s150 = sphi 0, %s136
      %s154 = sphi 0, %s154
      %s156 = sphi 0, %s154
      %s157 = sphi 0, %s156
      %s171 = sphi 0, %s157
      %s175 = sphi 0, %s175
      %s177 = sphi 0, %s175
      %s178 = sphi 0, %s177
      %s192 = sphi 0, %s178
      %s196 = sphi 0, %s196
      %s198 = sphi 0, %s196
      %s199 = sphi 0, %s198
      %s213 = sphi 0, %s199
      %s217 = sphi 0, %s217
      %s219 = sphi 0, %s217
      %s220 = sphi 0, %s219
      %s234 = sphi 0, %s220
      %s238 = sphi 0, %s238
      %s240 = sphi 0, %s238
      %s241 = sphi 0, %s240
      %s255 = sphi 0, %s241
      %s259 = sphi 0, %s259
      %s261 = sphi 0, %s259
      %s262 = sphi 0, %s261
      %s276 = sphi 0, %s262
      %s280 = sphi 0, %s280
      %s282 = sphi 0, %s280
      %s283 = sphi 0, %s282
      %s297 = sphi 0, %s283
      %s301 = sphi 0, %s301
      %s303 = sphi 0, %s301
      %s304 = sphi 0, %s303
      %s318 = sphi 0, %s304
      %s322 = sphi 0, %s322
      %s324 = sphi 0, %s322
      %s325 = sphi 0, %s324
      %s339 = sphi 0, %s325
      %s343 = sphi 0, %s343
      %s345 = sphi 0, %s343
      %s346 = sphi 0, %s345
      %s360 = sphi 0, %s346
      %s364 = sphi 0, %s364
      %s366 = sphi 0, %s364
      %s367 = sphi 0, %s366
      %s381 = sphi 0, %s367
      %s385 = sphi 0, %s385
      %s387 = sphi 0, %s385
      %s388 = sphi 0, %s387
      %s402 = sphi 0, %s388
      %s406 = sphi 0, %s406
      %s408 = sphi 0, %s406
      %s409 = sphi 0, %s408
      %s423 = sphi 0, %s409
      %s427 = sphi 0, %s427
      %s429 = sphi 0, %s427
      %s430 = sphi 0, %s429
      %s444 = sphi 0, %s430
      %s448 = sphi 0, %s448
      %s450 = sphi 0, %s448
      %s451 = sphi 0, %s450
      %s465 = sphi 0, %s451
      %s471 = sphi 0, %s473
      %s474 = sphi 0, %s471
      %s475 = sphi 0, %s474
      %s491 = sphi 0, %s475
      %s497 = sphi 0, %s499
      %s500 = sphi 0, %s497
      %s501 = sphi 0, %s500
      %s517 = sphi 0, %s501
    $region4: #{encodec_forward.1} parent=1 // loop_header_branch
      %39 = sbr.rel (%p37) target = $region8
    $region5: #{encodec_forward.1} parent=1 // loop_body
      %s41 = ssub.s32 %s36, 1
      %s42 = ssub.s32 %s36, 2
      %s43 = sadd.s32 %s36, 1
      %s44 = ssub.s32 %s36, %s43
      %p45 = scmp.eq.s32.totalorder %s44, 0
      %s47 = sadd.s32 %s46, 1
      %s48 = scalar_select %p45, %s46, %s47
      %p51 = pneg %p45
      %p52 = scmp.eq.s32.totalorder %s36, 1
      %p53 = por %p51, %p52
      %p54 = scmp.ne.s32.totalorder %s46, %s49
      %p55 = scmp.eq.s32.totalorder %s36, 0
      %p56 = por %p54, %p55
      %p57 = scmp.ne.s32.totalorder %s46, %s49
      %p58 = scmp.eq.s32.totalorder %s41, 1
      %p59 = por %p57, %p58
      %p60 = scmp.ne.s32.totalorder %s49, %s50
      %p61 = scmp.eq.s32.totalorder %s41, 0
      %p62 = por %p60, %p61
      %p63 = scmp.ne.s32.totalorder %s49, %s50
      %p64 = scmp.eq.s32.totalorder %s42, 1
      %p65 = por %p63, %p64
      %p67 = scmp.ne.s32.totalorder %s50, %s66
      %p68 = scmp.eq.s32.totalorder %s42, 0
      %p69 = por %p67, %p68
      %s71 = sadd.s32 %s70, 1
      %p74 = scmp.eq.s32.totalorder %s36, 1
      %p75 = scmp.ne.s32.totalorder %s70, %s72
      %p76 = scmp.eq.s32.totalorder %s36, 0
      %p77 = por %p75, %p76
      %p78 = scmp.ne.s32.totalorder %s70, %s72
      %p79 = scmp.eq.s32.totalorder %s41, 1
      %p80 = por %p78, %p79
      %p81 = scmp.ne.s32.totalorder %s72, %s73
      %p82 = scmp.eq.s32.totalorder %s41, 0
      %p83 = por %p81, %p82
      %p84 = scmp.ne.s32.totalorder %s72, %s73
      %p85 = scmp.eq.s32.totalorder %s42, 1
      %p86 = por %p84, %p85
      %p88 = scmp.ne.s32.totalorder %s73, %s87
      %p89 = scmp.eq.s32.totalorder %s42, 0
      %p90 = por %p88, %p89
      %s92 = sadd.s32 %s91, 1
      %p95 = scmp.eq.s32.totalorder %s36, 1
      %p96 = scmp.ne.s32.totalorder %s91, %s93
      %p97 = scmp.eq.s32.totalorder %s36, 0
      %p98 = por %p96, %p97
      %p99 = scmp.ne.s32.totalorder %s91, %s93
      %p100 = scmp.eq.s32.totalorder %s41, 1
      %p101 = por %p99, %p100
      %p102 = scmp.ne.s32.totalorder %s93, %s94
      %p103 = scmp.eq.s32.totalorder %s41, 0
      %p104 = por %p102, %p103
      %p105 = scmp.ne.s32.totalorder %s93, %s94
      %p106 = scmp.eq.s32.totalorder %s42, 1
      %p107 = por %p105, %p106
      %p109 = scmp.ne.s32.totalorder %s94, %s108
      %p110 = scmp.eq.s32.totalorder %s42, 0
      %p111 = por %p109, %p110
      %s113 = sadd.s32 %s112, 1
      %p116 = scmp.eq.s32.totalorder %s36, 1
      %p117 = scmp.ne.s32.totalorder %s112, %s114
      %p118 = scmp.eq.s32.totalorder %s36, 0
      %p119 = por %p117, %p118
      %p120 = scmp.ne.s32.totalorder %s112, %s114
      %p121 = scmp.eq.s32.totalorder %s41, 1
      %p122 = por %p120, %p121
      %p123 = scmp.ne.s32.totalorder %s114, %s115
      %p124 = scmp.eq.s32.totalorder %s41, 0
      %p125 = por %p123, %p124
      %p126 = scmp.ne.s32.totalorder %s114, %s115
      %p127 = scmp.eq.s32.totalorder %s42, 1
      %p128 = por %p126, %p127
      %p130 = scmp.ne.s32.totalorder %s115, %s129
      %p131 = scmp.eq.s32.totalorder %s42, 0
      %p132 = por %p130, %p131
      %s134 = sadd.s32 %s133, 1
      %p137 = scmp.eq.s32.totalorder %s36, 1
      %p138 = scmp.ne.s32.totalorder %s133, %s135
      %p139 = scmp.eq.s32.totalorder %s36, 0
      %p140 = por %p138, %p139
      %p141 = scmp.ne.s32.totalorder %s133, %s135
      %p142 = scmp.eq.s32.totalorder %s41, 1
      %p143 = por %p141, %p142
      %p144 = scmp.ne.s32.totalorder %s135, %s136
      %p145 = scmp.eq.s32.totalorder %s41, 0
      %p146 = por %p144, %p145
      %p147 = scmp.ne.s32.totalorder %s135, %s136
      %p148 = scmp.eq.s32.totalorder %s42, 1
      %p149 = por %p147, %p148
      %p151 = scmp.ne.s32.totalorder %s136, %s150
      %p152 = scmp.eq.s32.totalorder %s42, 0
      %p153 = por %p151, %p152
      %s155 = sadd.s32 %s154, 1
      %p158 = scmp.eq.s32.totalorder %s36, 1
      %p159 = scmp.ne.s32.totalorder %s154, %s156
      %p160 = scmp.eq.s32.totalorder %s36, 0
      %p161 = por %p159, %p160
      %p162 = scmp.ne.s32.totalorder %s154, %s156
      %p163 = scmp.eq.s32.totalorder %s41, 1
      %p164 = por %p162, %p163
      %p165 = scmp.ne.s32.totalorder %s156, %s157
      %p166 = scmp.eq.s32.totalorder %s41, 0
      %p167 = por %p165, %p166
      %p168 = scmp.ne.s32.totalorder %s156, %s157
      %p169 = scmp.eq.s32.totalorder %s42, 1
      %p170 = por %p168, %p169
      %p172 = scmp.ne.s32.totalorder %s157, %s171
      %p173 = scmp.eq.s32.totalorder %s42, 0
      %p174 = por %p172, %p173
      %s176 = sadd.s32 %s175, 1
      %p179 = scmp.eq.s32.totalorder %s36, 1
      %p180 = scmp.ne.s32.totalorder %s175, %s177
      %p181 = scmp.eq.s32.totalorder %s36, 0
      %p182 = por %p180, %p181
      %p183 = scmp.ne.s32.totalorder %s175, %s177
      %p184 = scmp.eq.s32.totalorder %s41, 1
      %p185 = por %p183, %p184
      %p186 = scmp.ne.s32.totalorder %s177, %s178
      %p187 = scmp.eq.s32.totalorder %s41, 0
      %p188 = por %p186, %p187
      %p189 = scmp.ne.s32.totalorder %s177, %s178
      %p190 = scmp.eq.s32.totalorder %s42, 1
      %p191 = por %p189, %p190
      %p193 = scmp.ne.s32.totalorder %s178, %s192
      %p194 = scmp.eq.s32.totalorder %s42, 0
      %p195 = por %p193, %p194
      %s197 = sadd.s32 %s196, 1
      %p200 = scmp.eq.s32.totalorder %s36, 1
      %p201 = scmp.ne.s32.totalorder %s196, %s198
      %p202 = scmp.eq.s32.totalorder %s36, 0
      %p203 = por %p201, %p202
      %p204 = scmp.ne.s32.totalorder %s196, %s198
      %p205 = scmp.eq.s32.totalorder %s41, 1
      %p206 = por %p204, %p205
      %p207 = scmp.ne.s32.totalorder %s198, %s199
      %p208 = scmp.eq.s32.totalorder %s41, 0
      %p209 = por %p207, %p208
      %p210 = scmp.ne.s32.totalorder %s198, %s199
      %p211 = scmp.eq.s32.totalorder %s42, 1
      %p212 = por %p210, %p211
      %p214 = scmp.ne.s32.totalorder %s199, %s213
      %p215 = scmp.eq.s32.totalorder %s42, 0
      %p216 = por %p214, %p215
      %s218 = sadd.s32 %s217, 1
      %p221 = scmp.eq.s32.totalorder %s36, 1
      %p222 = scmp.ne.s32.totalorder %s217, %s219
      %p223 = scmp.eq.s32.totalorder %s36, 0
      %p224 = por %p222, %p223
      %p225 = scmp.ne.s32.totalorder %s217, %s219
      %p226 = scmp.eq.s32.totalorder %s41, 1
      %p227 = por %p225, %p226
      %p228 = scmp.ne.s32.totalorder %s219, %s220
      %p229 = scmp.eq.s32.totalorder %s41, 0
      %p230 = por %p228, %p229
      %p231 = scmp.ne.s32.totalorder %s219, %s220
      %p232 = scmp.eq.s32.totalorder %s42, 1
      %p233 = por %p231, %p232
      %p235 = scmp.ne.s32.totalorder %s220, %s234
      %p236 = scmp.eq.s32.totalorder %s42, 0
      %p237 = por %p235, %p236
      %s239 = sadd.s32 %s238, 1
      %p242 = scmp.eq.s32.totalorder %s36, 1
      %p243 = scmp.ne.s32.totalorder %s238, %s240
      %p244 = scmp.eq.s32.totalorder %s36, 0
      %p245 = por %p243, %p244
      %p246 = scmp.ne.s32.totalorder %s238, %s240
      %p247 = scmp.eq.s32.totalorder %s41, 1
      %p248 = por %p246, %p247
      %p249 = scmp.ne.s32.totalorder %s240, %s241
      %p250 = scmp.eq.s32.totalorder %s41, 0
      %p251 = por %p249, %p250
      %p252 = scmp.ne.s32.totalorder %s240, %s241
      %p253 = scmp.eq.s32.totalorder %s42, 1
      %p254 = por %p252, %p253
      %p256 = scmp.ne.s32.totalorder %s241, %s255
      %p257 = scmp.eq.s32.totalorder %s42, 0
      %p258 = por %p256, %p257
      %s260 = sadd.s32 %s259, 1
      %p263 = scmp.eq.s32.totalorder %s36, 1
      %p264 = scmp.ne.s32.totalorder %s259, %s261
      %p265 = scmp.eq.s32.totalorder %s36, 0
      %p266 = por %p264, %p265
      %p267 = scmp.ne.s32.totalorder %s259, %s261
      %p268 = scmp.eq.s32.totalorder %s41, 1
      %p269 = por %p267, %p268
      %p270 = scmp.ne.s32.totalorder %s261, %s262
      %p271 = scmp.eq.s32.totalorder %s41, 0
      %p272 = por %p270, %p271
      %p273 = scmp.ne.s32.totalorder %s261, %s262
      %p274 = scmp.eq.s32.totalorder %s42, 1
      %p275 = por %p273, %p274
      %p277 = scmp.ne.s32.totalorder %s262, %s276
      %p278 = scmp.eq.s32.totalorder %s42, 0
      %p279 = por %p277, %p278
      %s281 = sadd.s32 %s280, 1
      %p284 = scmp.eq.s32.totalorder %s36, 1
      %p285 = scmp.ne.s32.totalorder %s280, %s282
      %p286 = scmp.eq.s32.totalorder %s36, 0
      %p287 = por %p285, %p286
      %p288 = scmp.ne.s32.totalorder %s280, %s282
      %p289 = scmp.eq.s32.totalorder %s41, 1
      %p290 = por %p288, %p289
      %p291 = scmp.ne.s32.totalorder %s282, %s283
      %p292 = scmp.eq.s32.totalorder %s41, 0
      %p293 = por %p291, %p292
      %p294 = scmp.ne.s32.totalorder %s282, %s283
      %p295 = scmp.eq.s32.totalorder %s42, 1
      %p296 = por %p294, %p295
      %p298 = scmp.ne.s32.totalorder %s283, %s297
      %p299 = scmp.eq.s32.totalorder %s42, 0
      %p300 = por %p298, %p299
      %s302 = sadd.s32 %s301, 1
      %p305 = scmp.eq.s32.totalorder %s36, 1
      %p306 = scmp.ne.s32.totalorder %s301, %s303
      %p307 = scmp.eq.s32.totalorder %s36, 0
      %p308 = por %p306, %p307
      %p309 = scmp.ne.s32.totalorder %s301, %s303
      %p310 = scmp.eq.s32.totalorder %s41, 1
      %p311 = por %p309, %p310
      %p312 = scmp.ne.s32.totalorder %s303, %s304
      %p313 = scmp.eq.s32.totalorder %s41, 0
      %p314 = por %p312, %p313
      %p315 = scmp.ne.s32.totalorder %s303, %s304
      %p316 = scmp.eq.s32.totalorder %s42, 1
      %p317 = por %p315, %p316
      %p319 = scmp.ne.s32.totalorder %s304, %s318
      %p320 = scmp.eq.s32.totalorder %s42, 0
      %p321 = por %p319, %p320
      %s323 = sadd.s32 %s322, 1
      %p326 = scmp.eq.s32.totalorder %s36, 1
      %p327 = scmp.ne.s32.totalorder %s322, %s324
      %p328 = scmp.eq.s32.totalorder %s36, 0
      %p329 = por %p327, %p328
      %p330 = scmp.ne.s32.totalorder %s322, %s324
      %p331 = scmp.eq.s32.totalorder %s41, 1
      %p332 = por %p330, %p331
      %p333 = scmp.ne.s32.totalorder %s324, %s325
      %p334 = scmp.eq.s32.totalorder %s41, 0
      %p335 = por %p333, %p334
      %p336 = scmp.ne.s32.totalorder %s324, %s325
      %p337 = scmp.eq.s32.totalorder %s42, 1
      %p338 = por %p336, %p337
      %p340 = scmp.ne.s32.totalorder %s325, %s339
      %p341 = scmp.eq.s32.totalorder %s42, 0
      %p342 = por %p340, %p341
      %s344 = sadd.s32 %s343, 1
      %p347 = scmp.eq.s32.totalorder %s36, 1
      %p348 = scmp.ne.s32.totalorder %s343, %s345
      %p349 = scmp.eq.s32.totalorder %s36, 0
      %p350 = por %p348, %p349
      %p351 = scmp.ne.s32.totalorder %s343, %s345
      %p352 = scmp.eq.s32.totalorder %s41, 1
      %p353 = por %p351, %p352
      %p354 = scmp.ne.s32.totalorder %s345, %s346
      %p355 = scmp.eq.s32.totalorder %s41, 0
      %p356 = por %p354, %p355
      %p357 = scmp.ne.s32.totalorder %s345, %s346
      %p358 = scmp.eq.s32.totalorder %s42, 1
      %p359 = por %p357, %p358
      %p361 = scmp.ne.s32.totalorder %s346, %s360
      %p362 = scmp.eq.s32.totalorder %s42, 0
      %p363 = por %p361, %p362
      %s365 = sadd.s32 %s364, 1
      %p368 = scmp.eq.s32.totalorder %s36, 1
      %p369 = scmp.ne.s32.totalorder %s364, %s366
      %p370 = scmp.eq.s32.totalorder %s36, 0
      %p371 = por %p369, %p370
      %p372 = scmp.ne.s32.totalorder %s364, %s366
      %p373 = scmp.eq.s32.totalorder %s41, 1
      %p374 = por %p372, %p373
      %p375 = scmp.ne.s32.totalorder %s366, %s367
      %p376 = scmp.eq.s32.totalorder %s41, 0
      %p377 = por %p375, %p376
      %p378 = scmp.ne.s32.totalorder %s366, %s367
      %p379 = scmp.eq.s32.totalorder %s42, 1
      %p380 = por %p378, %p379
      %p382 = scmp.ne.s32.totalorder %s367, %s381
      %p383 = scmp.eq.s32.totalorder %s42, 0
      %p384 = por %p382, %p383
      %s386 = sadd.s32 %s385, 1
      %p389 = scmp.eq.s32.totalorder %s36, 1
      %p390 = scmp.ne.s32.totalorder %s385, %s387
      %p391 = scmp.eq.s32.totalorder %s36, 0
      %p392 = por %p390, %p391
      %p393 = scmp.ne.s32.totalorder %s385, %s387
      %p394 = scmp.eq.s32.totalorder %s41, 1
      %p395 = por %p393, %p394
      %p396 = scmp.ne.s32.totalorder %s387, %s388
      %p397 = scmp.eq.s32.totalorder %s41, 0
      %p398 = por %p396, %p397
      %p399 = scmp.ne.s32.totalorder %s387, %s388
      %p400 = scmp.eq.s32.totalorder %s42, 1
      %p401 = por %p399, %p400
      %p403 = scmp.ne.s32.totalorder %s388, %s402
      %p404 = scmp.eq.s32.totalorder %s42, 0
      %p405 = por %p403, %p404
      %s407 = sadd.s32 %s406, 1
      %p410 = scmp.eq.s32.totalorder %s36, 1
      %p411 = scmp.ne.s32.totalorder %s406, %s408
      %p412 = scmp.eq.s32.totalorder %s36, 0
      %p413 = por %p411, %p412
      %p414 = scmp.ne.s32.totalorder %s406, %s408
      %p415 = scmp.eq.s32.totalorder %s41, 1
      %p416 = por %p414, %p415
      %p417 = scmp.ne.s32.totalorder %s408, %s409
      %p418 = scmp.eq.s32.totalorder %s41, 0
      %p419 = por %p417, %p418
      %p420 = scmp.ne.s32.totalorder %s408, %s409
      %p421 = scmp.eq.s32.totalorder %s42, 1
      %p422 = por %p420, %p421
      %p424 = scmp.ne.s32.totalorder %s409, %s423
      %p425 = scmp.eq.s32.totalorder %s42, 0
      %p426 = por %p424, %p425
      %s428 = sadd.s32 %s427, 1
      %p431 = scmp.eq.s32.totalorder %s36, 1
      %p432 = scmp.ne.s32.totalorder %s427, %s429
      %p433 = scmp.eq.s32.totalorder %s36, 0
      %p434 = por %p432, %p433
      %p435 = scmp.ne.s32.totalorder %s427, %s429
      %p436 = scmp.eq.s32.totalorder %s41, 1
      %p437 = por %p435, %p436
      %p438 = scmp.ne.s32.totalorder %s429, %s430
      %p439 = scmp.eq.s32.totalorder %s41, 0
      %p440 = por %p438, %p439
      %p441 = scmp.ne.s32.totalorder %s429, %s430
      %p442 = scmp.eq.s32.totalorder %s42, 1
      %p443 = por %p441, %p442
      %p445 = scmp.ne.s32.totalorder %s430, %s444
      %p446 = scmp.eq.s32.totalorder %s42, 0
      %p447 = por %p445, %p446
      %s449 = sadd.s32 %s448, 1
      %p452 = scmp.eq.s32.totalorder %s36, 1
      %p453 = scmp.ne.s32.totalorder %s448, %s450
      %p454 = scmp.eq.s32.totalorder %s36, 0
      %p455 = por %p453, %p454
      %p456 = scmp.ne.s32.totalorder %s448, %s450
      %p457 = scmp.eq.s32.totalorder %s41, 1
      %p458 = por %p456, %p457
      %p459 = scmp.ne.s32.totalorder %s450, %s451
      %p460 = scmp.eq.s32.totalorder %s41, 0
      %p461 = por %p459, %p460
      %p462 = scmp.ne.s32.totalorder %s450, %s451
      %p463 = scmp.eq.s32.totalorder %s42, 1
      %p464 = por %p462, %p463
      %p466 = scmp.ne.s32.totalorder %s451, %s465
      %p467 = scmp.eq.s32.totalorder %s42, 0
      %p468 = por %p466, %p467
      %s469 = ssub.s32 %s36, %s43
      %p470 = scmp.eq.s32.totalorder %s469, 0
      %s472 = sadd.s32 %s471, 1
      %s473 = scalar_select %p470, %s471, %s472
      %p476 = pneg %p470
      %p477 = scmp.eq.s32.totalorder %s36, 1
      %p478 = por %p476, %p477
      %p479 = scmp.ne.s32.totalorder %s471, %s474
      %p480 = scmp.eq.s32.totalorder %s36, 0
      %p481 = por %p479, %p480
      %p482 = scmp.ne.s32.totalorder %s471, %s474
      %p483 = scmp.eq.s32.totalorder %s41, 1
      %p484 = por %p482, %p483
      %p485 = scmp.ne.s32.totalorder %s474, %s475
      %p486 = scmp.eq.s32.totalorder %s41, 0
      %p487 = por %p485, %p486
      %p488 = scmp.ne.s32.totalorder %s474, %s475
      %p489 = scmp.eq.s32.totalorder %s42, 1
      %p490 = por %p488, %p489
      %p492 = scmp.ne.s32.totalorder %s475, %s491
      %p493 = scmp.eq.s32.totalorder %s42, 0
      %p494 = por %p492, %p493
      %s495 = ssub.s32 %s36, %s43
      %p496 = scmp.eq.s32.totalorder %s495, 0
      %s498 = sadd.s32 %s497, 1
      %s499 = scalar_select %p496, %s497, %s498
      %p502 = pneg %p496
      %p503 = scmp.eq.s32.totalorder %s36, 1
      %p504 = por %p502, %p503
      %p505 = scmp.ne.s32.totalorder %s497, %s500
      %p506 = scmp.eq.s32.totalorder %s36, 0
      %p507 = por %p505, %p506
      %p508 = scmp.ne.s32.totalorder %s497, %s500
      %p509 = scmp.eq.s32.totalorder %s41, 1
      %p510 = por %p508, %p509
      %p511 = scmp.ne.s32.totalorder %s500, %s501
      %p512 = scmp.eq.s32.totalorder %s41, 0
      %p513 = por %p511, %p512
      %p514 = scmp.ne.s32.totalorder %s500, %s501
      %p515 = scmp.eq.s32.totalorder %s42, 1
      %p516 = por %p514, %p515
      %p518 = scmp.ne.s32.totalorder %s501, %s517
      %p519 = scmp.eq.s32.totalorder %s42, 0
      %p520 = por %p518, %p519
      %p521 = scmp.le.s32.totalorder 1, %s36
      %p522 = scmp.lt.s32.totalorder %s36, 3
      %p523 = pnand %p521, %p522
      %p524 = pneg %p523
      // Predicated region
      $region9: #{encodec_forward.1} parent=5 // pred_check
        _
      $region10: #{encodec_forward.1} parent=5 // pred_check_branch
        %526 = sbr.rel (%p523) target = $region12
      $region11: #{encodec_forward.1} parent=5 // pred_region
        %s527 = ssub.s32 %s36, 1
        // Predicated region
        $region13: #{encodec_forward.1} parent=11 // pred_check
          %p528 = pneg %p83
        $region14: #{encodec_forward.1} parent=11 // pred_check_branch
          %530 = sbr.rel (%p528) target = $region16
        $region15: #{encodec_forward.1} parent=11 // pred_region
          _
        $region16: #{encodec_forward.1} parent=11 // pred_fallthru
          _
        // Predicated region
        $region17: #{encodec_forward.1} parent=11 // pred_check
          %p531 = pneg %p104
        $region18: #{encodec_forward.1} parent=11 // pred_check_branch
          %533 = sbr.rel (%p531) target = $region20
        $region19: #{encodec_forward.1} parent=11 // pred_region
          _
        $region20: #{encodec_forward.1} parent=11 // pred_fallthru
          _
        // Predicated region
        $region21: #{encodec_forward.1} parent=11 // pred_check
          %p534 = pneg %p125
        $region22: #{encodec_forward.1} parent=11 // pred_check_branch
          %536 = sbr.rel (%p534) target = $region24
        $region23: #{encodec_forward.1} parent=11 // pred_region
          _
        $region24: #{encodec_forward.1} parent=11 // pred_fallthru
          _
        // Predicated region
        $region25: #{encodec_forward.1} parent=11 // pred_check
          %p537 = pneg %p146
        $region26: #{encodec_forward.1} parent=11 // pred_check_branch
          %539 = sbr.rel (%p537) target = $region28
        $region27: #{encodec_forward.1} parent=11 // pred_region
          _
        $region28: #{encodec_forward.1} parent=11 // pred_fallthru
          _
        // Predicated region
        $region29: #{encodec_forward.1} parent=11 // pred_check
          %p540 = pneg %p167
        $region30: #{encodec_forward.1} parent=11 // pred_check_branch
          %542 = sbr.rel (%p540) target = $region32
        $region31: #{encodec_forward.1} parent=11 // pred_region
          _
        $region32: #{encodec_forward.1} parent=11 // pred_fallthru
          _
        // Predicated region
        $region33: #{encodec_forward.1} parent=11 // pred_check
          %p543 = pneg %p188
        $region34: #{encodec_forward.1} parent=11 // pred_check_branch
          %545 = sbr.rel (%p543) target = $region36
        $region35: #{encodec_forward.1} parent=11 // pred_region
          _
        $region36: #{encodec_forward.1} parent=11 // pred_fallthru
          _
        // Predicated region
        $region37: #{encodec_forward.1} parent=11 // pred_check
          %p546 = pneg %p209
        $region38: #{encodec_forward.1} parent=11 // pred_check_branch
          %548 = sbr.rel (%p546) target = $region40
        $region39: #{encodec_forward.1} parent=11 // pred_region
          _
        $region40: #{encodec_forward.1} parent=11 // pred_fallthru
          _
        // Predicated region
        $region41: #{encodec_forward.1} parent=11 // pred_check
          %p549 = pneg %p230
        $region42: #{encodec_forward.1} parent=11 // pred_check_branch
          %551 = sbr.rel (%p549) target = $region44
        $region43: #{encodec_forward.1} parent=11 // pred_region
          _
        $region44: #{encodec_forward.1} parent=11 // pred_fallthru
          _
        // Predicated region
        $region45: #{encodec_forward.1} parent=11 // pred_check
          %p552 = pneg %p251
        $region46: #{encodec_forward.1} parent=11 // pred_check_branch
          %554 = sbr.rel (%p552) target = $region48
        $region47: #{encodec_forward.1} parent=11 // pred_region
          _
        $region48: #{encodec_forward.1} parent=11 // pred_fallthru
          _
        // Predicated region
        $region49: #{encodec_forward.1} parent=11 // pred_check
          %p555 = pneg %p272
        $region50: #{encodec_forward.1} parent=11 // pred_check_branch
          %557 = sbr.rel (%p555) target = $region52
        $region51: #{encodec_forward.1} parent=11 // pred_region
          _
        $region52: #{encodec_forward.1} parent=11 // pred_fallthru
          _
        // Predicated region
        $region53: #{encodec_forward.1} parent=11 // pred_check
          %p558 = pneg %p293
        $region54: #{encodec_forward.1} parent=11 // pred_check_branch
          %560 = sbr.rel (%p558) target = $region56
        $region55: #{encodec_forward.1} parent=11 // pred_region
          _
        $region56: #{encodec_forward.1} parent=11 // pred_fallthru
          _
        // Predicated region
        $region57: #{encodec_forward.1} parent=11 // pred_check
          %p561 = pneg %p314
        $region58: #{encodec_forward.1} parent=11 // pred_check_branch
          %563 = sbr.rel (%p561) target = $region60
        $region59: #{encodec_forward.1} parent=11 // pred_region
          _
        $region60: #{encodec_forward.1} parent=11 // pred_fallthru
          _
        // Predicated region
        $region61: #{encodec_forward.1} parent=11 // pred_check
          %p564 = pneg %p335
        $region62: #{encodec_forward.1} parent=11 // pred_check_branch
          %566 = sbr.rel (%p564) target = $region64
        $region63: #{encodec_forward.1} parent=11 // pred_region
          _
        $region64: #{encodec_forward.1} parent=11 // pred_fallthru
          _
        // Predicated region
        $region65: #{encodec_forward.1} parent=11 // pred_check
          %p567 = pneg %p356
        $region66: #{encodec_forward.1} parent=11 // pred_check_branch
          %569 = sbr.rel (%p567) target = $region68
        $region67: #{encodec_forward.1} parent=11 // pred_region
          _
        $region68: #{encodec_forward.1} parent=11 // pred_fallthru
          _
        // Predicated region
        $region69: #{encodec_forward.1} parent=11 // pred_check
          %p570 = pneg %p377
        $region70: #{encodec_forward.1} parent=11 // pred_check_branch
          %572 = sbr.rel (%p570) target = $region72
        $region71: #{encodec_forward.1} parent=11 // pred_region
          _
        $region72: #{encodec_forward.1} parent=11 // pred_fallthru
          _
        // Predicated region
        $region73: #{encodec_forward.1} parent=11 // pred_check
          %p573 = pneg %p398
        $region74: #{encodec_forward.1} parent=11 // pred_check_branch
          %575 = sbr.rel (%p573) target = $region76
        $region75: #{encodec_forward.1} parent=11 // pred_region
          _
        $region76: #{encodec_forward.1} parent=11 // pred_fallthru
          _
        // Predicated region
        $region77: #{encodec_forward.1} parent=11 // pred_check
          %p576 = pneg %p419
        $region78: #{encodec_forward.1} parent=11 // pred_check_branch
          %578 = sbr.rel (%p576) target = $region80
        $region79: #{encodec_forward.1} parent=11 // pred_region
          _
        $region80: #{encodec_forward.1} parent=11 // pred_fallthru
          _
        // Predicated region
        $region81: #{encodec_forward.1} parent=11 // pred_check
          %p579 = pneg %p440
        $region82: #{encodec_forward.1} parent=11 // pred_check_branch
          %581 = sbr.rel (%p579) target = $region84
        $region83: #{encodec_forward.1} parent=11 // pred_region
          _
        $region84: #{encodec_forward.1} parent=11 // pred_fallthru
          _
        // Predicated region
        $region85: #{encodec_forward.1} parent=11 // pred_check
          %p582 = pneg %p461
        $region86: #{encodec_forward.1} parent=11 // pred_check_branch
          %584 = sbr.rel (%p582) target = $region88
        $region87: #{encodec_forward.1} parent=11 // pred_region
          _
        $region88: #{encodec_forward.1} parent=11 // pred_fallthru
          _
      $region12: #{encodec_forward.1} parent=5 // pred_fallthru
        _
      %p585 = scmp.lt.s32.totalorder %s36, 2
      // Predicated region
      $region89: #{encodec_forward.1} parent=5 // pred_check
        %p586 = pneg %p585
      $region90: #{encodec_forward.1} parent=5 // pred_check_branch
        %588 = sbr.rel (%p586) target = $region92
      $region91: #{encodec_forward.1} parent=5 // pred_region
        // Predicated region
        $region93: #{encodec_forward.1} parent=91 // pred_check
          %p589 = pneg %p56
        $region94: #{encodec_forward.1} parent=91 // pred_check_branch
          %591 = sbr.rel (%p589) target = $region96
        $region95: #{encodec_forward.1} parent=91 // pred_region
          %p592 = scmp.lt.s32.totalorder %s36, 1
          %s593 = scalar_select %p592, %s36, 1
          %s594 = scalar_lea.vmem %s0, %s593
        $region96: #{encodec_forward.1} parent=91 // pred_fallthru
          _
      $region92: #{encodec_forward.1} parent=5 // pred_fallthru
        _
      %p595 = scmp.le.s32.totalorder 1, %s36
      %p596 = scmp.lt.s32.totalorder %s36, 3
      %p597 = pnand %p595, %p596
      %p598 = pneg %p597
      // Predicated region
      $region97: #{encodec_forward.1} parent=5 // pred_check
        _
      $region98: #{encodec_forward.1} parent=5 // pred_check_branch
        %600 = sbr.rel (%p597) target = $region100
      $region99: #{encodec_forward.1} parent=5 // pred_region
        %s601 = ssub.s32 %s36, 1
        %p602 = scmp.lt.s32.totalorder %s41, 1
        %s603 = scalar_select %p602, %s41, 1
        %s604 = scalar_lea.vmem %s0, %s603
        %p605 = pneg %p62
        %p606 = pneg %p59
        %p607 = pneg %p83
        %p608 = pneg %p80
        %p609 = pneg %p104
        %p610 = pneg %p101
        %p611 = pneg %p125
        %p612 = pneg %p122
        %p613 = pneg %p146
        %p614 = pneg %p143
        %p615 = pneg %p167
        %p616 = pneg %p164
        %p617 = pneg %p188
        %p618 = pneg %p185
        %p619 = pneg %p209
        %p620 = pneg %p206
        %p621 = pneg %p230
        %p622 = pneg %p227
        %p623 = pneg %p251
        %p624 = pneg %p248
        %p625 = pneg %p272
        %p626 = pneg %p269
        %p627 = pneg %p293
        %p628 = pneg %p290
        %p629 = pneg %p314
        %p630 = pneg %p311
        %p631 = pneg %p335
        %p632 = pneg %p332
        %p633 = pneg %p356
        %p634 = pneg %p353
        %p635 = pneg %p377
        %p636 = pneg %p374
        %p637 = pneg %p398
        %p638 = pneg %p395
        %p639 = pneg %p419
        %p640 = pneg %p416
        %p641 = pneg %p440
        %p642 = pneg %p437
        %p643 = pneg %p461
        %p644 = pneg %p458
        %p645 = pneg %p487
        %p646 = pneg %p484
        %s647 = sand.u32 %s474, 1
        %s648 = scalar_lea.sflag [#allocation4], %s647
        %s649 = sand.u32 %s474, 1
        %s650 = scalar_lea.vmem [#allocation3], %s649
        %p651 = pneg %p513
        %p652 = pneg %p510
        %s653 = sand.u32 %s500, 1
        %s654 = scalar_lea.sflag [#allocation6], %s653
        %s655 = sand.u32 %s500, 1
        %s656 = smul.addr %s655, 4
        %s657 = scalar_lea.vmem [#allocation5], %s656
        %p658 = scmp.lt.s32.totalorder %s41, 1
        %s659 = scalar_select %p658, %s41, 1
        %s660 = scalar_lea.vmem %s0, %s659
        %v662 = vld [vmem:[%s660] sm:$0x1]
        %v664 = vperm.slane %v662, 0
        %665 = vrot.lane.b32.xlu0 %v664, 6
        %v666 = vpop.permute.xlu0 %665
        %vm668 = vcmask 48128
        %v669 = vsel %vm668, 0.0, %v666
        %v670 = vpack.c.bf16 %v669, %v669
        %v671 = vld [vmem:[%s1] sm:$0xf]
        %v672 = vld [vmem:[%s1 + $0x4] sm:$0xf]
        %v673 = vunpack.c.l.bf16 %v671
        %v674 = vunpack.c.l.bf16 %v672
        %v675 = vunpack.c.l.bf16 %v670
        %677 = vset.pattern.permute.xlu0 0
        %678 = vperm.xlu0 %677, %v673
        %v679 = vpop.permute.xlu0 %678
        %682 = vset.pattern.permute.xlu0 0
        %683 = vperm.xlu0 %682, %v674
        %v684 = vpop.permute.xlu0 %683
        %v686 = vperm.slane %v675, 0
        %v687 = vmul.f32 %v679, %v686
        %v688 = vmul.f32 %v684, %v686
        %v689 = vadd.f32 %v687, 0.0
        %v690 = vadd.f32 %v688, 0.0
        %s691 = scalar_lea.vmem %s1, 8
        %v692 = vld [vmem:[%s691] sm:$0xf]
        %v693 = vld [vmem:[%s691 + $0x4] sm:$0xf]
        %v694 = vunpack.c.l.bf16 %v692
        %v695 = vunpack.c.l.bf16 %v693
        %697 = vset.pattern.permute.xlu0 0
        %698 = vperm.xlu0 %697, %v694
        %v699 = vpop.permute.xlu0 %698
        %702 = vset.pattern.permute.xlu0 0
        %703 = vperm.xlu0 %702, %v695
        %v704 = vpop.permute.xlu0 %703
        %v706 = vmul.f32 %v699, %v686
        %v707 = vmul.f32 %v704, %v686
        %710 = vrot.lane.b32.xlu0 %v706, 127
        %v711 = vpop.permute.xlu0 %710
        %712 = vrot.lane.b32.xlu0 %v707, 127
        %v713 = vpop.permute.xlu0 %712
        %v716 = vadd.f32 %v689, %v711
        %v717 = vadd.f32 %v690, %v713
        %s718 = scalar_lea.vmem %s1, 16
        %v719 = vld [vmem:[%s718] sm:$0xf]
        %v720 = vld [vmem:[%s718 + $0x4] sm:$0xf]
        %v721 = vunpack.c.l.bf16 %v719
        %v722 = vunpack.c.l.bf16 %v720
        %724 = vset.pattern.permute.xlu0 0
        %725 = vperm.xlu0 %724, %v721
        %v726 = vpop.permute.xlu0 %725
        %729 = vset.pattern.permute.xlu0 0
        %730 = vperm.xlu0 %729, %v722
        %v731 = vpop.permute.xlu0 %730
        %v733 = vmul.f32 %v726, %v686
        %v734 = vmul.f32 %v731, %v686
        %737 = vrot.lane.b32.xlu0 %v733, 126
        %v738 = vpop.permute.xlu0 %737
        %739 = vrot.lane.b32.xlu0 %v734, 126
        %v740 = vpop.permute.xlu0 %739
        %v743 = vadd.f32 %v716, %v738
        %v744 = vadd.f32 %v717, %v740
        %s745 = scalar_lea.vmem %s1, 24
        %v746 = vld [vmem:[%s745] sm:$0xf]
        %v747 = vld [vmem:[%s745 + $0x4] sm:$0xf]
        %v748 = vunpack.c.l.bf16 %v746
        %v749 = vunpack.c.l.bf16 %v747
        %751 = vset.pattern.permute.xlu0 0
        %752 = vperm.xlu0 %751, %v748
        %v753 = vpop.permute.xlu0 %752
        %756 = vset.pattern.permute.xlu0 0
        %757 = vperm.xlu0 %756, %v749
        %v758 = vpop.permute.xlu0 %757
        %v760 = vmul.f32 %v753, %v686
        %v761 = vmul.f32 %v758, %v686
        %764 = vrot.lane.b32.xlu0 %v760, 125
        %v765 = vpop.permute.xlu0 %764
        %766 = vrot.lane.b32.xlu0 %v761, 125
        %v767 = vpop.permute.xlu0 %766
        %v770 = vadd.f32 %v743, %v765
        %v771 = vadd.f32 %v744, %v767
        %s772 = scalar_lea.vmem %s1, 32
        %v773 = vld [vmem:[%s772] sm:$0xf]
        %v774 = vld [vmem:[%s772 + $0x4] sm:$0xf]
        %v775 = vunpack.c.l.bf16 %v773
        %v776 = vunpack.c.l.bf16 %v774
        %778 = vset.pattern.permute.xlu0 0
        %779 = vperm.xlu0 %778, %v775
        %v780 = vpop.permute.xlu0 %779
        %783 = vset.pattern.permute.xlu0 0
        %784 = vperm.xlu0 %783, %v776
        %v785 = vpop.permute.xlu0 %784
        %v787 = vmul.f32 %v780, %v686
        %v788 = vmul.f32 %v785, %v686
        %791 = vrot.lane.b32.xlu0 %v787, 124
        %v792 = vpop.permute.xlu0 %791
        %793 = vrot.lane.b32.xlu0 %v788, 124
        %v794 = vpop.permute.xlu0 %793
        %v797 = vadd.f32 %v770, %v792
        %v798 = vadd.f32 %v771, %v794
        %s799 = scalar_lea.vmem %s1, 40
        %v800 = vld [vmem:[%s799] sm:$0xf]
        %v801 = vld [vmem:[%s799 + $0x4] sm:$0xf]
        %v802 = vunpack.c.l.bf16 %v800
        %v803 = vunpack.c.l.bf16 %v801
        %805 = vset.pattern.permute.xlu0 0
        %806 = vperm.xlu0 %805, %v802
        %v807 = vpop.permute.xlu0 %806
        %810 = vset.pattern.permute.xlu0 0
        %811 = vperm.xlu0 %810, %v803
        %v812 = vpop.permute.xlu0 %811
        %v814 = vmul.f32 %v807, %v686
        %v815 = vmul.f32 %v812, %v686
        %818 = vrot.lane.b32.xlu0 %v814, 123
        %v819 = vpop.permute.xlu0 %818
        %820 = vrot.lane.b32.xlu0 %v815, 123
        %v821 = vpop.permute.xlu0 %820
        %v824 = vadd.f32 %v797, %v819
        %v825 = vadd.f32 %v798, %v821
        %s826 = scalar_lea.vmem %s1, 48
        %v827 = vld [vmem:[%s826] sm:$0xf]
        %v828 = vld [vmem:[%s826 + $0x4] sm:$0xf]
        %v829 = vunpack.c.l.bf16 %v827
        %v830 = vunpack.c.l.bf16 %v828
        %832 = vset.pattern.permute.xlu0 0
        %833 = vperm.xlu0 %832, %v829
        %v834 = vpop.permute.xlu0 %833
        %837 = vset.pattern.permute.xlu0 0
        %838 = vperm.xlu0 %837, %v830
        %v839 = vpop.permute.xlu0 %838
        %v841 = vmul.f32 %v834, %v686
        %v842 = vmul.f32 %v839, %v686
        %845 = vrot.lane.b32.xlu0 %v841, 122
        %v846 = vpop.permute.xlu0 %845
        %847 = vrot.lane.b32.xlu0 %v842, 122
        %v848 = vpop.permute.xlu0 %847
        %v851 = vadd.f32 %v824, %v846
        %v852 = vadd.f32 %v825, %v848
        %v853 = vld [vmem:[%s2] sm:$0xff]
        %v854 = vld [vmem:[%s2 + $0x8] sm:$0xff]
        %856 = vset.pattern.permute.xlu0 0
        %857 = vperm.xlu0 %856, %v853
        %v858 = vpop.permute.xlu0 %857
        %861 = vset.pattern.permute.xlu0 0
        %862 = vperm.xlu0 %861, %v854
        %v863 = vpop.permute.xlu0 %862
        %v865 = vadd.f32 %v851, %v858
        %v866 = vadd.f32 %v852, %v863
        %v867 = vmul.f32 %v865, 1.442695
        %v868 = vpow.pop %v867
        %v869 = vmul.f32 %v866, 1.442695
        %v870 = vpow.pop %v869
        %v871 = vsub.f32 %v868, 1.0
        %v872 = vsub.f32 %v870, 1.0
        %vm873 = vcmp.gt.f32.partialorder %v865, 0.0
        %vm874 = vcmp.gt.f32.partialorder %v866, 0.0
        %v875 = vand.u32 2147483647, %v865
        %v876 = vand.u32 2147483647, %v866
        %vm877 = vcmp.lt.f32.partialorder %v875, 0.0001
        %vm878 = vcmp.lt.f32.partialorder %v876, 0.0001
        %v879 = vmul.f32 %v865, 0.5
        %v880 = vmul.f32 %v866, 0.5
        %v881 = vmul.f32 %v879, %v865
        %v882 = vmul.f32 %v880, %v866
        %v883 = vadd.f32 %v865, %v881
        %v884 = vadd.f32 %v866, %v882
        %v885 = vsel %vm877, %v883, %v871
        %v886 = vsel %vm878, %v884, %v872
        %v887 = vsel %vm873, %v865, %v885
        %v888 = vsel %vm874, %v866, %v886
        %891 = vrot.lane.b32.xlu0 %v887, 2
        %v892 = vpop.permute.xlu0 %891
        %893 = vrot.lane.b32.xlu0 %v888, 2
        %v894 = vpop.permute.xlu0 %893
        %vm897 = vcmask 15360
        %v898 = vsel %vm897, 0.0, %v892
        %v899 = vsel %vm897, 0.0, %v894
        %v900 = vpack.c.bf16 %v898, %v898
        %v901 = vpack.c.bf16 %v899, %v899
        %v902 = vld [vmem:[%s3] sm:$0xf]
        %v903 = vld [vmem:[%s3 + $0x4] sm:$0xf]
        %v904 = vld [vmem:[%s3 + $0x8] sm:$0xf]
        %v905 = vld [vmem:[%s3 + $0xc] sm:$0xf]
        %s906 = scalar_lea.vmem %s3, 16
        %v907 = vld [vmem:[%s906] sm:$0xf]
        %v908 = vld [vmem:[%s906 + $0x4] sm:$0xf]
        %v909 = vld [vmem:[%s906 + $0x8] sm:$0xf]
        %v910 = vld [vmem:[%s906 + $0xc] sm:$0xf]
        %v915 = vunpack.c.l.b16 %v907
        %v916 = vunpack.c.l.b16 %v908
        %v917 = vunpack.c.l.b16 %v909
        %v918 = vunpack.c.l.b16 %v910
        %v919 = vpack.c.b16 %v916, %v915
        %v920 = vpack.c.b16 %v918, %v917
        %v923 = vunpack.c.l.b16 %v900
        %v924 = vunpack.c.l.b16 %v901
        %v925 = vpack.c.b16 %v924, %v923
        %926 = vrot.lane.b32.xlu0 %v925, 127
        %v927 = vpop.permute.xlu0 %926
        %vm929 = vcmask 130048
        %v931 = vsel %vm929, %v919, 0
        %v934 = vsel %vm929, %v920, 0
        %936 = vmatpush.bf16.msra.mxu0 0
        %937 = vmatpush.bf16.msra.mxu0 0
        %938 = vmatpush.bf16.msra.mxu0 0
        %939 = vmatpush.bf16.msra.mxu0 0
        %940 = vmatpush.bf16.msra.mxu0 0
        %941 = vmatpush.bf16.msra.mxu0 0
        %942 = vmatpush.bf16.msra.mxu0 0
        %943 = vmatpush.bf16.msra.mxu0 %v927
        %944 = vmatmul.bf16.gmra.mxu0 %v931
        %v945 = vpop.f32.mrf.mxu0
        %v946 = vadd.f32 0.0, %v945
        %v947 = vpop.f32.mrf.mxu0
        %v948 = vadd.f32 0.0, %v947
        %949 = vmatmul.bf16.gmra.mxu0 %v934
        %v950 = vpop.f32.mrf.mxu0
        %v951 = vadd.f32 0.0, %v950
        %v952 = vpop.f32.mrf.mxu0
        %v953 = vadd.f32 0.0, %v952
        %954 = vdwg.mxu0
        %v959 = vunpack.c.l.b16 %v902
        %v960 = vunpack.c.l.b16 %v903
        %v961 = vunpack.c.l.b16 %v904
        %v962 = vunpack.c.l.b16 %v905
        %v963 = vpack.c.b16 %v960, %v959
        %v964 = vpack.c.b16 %v962, %v961
        %v967 = vsel %vm929, %v963, 0
        %v970 = vsel %vm929, %v964, 0
        %972 = vmatpush.bf16.msra.mxu0 0
        %973 = vmatpush.bf16.msra.mxu0 0
        %974 = vmatpush.bf16.msra.mxu0 0
        %975 = vmatpush.bf16.msra.mxu0 0
        %976 = vmatpush.bf16.msra.mxu0 0
        %977 = vmatpush.bf16.msra.mxu0 0
        %978 = vmatpush.bf16.msra.mxu0 0
        %979 = vmatpush.bf16.msra.mxu0 %v925
        %980 = vmatmul.bf16.gmra.mxu0 %v967
        %v981 = vpop.f32.mrf.mxu0
        %v982 = vadd.f32 %v946, %v981
        %v983 = vpop.f32.mrf.mxu0
        %v984 = vadd.f32 %v948, %v983
        %985 = vmatmul.bf16.gmra.mxu0 %v970
        %v986 = vpop.f32.mrf.mxu0
        %v987 = vadd.f32 %v951, %v986
        %v988 = vpop.f32.mrf.mxu0
        %v989 = vadd.f32 %v953, %v988
        %990 = vdwg.mxu0
        %s991 = scalar_lea.vmem %s3, 32
        %v992 = vld [vmem:[%s991] sm:$0xf]
        %v993 = vld [vmem:[%s991 + $0x4] sm:$0xf]
        %v994 = vld [vmem:[%s991 + $0x8] sm:$0xf]
        %v995 = vld [vmem:[%s991 + $0xc] sm:$0xf]
        %v1000 = vunpack.c.l.b16 %v992
        %v1001 = vunpack.c.l.b16 %v993
        %v1002 = vunpack.c.l.b16 %v994
        %v1003 = vunpack.c.l.b16 %v995
        %v1004 = vpack.c.b16 %v1001, %v1000
        %v1005 = vpack.c.b16 %v1003, %v1002
        %1006 = vrot.lane.b32.xlu0 %v925, 126
        %v1007 = vpop.permute.xlu0 %1006
        %v1010 = vsel %vm929, %v1004, 0
        %v1013 = vsel %vm929, %v1005, 0
        %1015 = vmatpush.bf16.msra.mxu0 0
        %1016 = vmatpush.bf16.msra.mxu0 0
        %1017 = vmatpush.bf16.msra.mxu0 0
        %1018 = vmatpush.bf16.msra.mxu0 0
        %1019 = vmatpush.bf16.msra.mxu0 0
        %1020 = vmatpush.bf16.msra.mxu0 0
        %1021 = vmatpush.bf16.msra.mxu0 0
        %1022 = vmatpush.bf16.msra.mxu0 %v1007
        %1023 = vmatmul.bf16.gmra.mxu0 %v1010
        %v1024 = vpop.f32.mrf.mxu0
        %v1025 = vadd.f32 0.0, %v1024
        %v1026 = vpop.f32.mrf.mxu0
        %v1027 = vadd.f32 0.0, %v1026
        %1028 = vmatmul.bf16.gmra.mxu0 %v1013
        %v1029 = vpop.f32.mrf.mxu0
        %v1030 = vadd.f32 0.0, %v1029
        %v1031 = vpop.f32.mrf.mxu0
        %v1032 = vadd.f32 0.0, %v1031
        %1033 = vdwg.mxu0
        %v1034 = vadd.f32 %v982, %v1025
        %v1035 = vadd.f32 %v984, %v1027
        %v1036 = vadd.f32 %v987, %v1030
        %v1037 = vadd.f32 %v989, %v1032
        %s1038 = scalar_lea.vmem %s3, 48
        %v1039 = vld [vmem:[%s1038] sm:$0xf]
        %v1040 = vld [vmem:[%s1038 + $0x4] sm:$0xf]
        %v1041 = vld [vmem:[%s1038 + $0x8] sm:$0xf]
        %v1042 = vld [vmem:[%s1038 + $0xc] sm:$0xf]
        %v1047 = vunpack.c.l.b16 %v1039
        %v1048 = vunpack.c.l.b16 %v1040
        %v1049 = vunpack.c.l.b16 %v1041
        %v1050 = vunpack.c.l.b16 %v1042
        %v1051 = vpack.c.b16 %v1048, %v1047
        %v1052 = vpack.c.b16 %v1050, %v1049
        %1053 = vrot.lane.b32.xlu0 %v925, 125
        %v1054 = vpop.permute.xlu0 %1053
        %v1057 = vsel %vm929, %v1051, 0
        %v1060 = vsel %vm929, %v1052, 0
        %1062 = vmatpush.bf16.msra.mxu0 0
        %1063 = vmatpush.bf16.msra.mxu0 0
        %1064 = vmatpush.bf16.msra.mxu0 0
        %1065 = vmatpush.bf16.msra.mxu0 0
        %1066 = vmatpush.bf16.msra.mxu0 0
        %1067 = vmatpush.bf16.msra.mxu0 0
        %1068 = vmatpush.bf16.msra.mxu0 0
        %1069 = vmatpush.bf16.msra.mxu0 %v1054
        %1070 = vmatmul.bf16.gmra.mxu0 %v1057
        %v1071 = vpop.f32.mrf.mxu0
        %v1072 = vadd.f32 0.0, %v1071
        %v1073 = vpop.f32.mrf.mxu0
        %v1074 = vadd.f32 0.0, %v1073
        %1075 = vmatmul.bf16.gmra.mxu0 %v1060
        %v1076 = vpop.f32.mrf.mxu0
        %v1077 = vadd.f32 0.0, %v1076
        %v1078 = vpop.f32.mrf.mxu0
        %v1079 = vadd.f32 0.0, %v1078
        %1080 = vdwg.mxu0
        %v1081 = vadd.f32 %v1034, %v1072
        %v1082 = vadd.f32 %v1035, %v1074
        %v1083 = vadd.f32 %v1036, %v1077
        %v1084 = vadd.f32 %v1037, %v1079
        %v1085 = vlaneseq
        %v1086 = vshrl.u32 %v1085, 7
        %v1087 = vadd.s32 %v1086, 8
        %v1088 = vadd.s32 %v1086, 16
        %v1089 = vadd.s32 %v1086, 24
        %v1090 = vadd.s32 %v1086, 32
        %v1091 = vadd.s32 %v1086, 40
        %v1092 = vadd.s32 %v1086, 48
        %v1093 = vadd.s32 %v1086, 56
        %v1094 = vlaneseq
        %v1095 = vand.u32 %v1094, 127
        %v1096 = vmul.u32 %v1095, 2
        %vm1097 = vcmp.eq.s32.totalorder %v1086, %v1096
        %vm1098 = vcmp.eq.s32.totalorder %v1087, %v1096
        %vm1099 = vcmp.eq.s32.totalorder %v1088, %v1096
        %vm1100 = vcmp.eq.s32.totalorder %v1089, %v1096
        %vm1101 = vcmp.eq.s32.totalorder %v1090, %v1096
        %vm1102 = vcmp.eq.s32.totalorder %v1091, %v1096
        %vm1103 = vcmp.eq.s32.totalorder %v1092, %v1096
        %vm1104 = vcmp.eq.s32.totalorder %v1093, %v1096
        %v1105 = vsel %vm1097, 1, 0
        %v1106 = vsel %vm1098, 1, 0
        %v1107 = vsel %vm1099, 1, 0
        %v1108 = vsel %vm1100, 1, 0
        %v1109 = vsel %vm1101, 1, 0
        %v1110 = vsel %vm1102, 1, 0
        %v1111 = vsel %vm1103, 1, 0
        %v1112 = vsel %vm1104, 1, 0
        %v1113 = vcvt.s32.f32 %v1105
        %v1114 = vcvt.s32.f32 %v1106
        %v1115 = vcvt.s32.f32 %v1107
        %v1116 = vcvt.s32.f32 %v1108
        %v1117 = vcvt.s32.f32 %v1109
        %v1118 = vcvt.s32.f32 %v1110
        %v1119 = vcvt.s32.f32 %v1111
        %v1120 = vcvt.s32.f32 %v1112
        %v1121 = vpack.c.bf16 %v1114, %v1113
        %v1122 = vpack.c.bf16 %v1116, %v1115
        %v1123 = vpack.c.bf16 %v1118, %v1117
        %v1124 = vpack.c.bf16 %v1120, %v1119
        %v1125 = vpack.c.bf16 %v1082, %v1081
        %v1126 = vpack.c.bf16 %v1084, %v1083
        %v1127 = vld [vmem:[%s4] sm:$0xff]
        %v1128 = vld [vmem:[%s4 + $0x8] sm:$0xff]
        %v1129 = vld [vmem:[%s4 + $0x10] sm:$0xff]
        %v1130 = vld [vmem:[%s4 + $0x18] sm:$0xff]
        %1132 = vset.pattern.permute.xlu0 0
        %1133 = vperm.xlu0 %1132, %v1127
        %v1134 = vpop.permute.xlu0 %1133
        %1137 = vset.pattern.permute.xlu0 0
        %1138 = vperm.xlu0 %1137, %v1128
        %v1139 = vpop.permute.xlu0 %1138
        %1142 = vset.pattern.permute.xlu0 0
        %1143 = vperm.xlu0 %1142, %v1129
        %v1144 = vpop.permute.xlu0 %1143
        %1147 = vset.pattern.permute.xlu0 0
        %1148 = vperm.xlu0 %1147, %v1130
        %v1149 = vpop.permute.xlu0 %1148
        %vm1151 = vcmask 515072
        %v1153 = vsel %vm1151, %v1125, 0
        %v1156 = vsel %vm1151, %v1126, 0
        %vm1158 = vcmask 1046528
        %vm1159 = vcmask 1047552
        %v1160 = vsel %vm1158, 4294967295, 65535
        %v1161 = vsel %vm1159, %v1160, 0
        %v1163 = vand.u32 %v1124, %v1161
        %1165 = vmatpush.bf16.msra.mxu0 0
        %1166 = vmatpush.bf16.msra.mxu0 0
        %1167 = vmatpush.bf16.msra.mxu0 0
        %1168 = vmatpush.bf16.msra.mxu0 0
        %1169 = vmatpush.bf16.msra.mxu0 %v1163
        %1170 = vmatpush.bf16.msra.mxu0 %v1123
        %1171 = vmatpush.bf16.msra.mxu0 %v1122
        %1172 = vmatpush.bf16.msra.mxu0 %v1121
        %1173 = vmatmul.bf16.gmra.mxu0 %v1153
        %v1174 = vpop.f32.mrf.mxu0
        %v1175 = vadd.f32 %v1134, %v1174
        %v1176 = vpop.f32.mrf.mxu0
        %v1177 = vadd.f32 %v1139, %v1176
        %1178 = vmatmul.bf16.gmra.mxu0 %v1156
        %v1179 = vpop.f32.mrf.mxu0
        %v1180 = vadd.f32 %v1144, %v1179
        %v1181 = vpop.f32.mrf.mxu0
        %v1182 = vadd.f32 %v1149, %v1181
        %1183 = vdwg.mxu0
        %v1184 = vmul.f32 %v1175, 1.442695
        %v1185 = vpow.pop %v1184
        %v1186 = vmul.f32 %v1177, 1.442695
        %v1187 = vpow.pop %v1186
        %v1188 = vmul.f32 %v1180, 1.442695
        %v1189 = vpow.pop %v1188
        %v1190 = vmul.f32 %v1182, 1.442695
        %v1191 = vpow.pop %v1190
        %v1192 = vsub.f32 %v1185, 1.0
        %v1193 = vsub.f32 %v1187, 1.0
        %v1194 = vsub.f32 %v1189, 1.0
        %v1195 = vsub.f32 %v1191, 1.0
        %vm1196 = vcmp.gt.f32.partialorder %v1175, 0.0
        %vm1197 = vcmp.gt.f32.partialorder %v1177, 0.0
        %vm1198 = vcmp.gt.f32.partialorder %v1180, 0.0
        %vm1199 = vcmp.gt.f32.partialorder %v1182, 0.0
        %v1200 = vand.u32 2147483647, %v1175
        %v1201 = vand.u32 2147483647, %v1177
        %v1202 = vand.u32 2147483647, %v1180
        %v1203 = vand.u32 2147483647, %v1182
        %vm1204 = vcmp.lt.f32.partialorder %v1200, 0.0001
        %vm1205 = vcmp.lt.f32.partialorder %v1201, 0.0001
        %vm1206 = vcmp.lt.f32.partialorder %v1202, 0.0001
        %vm1207 = vcmp.lt.f32.partialorder %v1203, 0.0001
        %v1208 = vmul.f32 %v1175, 0.5
        %v1209 = vmul.f32 %v1177, 0.5
        %v1210 = vmul.f32 %v1180, 0.5
        %v1211 = vmul.f32 %v1182, 0.5
        %v1212 = vmul.f32 %v1208, %v1175
        %v1213 = vmul.f32 %v1209, %v1177
        %v1214 = vmul.f32 %v1210, %v1180
        %v1215 = vmul.f32 %v1211, %v1182
        %v1216 = vadd.f32 %v1175, %v1212
        %v1217 = vadd.f32 %v1177, %v1213
        %v1218 = vadd.f32 %v1180, %v1214
        %v1219 = vadd.f32 %v1182, %v1215
        %v1220 = vsel %vm1204, %v1216, %v1192
        %v1221 = vsel %vm1205, %v1217, %v1193
        %v1222 = vsel %vm1206, %v1218, %v1194
        %v1223 = vsel %vm1207, %v1219, %v1195
        %v1224 = vsel %vm1196, %v1175, %v1220
        %v1225 = vsel %vm1197, %v1177, %v1221
        %v1226 = vsel %vm1198, %v1180, %v1222
        %v1227 = vsel %vm1199, %v1182, %v1223
        %1232 = vrot.lane.b32.xlu0 %v1224, 2
        %v1233 = vpop.permute.xlu0 %1232
        %1234 = vrot.lane.b32.xlu0 %v1225, 2
        %v1235 = vpop.permute.xlu0 %1234
        %1236 = vrot.lane.b32.xlu0 %v1226, 2
        %v1237 = vpop.permute.xlu0 %1236
        %1238 = vrot.lane.b32.xlu0 %v1227, 2
        %v1239 = vpop.permute.xlu0 %1238
        %v1244 = vsel %vm897, 0.0, %v1233
        %v1245 = vsel %vm897, 0.0, %v1235
        %v1246 = vsel %vm897, 0.0, %v1237
        %v1247 = vsel %vm897, 0.0, %v1239
        %v1248 = vpack.c.bf16 %v1244, %v1244
        %v1249 = vpack.c.bf16 %v1245, %v1245
        %v1250 = vpack.c.bf16 %v1246, %v1246
        %v1251 = vpack.c.bf16 %v1247, %v1247
        %v1252 = vld [vmem:[%s5] sm:$0xf]
        %v1253 = vld [vmem:[%s5 + $0x4] sm:$0xf]
        %v1254 = vld [vmem:[%s5 + $0x8] sm:$0xf]
        %v1255 = vld [vmem:[%s5 + $0xc] sm:$0xf]
        %s1256 = scalar_lea.vmem %s5, 16
        %v1257 = vld [vmem:[%s1256] sm:$0xf]
        %v1258 = vld [vmem:[%s1256 + $0x4] sm:$0xf]
        %v1259 = vld [vmem:[%s1256 + $0x8] sm:$0xf]
        %v1260 = vld [vmem:[%s1256 + $0xc] sm:$0xf]
        %v1265 = vunpack.c.l.b16 %v1257
        %v1266 = vunpack.c.l.b16 %v1258
        %v1267 = vunpack.c.l.b16 %v1259
        %v1268 = vunpack.c.l.b16 %v1260
        %v1269 = vpack.c.b16 %v1266, %v1265
        %v1270 = vpack.c.b16 %v1268, %v1267
        %v1275 = vunpack.c.l.b16 %v1248
        %v1276 = vunpack.c.l.b16 %v1249
        %v1277 = vunpack.c.l.b16 %v1250
        %v1278 = vunpack.c.l.b16 %v1251
        %v1279 = vpack.c.b16 %v1276, %v1275
        %v1280 = vpack.c.b16 %v1278, %v1277
        %1281 = vrot.lane.b32.xlu0 %v1279, 127
        %v1282 = vpop.permute.xlu0 %1281
        %1283 = vrot.lane.b32.xlu0 %v1280, 127
        %v1284 = vpop.permute.xlu0 %1283
        %vm1287 = vcmask 261120
        %v1289 = vsel %vm1287, %v1269, 0
        %v1292 = vsel %vm1287, %v1270, 0
        %1294 = vmatpush.bf16.msra.mxu0 0
        %1295 = vmatpush.bf16.msra.mxu0 0
        %1296 = vmatpush.bf16.msra.mxu0 0
        %1297 = vmatpush.bf16.msra.mxu0 0
        %1298 = vmatpush.bf16.msra.mxu0 0
        %1299 = vmatpush.bf16.msra.mxu0 0
        %1300 = vmatpush.bf16.msra.mxu0 %v1284
        %1301 = vmatpush.bf16.msra.mxu0 %v1282
        %1302 = vmatmul.bf16.gmra.mxu0 %v1289
        %v1303 = vpop.f32.mrf.mxu0
        %v1304 = vadd.f32 0.0, %v1303
        %v1305 = vpop.f32.mrf.mxu0
        %v1306 = vadd.f32 0.0, %v1305
        %1307 = vmatmul.bf16.gmra.mxu0 %v1292
        %v1308 = vpop.f32.mrf.mxu0
        %v1309 = vadd.f32 0.0, %v1308
        %v1310 = vpop.f32.mrf.mxu0
        %v1311 = vadd.f32 0.0, %v1310
        %1312 = vdwg.mxu0
        %v1317 = vunpack.c.l.b16 %v1252
        %v1318 = vunpack.c.l.b16 %v1253
        %v1319 = vunpack.c.l.b16 %v1254
        %v1320 = vunpack.c.l.b16 %v1255
        %v1321 = vpack.c.b16 %v1318, %v1317
        %v1322 = vpack.c.b16 %v1320, %v1319
        %v1326 = vsel %vm1287, %v1321, 0
        %v1329 = vsel %vm1287, %v1322, 0
        %1331 = vmatpush.bf16.msra.mxu0 0
        %1332 = vmatpush.bf16.msra.mxu0 0
        %1333 = vmatpush.bf16.msra.mxu0 0
        %1334 = vmatpush.bf16.msra.mxu0 0
        %1335 = vmatpush.bf16.msra.mxu0 0
        %1336 = vmatpush.bf16.msra.mxu0 0
        %1337 = vmatpush.bf16.msra.mxu0 %v1280
        %1338 = vmatpush.bf16.msra.mxu0 %v1279
        %1339 = vmatmul.bf16.gmra.mxu0 %v1326
        %v1340 = vpop.f32.mrf.mxu0
        %v1341 = vadd.f32 %v1304, %v1340
        %v1342 = vpop.f32.mrf.mxu0
        %v1343 = vadd.f32 %v1306, %v1342
        %1344 = vmatmul.bf16.gmra.mxu0 %v1329
        %v1345 = vpop.f32.mrf.mxu0
        %v1346 = vadd.f32 %v1309, %v1345
        %v1347 = vpop.f32.mrf.mxu0
        %v1348 = vadd.f32 %v1311, %v1347
        %1349 = vdwg.mxu0
        %s1350 = scalar_lea.vmem %s5, 32
        %v1351 = vld [vmem:[%s1350] sm:$0xf]
        %v1352 = vld [vmem:[%s1350 + $0x4] sm:$0xf]
        %v1353 = vld [vmem:[%s1350 + $0x8] sm:$0xf]
        %v1354 = vld [vmem:[%s1350 + $0xc] sm:$0xf]
        %v1359 = vunpack.c.l.b16 %v1351
        %v1360 = vunpack.c.l.b16 %v1352
        %v1361 = vunpack.c.l.b16 %v1353
        %v1362 = vunpack.c.l.b16 %v1354
        %v1363 = vpack.c.b16 %v1360, %v1359
        %v1364 = vpack.c.b16 %v1362, %v1361
        %1365 = vrot.lane.b32.xlu0 %v1279, 126
        %v1366 = vpop.permute.xlu0 %1365
        %1367 = vrot.lane.b32.xlu0 %v1280, 126
        %v1368 = vpop.permute.xlu0 %1367
        %v1372 = vsel %vm1287, %v1363, 0
        %v1375 = vsel %vm1287, %v1364, 0
        %1377 = vmatpush.bf16.msra.mxu0 0
        %1378 = vmatpush.bf16.msra.mxu0 0
        %1379 = vmatpush.bf16.msra.mxu0 0
        %1380 = vmatpush.bf16.msra.mxu0 0
        %1381 = vmatpush.bf16.msra.mxu0 0
        %1382 = vmatpush.bf16.msra.mxu0 0
        %1383 = vmatpush.bf16.msra.mxu0 %v1368
        %1384 = vmatpush.bf16.msra.mxu0 %v1366
        %1385 = vmatmul.bf16.gmra.mxu0 %v1372
        %v1386 = vpop.f32.mrf.mxu0
        %v1387 = vadd.f32 0.0, %v1386
        %v1388 = vpop.f32.mrf.mxu0
        %v1389 = vadd.f32 0.0, %v1388
        %1390 = vmatmul.bf16.gmra.mxu0 %v1375
        %v1391 = vpop.f32.mrf.mxu0
        %v1392 = vadd.f32 0.0, %v1391
        %v1393 = vpop.f32.mrf.mxu0
        %v1394 = vadd.f32 0.0, %v1393
        %1395 = vdwg.mxu0
        %v1396 = vadd.f32 %v1341, %v1387
        %v1397 = vadd.f32 %v1343, %v1389
        %v1398 = vadd.f32 %v1346, %v1392
        %v1399 = vadd.f32 %v1348, %v1394
        %s1400 = scalar_lea.vmem %s5, 48
        %v1401 = vld [vmem:[%s1400] sm:$0xf]
        %v1402 = vld [vmem:[%s1400 + $0x4] sm:$0xf]
        %v1403 = vld [vmem:[%s1400 + $0x8] sm:$0xf]
        %v1404 = vld [vmem:[%s1400 + $0xc] sm:$0xf]
        %v1409 = vunpack.c.l.b16 %v1401
        %v1410 = vunpack.c.l.b16 %v1402
        %v1411 = vunpack.c.l.b16 %v1403
        %v1412 = vunpack.c.l.b16 %v1404
        %v1413 = vpack.c.b16 %v1410, %v1409
        %v1414 = vpack.c.b16 %v1412, %v1411
        %1415 = vrot.lane.b32.xlu0 %v1279, 125
        %v1416 = vpop.permute.xlu0 %1415
        %1417 = vrot.lane.b32.xlu0 %v1280, 125
        %v1418 = vpop.permute.xlu0 %1417
        %v1422 = vsel %vm1287, %v1413, 0
        %v1425 = vsel %vm1287, %v1414, 0
        %1427 = vmatpush.bf16.msra.mxu0 0
        %1428 = vmatpush.bf16.msra.mxu0 0
        %1429 = vmatpush.bf16.msra.mxu0 0
        %1430 = vmatpush.bf16.msra.mxu0 0
        %1431 = vmatpush.bf16.msra.mxu0 0
        %1432 = vmatpush.bf16.msra.mxu0 0
        %1433 = vmatpush.bf16.msra.mxu0 %v1418
        %1434 = vmatpush.bf16.msra.mxu0 %v1416
        %1435 = vmatmul.bf16.gmra.mxu0 %v1422
        %v1436 = vpop.f32.mrf.mxu0
        %v1437 = vadd.f32 0.0, %v1436
        %v1438 = vpop.f32.mrf.mxu0
        %v1439 = vadd.f32 0.0, %v1438
        %1440 = vmatmul.bf16.gmra.mxu0 %v1425
        %v1441 = vpop.f32.mrf.mxu0
        %v1442 = vadd.f32 0.0, %v1441
        %v1443 = vpop.f32.mrf.mxu0
        %v1444 = vadd.f32 0.0, %v1443
        %1445 = vdwg.mxu0
        %v1446 = vadd.f32 %v1396, %v1437
        %v1447 = vadd.f32 %v1397, %v1439
        %v1448 = vadd.f32 %v1398, %v1442
        %v1449 = vadd.f32 %v1399, %v1444
        %v1450 = vpack.c.bf16 %v1447, %v1446
        %v1451 = vpack.c.bf16 %v1449, %v1448
        %v1452 = vld [vmem:[%s6] sm:$0xff]
        %v1453 = vld [vmem:[%s6 + $0x8] sm:$0xff]
        %v1454 = vld [vmem:[%s6 + $0x10] sm:$0xff]
        %v1455 = vld [vmem:[%s6 + $0x18] sm:$0xff]
        %1457 = vset.pattern.permute.xlu0 0
        %1458 = vperm.xlu0 %1457, %v1452
        %v1459 = vpop.permute.xlu0 %1458
        %1462 = vset.pattern.permute.xlu0 0
        %1463 = vperm.xlu0 %1462, %v1453
        %v1464 = vpop.permute.xlu0 %1463
        %1467 = vset.pattern.permute.xlu0 0
        %1468 = vperm.xlu0 %1467, %v1454
        %v1469 = vpop.permute.xlu0 %1468
        %1472 = vset.pattern.permute.xlu0 0
        %1473 = vperm.xlu0 %1472, %v1455
        %v1474 = vpop.permute.xlu0 %1473
        %vm1476 = vcmask 252928
        %v1478 = vsel %vm1476, %v1450, 0
        %v1481 = vsel %vm1476, %v1451, 0
        %v1484 = vand.u32 %v1122, %v1161
        %1486 = vmatpush.bf16.msra.mxu0 0
        %1487 = vmatpush.bf16.msra.mxu0 0
        %1488 = vmatpush.bf16.msra.mxu0 0
        %1489 = vmatpush.bf16.msra.mxu0 0
        %1490 = vmatpush.bf16.msra.mxu0 0
        %1491 = vmatpush.bf16.msra.mxu0 0
        %1492 = vmatpush.bf16.msra.mxu0 %v1484
        %1493 = vmatpush.bf16.msra.mxu0 %v1121
        %1494 = vmatmul.bf16.gmra.mxu0 %v1478
        %v1495 = vpop.f32.mrf.mxu0
        %v1496 = vadd.f32 %v1459, %v1495
        %v1497 = vpop.f32.mrf.mxu0
        %v1498 = vadd.f32 %v1464, %v1497
        %1499 = vmatmul.bf16.gmra.mxu0 %v1481
        %v1500 = vpop.f32.mrf.mxu0
        %v1501 = vadd.f32 %v1469, %v1500
        %v1502 = vpop.f32.mrf.mxu0
        %v1503 = vadd.f32 %v1474, %v1502
        %1504 = vdwg.mxu0
        %v1505 = vmul.f32 %v1496, 1.442695
        %v1506 = vpow.pop %v1505
        %v1507 = vmul.f32 %v1498, 1.442695
        %v1508 = vpow.pop %v1507
        %v1509 = vmul.f32 %v1501, 1.442695
        %v1510 = vpow.pop %v1509
        %v1511 = vmul.f32 %v1503, 1.442695
        %v1512 = vpow.pop %v1511
        %v1513 = vsub.f32 %v1506, 1.0
        %v1514 = vsub.f32 %v1508, 1.0
        %v1515 = vsub.f32 %v1510, 1.0
        %v1516 = vsub.f32 %v1512, 1.0
        %vm1517 = vcmp.gt.f32.partialorder %v1496, 0.0
        %vm1518 = vcmp.gt.f32.partialorder %v1498, 0.0
        %vm1519 = vcmp.gt.f32.partialorder %v1501, 0.0
        %vm1520 = vcmp.gt.f32.partialorder %v1503, 0.0
        %v1521 = vand.u32 2147483647, %v1496
        %v1522 = vand.u32 2147483647, %v1498
        %v1523 = vand.u32 2147483647, %v1501
        %v1524 = vand.u32 2147483647, %v1503
        %vm1525 = vcmp.lt.f32.partialorder %v1521, 0.0001
        %vm1526 = vcmp.lt.f32.partialorder %v1522, 0.0001
        %vm1527 = vcmp.lt.f32.partialorder %v1523, 0.0001
        %vm1528 = vcmp.lt.f32.partialorder %v1524, 0.0001
        %v1529 = vmul.f32 %v1496, 0.5
        %v1530 = vmul.f32 %v1498, 0.5
        %v1531 = vmul.f32 %v1501, 0.5
        %v1532 = vmul.f32 %v1503, 0.5
        %v1533 = vmul.f32 %v1529, %v1496
        %v1534 = vmul.f32 %v1530, %v1498
        %v1535 = vmul.f32 %v1531, %v1501
        %v1536 = vmul.f32 %v1532, %v1503
        %v1537 = vadd.f32 %v1496, %v1533
        %v1538 = vadd.f32 %v1498, %v1534
        %v1539 = vadd.f32 %v1501, %v1535
        %v1540 = vadd.f32 %v1503, %v1536
        %v1541 = vsel %vm1525, %v1537, %v1513
        %v1542 = vsel %vm1526, %v1538, %v1514
        %v1543 = vsel %vm1527, %v1539, %v1515
        %v1544 = vsel %vm1528, %v1540, %v1516
        %v1545 = vsel %vm1517, %v1496, %v1541
        %v1546 = vsel %vm1518, %v1498, %v1542
        %v1547 = vsel %vm1519, %v1501, %v1543
        %v1548 = vsel %vm1520, %v1503, %v1544
        %1553 = vrot.lane.b32.xlu0 %v1545, 2
        %v1554 = vpop.permute.xlu0 %1553
        %1555 = vrot.lane.b32.xlu0 %v1546, 2
        %v1556 = vpop.permute.xlu0 %1555
        %1557 = vrot.lane.b32.xlu0 %v1547, 2
        %v1558 = vpop.permute.xlu0 %1557
        %1559 = vrot.lane.b32.xlu0 %v1548, 2
        %v1560 = vpop.permute.xlu0 %1559
        %v1565 = vsel %vm897, 0.0, %v1554
        %v1566 = vsel %vm897, 0.0, %v1556
        %v1567 = vsel %vm897, 0.0, %v1558
        %v1568 = vsel %vm897, 0.0, %v1560
        %v1569 = vpack.c.bf16 %v1565, %v1565
        %v1570 = vpack.c.bf16 %v1566, %v1566
        %v1571 = vpack.c.bf16 %v1567, %v1567
        %v1572 = vpack.c.bf16 %v1568, %v1568
        %v1573 = vld [vmem:[%s7] sm:$0xf]
        %v1574 = vld [vmem:[%s7 + $0x4] sm:$0xf]
        %v1575 = vld [vmem:[%s7 + $0x8] sm:$0xf]
        %v1576 = vld [vmem:[%s7 + $0xc] sm:$0xf]
        %s1577 = scalar_lea.vmem %s7, 16
        %v1578 = vld [vmem:[%s1577] sm:$0xf]
        %v1579 = vld [vmem:[%s1577 + $0x4] sm:$0xf]
        %v1580 = vld [vmem:[%s1577 + $0x8] sm:$0xf]
        %v1581 = vld [vmem:[%s1577 + $0xc] sm:$0xf]
        %v1586 = vunpack.c.l.b16 %v1578
        %v1587 = vunpack.c.l.b16 %v1579
        %v1588 = vunpack.c.l.b16 %v1580
        %v1589 = vunpack.c.l.b16 %v1581
        %v1590 = vpack.c.b16 %v1587, %v1586
        %v1591 = vpack.c.b16 %v1589, %v1588
        %v1596 = vunpack.c.l.b16 %v1569
        %v1597 = vunpack.c.l.b16 %v1570
        %v1598 = vunpack.c.l.b16 %v1571
        %v1599 = vunpack.c.l.b16 %v1572
        %v1600 = vpack.c.b16 %v1597, %v1596
        %v1601 = vpack.c.b16 %v1599, %v1598
        %1602 = vrot.lane.b32.xlu0 %v1600, 127
        %v1603 = vpop.permute.xlu0 %1602
        %1604 = vrot.lane.b32.xlu0 %v1601, 127
        %v1605 = vpop.permute.xlu0 %1604
        %v1609 = vsel %vm1287, %v1590, 0
        %v1612 = vsel %vm1287, %v1591, 0
        %1614 = vmatpush.bf16.msra.mxu0 0
        %1615 = vmatpush.bf16.msra.mxu0 0
        %1616 = vmatpush.bf16.msra.mxu0 0
        %1617 = vmatpush.bf16.msra.mxu0 0
        %1618 = vmatpush.bf16.msra.mxu0 0
        %1619 = vmatpush.bf16.msra.mxu0 0
        %1620 = vmatpush.bf16.msra.mxu0 %v1605
        %1621 = vmatpush.bf16.msra.mxu0 %v1603
        %1622 = vmatmul.bf16.gmra.mxu0 %v1609
        %v1623 = vpop.f32.mrf.mxu0
        %v1624 = vadd.f32 0.0, %v1623
        %v1625 = vpop.f32.mrf.mxu0
        %v1626 = vadd.f32 0.0, %v1625
        %1627 = vmatmul.bf16.gmra.mxu0 %v1612
        %v1628 = vpop.f32.mrf.mxu0
        %v1629 = vadd.f32 0.0, %v1628
        %v1630 = vpop.f32.mrf.mxu0
        %v1631 = vadd.f32 0.0, %v1630
        %1632 = vdwg.mxu0
        %v1637 = vunpack.c.l.b16 %v1573
        %v1638 = vunpack.c.l.b16 %v1574
        %v1639 = vunpack.c.l.b16 %v1575
        %v1640 = vunpack.c.l.b16 %v1576
        %v1641 = vpack.c.b16 %v1638, %v1637
        %v1642 = vpack.c.b16 %v1640, %v1639
        %v1646 = vsel %vm1287, %v1641, 0
        %v1649 = vsel %vm1287, %v1642, 0
        %1651 = vmatpush.bf16.msra.mxu0 0
        %1652 = vmatpush.bf16.msra.mxu0 0
        %1653 = vmatpush.bf16.msra.mxu0 0
        %1654 = vmatpush.bf16.msra.mxu0 0
        %1655 = vmatpush.bf16.msra.mxu0 0
        %1656 = vmatpush.bf16.msra.mxu0 0
        %1657 = vmatpush.bf16.msra.mxu0 %v1601
        %1658 = vmatpush.bf16.msra.mxu0 %v1600
        %1659 = vmatmul.bf16.gmra.mxu0 %v1646
        %v1660 = vpop.f32.mrf.mxu0
        %v1661 = vadd.f32 %v1624, %v1660
        %v1662 = vpop.f32.mrf.mxu0
        %v1663 = vadd.f32 %v1626, %v1662
        %1664 = vmatmul.bf16.gmra.mxu0 %v1649
        %v1665 = vpop.f32.mrf.mxu0
        %v1666 = vadd.f32 %v1629, %v1665
        %v1667 = vpop.f32.mrf.mxu0
        %v1668 = vadd.f32 %v1631, %v1667
        %1669 = vdwg.mxu0
        %s1670 = scalar_lea.vmem %s7, 32
        %v1671 = vld [vmem:[%s1670] sm:$0xf]
        %v1672 = vld [vmem:[%s1670 + $0x4] sm:$0xf]
        %v1673 = vld [vmem:[%s1670 + $0x8] sm:$0xf]
        %v1674 = vld [vmem:[%s1670 + $0xc] sm:$0xf]
        %v1679 = vunpack.c.l.b16 %v1671
        %v1680 = vunpack.c.l.b16 %v1672
        %v1681 = vunpack.c.l.b16 %v1673
        %v1682 = vunpack.c.l.b16 %v1674
        %v1683 = vpack.c.b16 %v1680, %v1679
        %v1684 = vpack.c.b16 %v1682, %v1681
        %1685 = vrot.lane.b32.xlu0 %v1600, 126
        %v1686 = vpop.permute.xlu0 %1685
        %1687 = vrot.lane.b32.xlu0 %v1601, 126
        %v1688 = vpop.permute.xlu0 %1687
        %v1692 = vsel %vm1287, %v1683, 0
        %v1695 = vsel %vm1287, %v1684, 0
        %1697 = vmatpush.bf16.msra.mxu0 0
        %1698 = vmatpush.bf16.msra.mxu0 0
        %1699 = vmatpush.bf16.msra.mxu0 0
        %1700 = vmatpush.bf16.msra.mxu0 0
        %1701 = vmatpush.bf16.msra.mxu0 0
        %1702 = vmatpush.bf16.msra.mxu0 0
        %1703 = vmatpush.bf16.msra.mxu0 %v1688
        %1704 = vmatpush.bf16.msra.mxu0 %v1686
        %1705 = vmatmul.bf16.gmra.mxu0 %v1692
        %v1706 = vpop.f32.mrf.mxu0
        %v1707 = vadd.f32 0.0, %v1706
        %v1708 = vpop.f32.mrf.mxu0
        %v1709 = vadd.f32 0.0, %v1708
        %1710 = vmatmul.bf16.gmra.mxu0 %v1695
        %v1711 = vpop.f32.mrf.mxu0
        %v1712 = vadd.f32 0.0, %v1711
        %v1713 = vpop.f32.mrf.mxu0
        %v1714 = vadd.f32 0.0, %v1713
        %1715 = vdwg.mxu0
        %v1716 = vadd.f32 %v1661, %v1707
        %v1717 = vadd.f32 %v1663, %v1709
        %v1718 = vadd.f32 %v1666, %v1712
        %v1719 = vadd.f32 %v1668, %v1714
        %v1720 = vld [vmem:[%s8] sm:$0xff]
        %v1721 = vld [vmem:[%s8 + $0x8] sm:$0xff]
        %v1722 = vld [vmem:[%s8 + $0x10] sm:$0xff]
        %v1723 = vld [vmem:[%s8 + $0x18] sm:$0xff]
        %1725 = vset.pattern.permute.xlu0 0
        %1726 = vperm.xlu0 %1725, %v1720
        %v1727 = vpop.permute.xlu0 %1726
        %1730 = vset.pattern.permute.xlu0 0
        %1731 = vperm.xlu0 %1730, %v1721
        %v1732 = vpop.permute.xlu0 %1731
        %1735 = vset.pattern.permute.xlu0 0
        %1736 = vperm.xlu0 %1735, %v1722
        %v1737 = vpop.permute.xlu0 %1736
        %1740 = vset.pattern.permute.xlu0 0
        %1741 = vperm.xlu0 %1740, %v1723
        %v1742 = vpop.permute.xlu0 %1741
        %v1744 = vadd.f32 %v1716, %v1727
        %v1745 = vadd.f32 %v1717, %v1732
        %v1746 = vadd.f32 %v1718, %v1737
        %v1747 = vadd.f32 %v1719, %v1742
        %v1748 = vld [vmem:[%s9] sm:$0xff]
        %v1749 = vld [vmem:[%s9 + $0x8] sm:$0xff]
        %v1751 = vsel %vm1287, %v1748, 0
        %v1754 = vsel %vm1287, %v1749, 0
        %1756 = vmatpush.msra.mxu0 0.0
        %1757 = vmatpush.msra.mxu0 0.0
        %1758 = vmatpush.msra.mxu0 0.0
        %1759 = vmatpush.msra.mxu0 0.0
        %1760 = vmatpush.msra.mxu0 0.0
        %1761 = vmatpush.msra.mxu0 0.0
        %1762 = vmatpush.msra.mxu0 0.0
        %1763 = vmatpush.msra.mxu0 0.0
        %1764 = vmatpush.msra.mxu0 0.0
        %1765 = vmatpush.msra.mxu0 0.0
        %1766 = vmatpush.msra.mxu0 0.0
        %1767 = vmatpush.msra.mxu0 0.0
        %1768 = vmatpush.msra.mxu0 %v1747
        %1769 = vmatpush.msra.mxu0 %v1746
        %1770 = vmatpush.msra.mxu0 %v1745
        %1771 = vmatpush.msra.mxu0 %v1744
        %1772 = vmatmul.f32.gmra.mxu0 %v1751
        %v1773 = vpop.f32.mrf.mxu0
        %v1774 = vadd.f32 0.0, %v1773
        %1775 = vmatmul.f32.gmra.mxu0 %v1754
        %v1776 = vpop.f32.mrf.mxu0
        %v1777 = vadd.f32 0.0, %v1776
        %1778 = vdwg.mxu0
        %v1779 = vld [vmem:[%s11] sm:$0xff]
        %v1780 = vld [vmem:[%s11 + $0x8] sm:$0xff]
        %v1781 = vmul.f32 %v1774, 2.0
        %v1782 = vmul.f32 %v1777, 2.0
        %1784 = vset.pattern.permute.xlu0 0
        %1785 = vperm.xlu0 %1784, %v1779
        %v1786 = vpop.permute.xlu0 %1785
        %1789 = vset.pattern.permute.xlu0 0
        %1790 = vperm.xlu0 %1789, %v1780
        %v1791 = vpop.permute.xlu0 %1790
        %v1793 = vsub.f32 %v1786, %v1781
        %v1794 = vsub.f32 %v1791, %v1782
        %v1795 = vsel %vm929, %v1793, inf
        %v1796 = vsel %vm929, %v1794, inf
        %v1797 = vmin.f32 %v1795, %v1796
        %v1798 = vrot.slane %v1797, 4
        %v1799 = vmin.f32 %v1797, %v1798
        %v1800 = vrot.slane %v1799, 2
        %v1801 = vmin.f32 %v1799, %v1800
        %v1802 = vrot.slane %v1801, 1
        %v1803 = vmin.f32 %v1801, %v1802
        %vm1804 = vcmp.le.f32.partialorder %v1793, %v1803
        %vm1805 = vcmp.le.f32.partialorder %v1794, %v1803
        %v1806 = vsel %vm1804, %v1086, 16
        %v1807 = vsel %vm1805, %v1087, 16
        %v1808 = vsel %vm929, %v1806, 2147483647
        %v1809 = vsel %vm929, %v1807, 2147483647
        %vm1810 = vcmp.lt.s32.totalorder %v1808, %v1809
        %v1811 = vsel %vm1810, %v1808, %v1809
        %v1812 = vrot.slane %v1811, 4
        %vm1813 = vcmp.lt.s32.totalorder %v1811, %v1812
        %v1814 = vsel %vm1813, %v1811, %v1812
        %v1815 = vrot.slane %v1814, 2
        %vm1816 = vcmp.lt.s32.totalorder %v1814, %v1815
        %v1817 = vsel %vm1816, %v1814, %v1815
        %v1818 = vrot.slane %v1817, 1
        %vm1819 = vcmp.lt.s32.totalorder %v1817, %v1818
        %v1820 = vsel %vm1819, %v1817, %v1818
        %vm1821 = vcmp.lt.s32.totalorder %v1820, 15
        %v1822 = vsel %vm1821, %v1820, 15
        %vm1823 = vcmp.eq.s32.totalorder %v1086, %v1822
        %vm1824 = vcmp.eq.s32.totalorder %v1087, %v1822
        %v1825 = vsel %vm1823, 1, 0
        %v1826 = vsel %vm1824, 1, 0
        %v1827 = vcvt.s32.f32 %v1825
        %v1828 = vcvt.s32.f32 %v1826
        %v1829 = vld [vmem:[%s10] sm:$0xff]
        %v1830 = vld [vmem:[%s10 + $0x8] sm:$0xff]
        %v1831 = vld [vmem:[%s10 + $0x10] sm:$0xff]
        %v1832 = vld [vmem:[%s10 + $0x18] sm:$0xff]
        %v1834 = vsel %vm929, %v1829, 0
        %v1837 = vsel %vm929, %v1830, 0
        %v1840 = vsel %vm929, %v1831, 0
        %v1843 = vsel %vm929, %v1832, 0
        %1845 = vmatpush.msra.mxu0 0.0
        %1846 = vmatpush.msra.mxu0 0.0
        %1847 = vmatpush.msra.mxu0 0.0
        %1848 = vmatpush.msra.mxu0 0.0
        %1849 = vmatpush.msra.mxu0 0.0
        %1850 = vmatpush.msra.mxu0 0.0
        %1851 = vmatpush.msra.mxu0 0.0
        %1852 = vmatpush.msra.mxu0 0.0
        %1853 = vmatpush.msra.mxu0 0.0
        %1854 = vmatpush.msra.mxu0 0.0
        %1855 = vmatpush.msra.mxu0 0.0
        %1856 = vmatpush.msra.mxu0 0.0
        %1857 = vmatpush.msra.mxu0 0.0
        %1858 = vmatpush.msra.mxu0 0.0
        %1859 = vmatpush.msra.mxu0 %v1828
        %1860 = vmatpush.msra.mxu0 %v1827
        %1861 = vmatmul.f32.gmra.mxu0 %v1834
        %v1862 = vpop.f32.mrf.mxu0
        %v1863 = vadd.f32 0.0, %v1862
        %1864 = vmatmul.f32.gmra.mxu0 %v1837
        %v1865 = vpop.f32.mrf.mxu0
        %v1866 = vadd.f32 0.0, %v1865
        %1867 = vmatmul.f32.gmra.mxu0 %v1840
        %v1868 = vpop.f32.mrf.mxu0
        %v1869 = vadd.f32 0.0, %v1868
        %1870 = vmatmul.f32.gmra.mxu0 %v1843
        %v1871 = vpop.f32.mrf.mxu0
        %v1872 = vadd.f32 0.0, %v1871
        %1873 = vdwg.mxu0
        %v1874 = vsub.f32 %v1744, %v1863
        %v1875 = vsub.f32 %v1745, %v1866
        %v1876 = vsub.f32 %v1746, %v1869
        %v1877 = vsub.f32 %v1747, %v1872
        %v1878 = vadd.f32 %v1863, 0.0
        %v1879 = vadd.f32 %v1866, 0.0
        %v1880 = vadd.f32 %v1869, 0.0
        %v1881 = vadd.f32 %v1872, 0.0
        %s1882 = scalar_lea.vmem %s9, 16
        %v1883 = vld [vmem:[%s1882] sm:$0xff]
        %v1884 = vld [vmem:[%s1882 + $0x8] sm:$0xff]
        %v1886 = vsel %vm1287, %v1883, 0
        %v1889 = vsel %vm1287, %v1884, 0
        %1891 = vmatpush.msra.mxu0 0.0
        %1892 = vmatpush.msra.mxu0 0.0
        %1893 = vmatpush.msra.mxu0 0.0
        %1894 = vmatpush.msra.mxu0 0.0
        %1895 = vmatpush.msra.mxu0 0.0
        %1896 = vmatpush.msra.mxu0 0.0
        %1897 = vmatpush.msra.mxu0 0.0
        %1898 = vmatpush.msra.mxu0 0.0
        %1899 = vmatpush.msra.mxu0 0.0
        %1900 = vmatpush.msra.mxu0 0.0
        %1901 = vmatpush.msra.mxu0 0.0
        %1902 = vmatpush.msra.mxu0 0.0
        %1903 = vmatpush.msra.mxu0 %v1877
        %1904 = vmatpush.msra.mxu0 %v1876
        %1905 = vmatpush.msra.mxu0 %v1875
        %1906 = vmatpush.msra.mxu0 %v1874
        %1907 = vmatmul.f32.gmra.mxu0 %v1886
        %v1908 = vpop.f32.mrf.mxu0
        %v1909 = vadd.f32 0.0, %v1908
        %1910 = vmatmul.f32.gmra.mxu0 %v1889
        %v1911 = vpop.f32.mrf.mxu0
        %v1912 = vadd.f32 0.0, %v1911
        %1913 = vdwg.mxu0
        %s1914 = scalar_lea.vmem %s11, 16
        %v1915 = vld [vmem:[%s1914] sm:$0xff]
        %v1916 = vld [vmem:[%s1914 + $0x8] sm:$0xff]
        %v1917 = vmul.f32 %v1909, 2.0
        %v1918 = vmul.f32 %v1912, 2.0
        %1920 = vset.pattern.permute.xlu0 0
        %1921 = vperm.xlu0 %1920, %v1915
        %v1922 = vpop.permute.xlu0 %1921
        %1925 = vset.pattern.permute.xlu0 0
        %1926 = vperm.xlu0 %1925, %v1916
        %v1927 = vpop.permute.xlu0 %1926
        %v1929 = vsub.f32 %v1922, %v1917
        %v1930 = vsub.f32 %v1927, %v1918
        %v1931 = vsel %vm929, %v1929, inf
        %v1932 = vsel %vm929, %v1930, inf
        %v1933 = vmin.f32 %v1931, %v1932
        %v1934 = vrot.slane %v1933, 4
        %v1935 = vmin.f32 %v1933, %v1934
        %v1936 = vrot.slane %v1935, 2
        %v1937 = vmin.f32 %v1935, %v1936
        %v1938 = vrot.slane %v1937, 1
        %v1939 = vmin.f32 %v1937, %v1938
        %vm1940 = vcmp.le.f32.partialorder %v1929, %v1939
        %vm1941 = vcmp.le.f32.partialorder %v1930, %v1939
        %v1942 = vsel %vm1940, %v1086, 16
        %v1943 = vsel %vm1941, %v1087, 16
        %v1944 = vsel %vm929, %v1942, 2147483647
        %v1945 = vsel %vm929, %v1943, 2147483647
        %vm1946 = vcmp.lt.s32.totalorder %v1944, %v1945
        %v1947 = vsel %vm1946, %v1944, %v1945
        %v1948 = vrot.slane %v1947, 4
        %vm1949 = vcmp.lt.s32.totalorder %v1947, %v1948
        %v1950 = vsel %vm1949, %v1947, %v1948
        %v1951 = vrot.slane %v1950, 2
        %vm1952 = vcmp.lt.s32.totalorder %v1950, %v1951
        %v1953 = vsel %vm1952, %v1950, %v1951
        %v1954 = vrot.slane %v1953, 1
        %vm1955 = vcmp.lt.s32.totalorder %v1953, %v1954
        %v1956 = vsel %vm1955, %v1953, %v1954
        %vm1957 = vcmp.lt.s32.totalorder %v1956, 15
        %v1958 = vsel %vm1957, %v1956, 15
        %vm1959 = vcmp.eq.s32.totalorder %v1086, %v1958
        %vm1960 = vcmp.eq.s32.totalorder %v1087, %v1958
        %v1961 = vsel %vm1959, 1, 0
        %v1962 = vsel %vm1960, 1, 0
        %v1963 = vcvt.s32.f32 %v1961
        %v1964 = vcvt.s32.f32 %v1962
        %s1965 = scalar_lea.vmem %s10, 32
        %v1966 = vld [vmem:[%s1965] sm:$0xff]
        %v1967 = vld [vmem:[%s1965 + $0x8] sm:$0xff]
        %v1968 = vld [vmem:[%s1965 + $0x10] sm:$0xff]
        %v1969 = vld [vmem:[%s1965 + $0x18] sm:$0xff]
        %v1971 = vsel %vm929, %v1966, 0
        %v1974 = vsel %vm929, %v1967, 0
        %v1977 = vsel %vm929, %v1968, 0
        %v1980 = vsel %vm929, %v1969, 0
        %1982 = vmatpush.msra.mxu0 0.0
        %1983 = vmatpush.msra.mxu0 0.0
        %1984 = vmatpush.msra.mxu0 0.0
        %1985 = vmatpush.msra.mxu0 0.0
        %1986 = vmatpush.msra.mxu0 0.0
        %1987 = vmatpush.msra.mxu0 0.0
        %1988 = vmatpush.msra.mxu0 0.0
        %1989 = vmatpush.msra.mxu0 0.0
        %1990 = vmatpush.msra.mxu0 0.0
        %1991 = vmatpush.msra.mxu0 0.0
        %1992 = vmatpush.msra.mxu0 0.0
        %1993 = vmatpush.msra.mxu0 0.0
        %1994 = vmatpush.msra.mxu0 0.0
        %1995 = vmatpush.msra.mxu0 0.0
        %1996 = vmatpush.msra.mxu0 %v1964
        %1997 = vmatpush.msra.mxu0 %v1963
        %1998 = vmatmul.f32.gmra.mxu0 %v1971
        %v1999 = vpop.f32.mrf.mxu0
        %v2000 = vadd.f32 0.0, %v1999
        %2001 = vmatmul.f32.gmra.mxu0 %v1974
        %v2002 = vpop.f32.mrf.mxu0
        %v2003 = vadd.f32 0.0, %v2002
        %2004 = vmatmul.f32.gmra.mxu0 %v1977
        %v2005 = vpop.f32.mrf.mxu0
        %v2006 = vadd.f32 0.0, %v2005
        %2007 = vmatmul.f32.gmra.mxu0 %v1980
        %v2008 = vpop.f32.mrf.mxu0
        %v2009 = vadd.f32 0.0, %v2008
        %2010 = vdwg.mxu0
        %v2011 = vsub.f32 %v1874, %v2000
        %v2012 = vsub.f32 %v1875, %v2003
        %v2013 = vsub.f32 %v1876, %v2006
        %v2014 = vsub.f32 %v1877, %v2009
        %v2015 = vadd.f32 %v1878, %v2000
        %v2016 = vadd.f32 %v1879, %v2003
        %v2017 = vadd.f32 %v1880, %v2006
        %v2018 = vadd.f32 %v1881, %v2009
        %s2019 = scalar_lea.vmem %s9, 32
        %v2020 = vld [vmem:[%s2019] sm:$0xff]
        %v2021 = vld [vmem:[%s2019 + $0x8] sm:$0xff]
        %v2023 = vsel %vm1287, %v2020, 0
        %v2026 = vsel %vm1287, %v2021, 0
        %2028 = vmatpush.msra.mxu0 0.0
        %2029 = vmatpush.msra.mxu0 0.0
        %2030 = vmatpush.msra.mxu0 0.0
        %2031 = vmatpush.msra.mxu0 0.0
        %2032 = vmatpush.msra.mxu0 0.0
        %2033 = vmatpush.msra.mxu0 0.0
        %2034 = vmatpush.msra.mxu0 0.0
        %2035 = vmatpush.msra.mxu0 0.0
        %2036 = vmatpush.msra.mxu0 0.0
        %2037 = vmatpush.msra.mxu0 0.0
        %2038 = vmatpush.msra.mxu0 0.0
        %2039 = vmatpush.msra.mxu0 0.0
        %2040 = vmatpush.msra.mxu0 %v2014
        %2041 = vmatpush.msra.mxu0 %v2013
        %2042 = vmatpush.msra.mxu0 %v2012
        %2043 = vmatpush.msra.mxu0 %v2011
        %2044 = vmatmul.f32.gmra.mxu0 %v2023
        %v2045 = vpop.f32.mrf.mxu0
        %v2046 = vadd.f32 0.0, %v2045
        %2047 = vmatmul.f32.gmra.mxu0 %v2026
        %v2048 = vpop.f32.mrf.mxu0
        %v2049 = vadd.f32 0.0, %v2048
        %2050 = vdwg.mxu0
        %s2051 = scalar_lea.vmem %s11, 32
        %v2052 = vld [vmem:[%s2051] sm:$0xff]
        %v2053 = vld [vmem:[%s2051 + $0x8] sm:$0xff]
        %v2054 = vmul.f32 %v2046, 2.0
        %v2055 = vmul.f32 %v2049, 2.0
        %2057 = vset.pattern.permute.xlu0 0
        %2058 = vperm.xlu0 %2057, %v2052
        %v2059 = vpop.permute.xlu0 %2058
        %2062 = vset.pattern.permute.xlu0 0
        %2063 = vperm.xlu0 %2062, %v2053
        %v2064 = vpop.permute.xlu0 %2063
        %v2066 = vsub.f32 %v2059, %v2054
        %v2067 = vsub.f32 %v2064, %v2055
        %v2068 = vsel %vm929, %v2066, inf
        %v2069 = vsel %vm929, %v2067, inf
        %v2070 = vmin.f32 %v2068, %v2069
        %v2071 = vrot.slane %v2070, 4
        %v2072 = vmin.f32 %v2070, %v2071
        %v2073 = vrot.slane %v2072, 2
        %v2074 = vmin.f32 %v2072, %v2073
        %v2075 = vrot.slane %v2074, 1
        %v2076 = vmin.f32 %v2074, %v2075
        %vm2077 = vcmp.le.f32.partialorder %v2066, %v2076
        %vm2078 = vcmp.le.f32.partialorder %v2067, %v2076
        %v2079 = vsel %vm2077, %v1086, 16
        %v2080 = vsel %vm2078, %v1087, 16
        %v2081 = vsel %vm929, %v2079, 2147483647
        %v2082 = vsel %vm929, %v2080, 2147483647
        %vm2083 = vcmp.lt.s32.totalorder %v2081, %v2082
        %v2084 = vsel %vm2083, %v2081, %v2082
        %v2085 = vrot.slane %v2084, 4
        %vm2086 = vcmp.lt.s32.totalorder %v2084, %v2085
        %v2087 = vsel %vm2086, %v2084, %v2085
        %v2088 = vrot.slane %v2087, 2
        %vm2089 = vcmp.lt.s32.totalorder %v2087, %v2088
        %v2090 = vsel %vm2089, %v2087, %v2088
        %v2091 = vrot.slane %v2090, 1
        %vm2092 = vcmp.lt.s32.totalorder %v2090, %v2091
        %v2093 = vsel %vm2092, %v2090, %v2091
        %vm2094 = vcmp.lt.s32.totalorder %v2093, 15
        %v2095 = vsel %vm2094, %v2093, 15
        %vm2096 = vcmp.eq.s32.totalorder %v1086, %v2095
        %vm2097 = vcmp.eq.s32.totalorder %v1087, %v2095
        %v2098 = vsel %vm2096, 1, 0
        %v2099 = vsel %vm2097, 1, 0
        %v2100 = vcvt.s32.f32 %v2098
        %v2101 = vcvt.s32.f32 %v2099
        %s2102 = scalar_lea.vmem %s10, 64
        %v2103 = vld [vmem:[%s2102] sm:$0xff]
        %v2104 = vld [vmem:[%s2102 + $0x8] sm:$0xff]
        %v2105 = vld [vmem:[%s2102 + $0x10] sm:$0xff]
        %v2106 = vld [vmem:[%s2102 + $0x18] sm:$0xff]
        %v2108 = vsel %vm929, %v2103, 0
        %v2111 = vsel %vm929, %v2104, 0
        %v2114 = vsel %vm929, %v2105, 0
        %v2117 = vsel %vm929, %v2106, 0
        %2119 = vmatpush.msra.mxu0 0.0
        %2120 = vmatpush.msra.mxu0 0.0
        %2121 = vmatpush.msra.mxu0 0.0
        %2122 = vmatpush.msra.mxu0 0.0
        %2123 = vmatpush.msra.mxu0 0.0
        %2124 = vmatpush.msra.mxu0 0.0
        %2125 = vmatpush.msra.mxu0 0.0
        %2126 = vmatpush.msra.mxu0 0.0
        %2127 = vmatpush.msra.mxu0 0.0
        %2128 = vmatpush.msra.mxu0 0.0
        %2129 = vmatpush.msra.mxu0 0.0
        %2130 = vmatpush.msra.mxu0 0.0
        %2131 = vmatpush.msra.mxu0 0.0
        %2132 = vmatpush.msra.mxu0 0.0
        %2133 = vmatpush.msra.mxu0 %v2101
        %2134 = vmatpush.msra.mxu0 %v2100
        %2135 = vmatmul.f32.gmra.mxu0 %v2108
        %v2136 = vpop.f32.mrf.mxu0
        %v2137 = vadd.f32 0.0, %v2136
        %2138 = vmatmul.f32.gmra.mxu0 %v2111
        %v2139 = vpop.f32.mrf.mxu0
        %v2140 = vadd.f32 0.0, %v2139
        %2141 = vmatmul.f32.gmra.mxu0 %v2114
        %v2142 = vpop.f32.mrf.mxu0
        %v2143 = vadd.f32 0.0, %v2142
        %2144 = vmatmul.f32.gmra.mxu0 %v2117
        %v2145 = vpop.f32.mrf.mxu0
        %v2146 = vadd.f32 0.0, %v2145
        %2147 = vdwg.mxu0
        %v2148 = vsub.f32 %v2011, %v2137
        %v2149 = vsub.f32 %v2012, %v2140
        %v2150 = vsub.f32 %v2013, %v2143
        %v2151 = vsub.f32 %v2014, %v2146
        %v2152 = vadd.f32 %v2015, %v2137
        %v2153 = vadd.f32 %v2016, %v2140
        %v2154 = vadd.f32 %v2017, %v2143
        %v2155 = vadd.f32 %v2018, %v2146
        %s2156 = scalar_lea.vmem %s9, 48
        %v2157 = vld [vmem:[%s2156] sm:$0xff]
        %v2158 = vld [vmem:[%s2156 + $0x8] sm:$0xff]
        %v2160 = vsel %vm1287, %v2157, 0
        %v2163 = vsel %vm1287, %v2158, 0
        %2165 = vmatpush.msra.mxu0 0.0
        %2166 = vmatpush.msra.mxu0 0.0
        %2167 = vmatpush.msra.mxu0 0.0
        %2168 = vmatpush.msra.mxu0 0.0
        %2169 = vmatpush.msra.mxu0 0.0
        %2170 = vmatpush.msra.mxu0 0.0
        %2171 = vmatpush.msra.mxu0 0.0
        %2172 = vmatpush.msra.mxu0 0.0
        %2173 = vmatpush.msra.mxu0 0.0
        %2174 = vmatpush.msra.mxu0 0.0
        %2175 = vmatpush.msra.mxu0 0.0
        %2176 = vmatpush.msra.mxu0 0.0
        %2177 = vmatpush.msra.mxu0 %v2151
        %2178 = vmatpush.msra.mxu0 %v2150
        %2179 = vmatpush.msra.mxu0 %v2149
        %2180 = vmatpush.msra.mxu0 %v2148
        %2181 = vmatmul.f32.gmra.mxu0 %v2160
        %v2182 = vpop.f32.mrf.mxu0
        %v2183 = vadd.f32 0.0, %v2182
        %2184 = vmatmul.f32.gmra.mxu0 %v2163
        %v2185 = vpop.f32.mrf.mxu0
        %v2186 = vadd.f32 0.0, %v2185
        %2187 = vdwg.mxu0
        %s2188 = scalar_lea.vmem %s11, 48
        %v2189 = vld [vmem:[%s2188] sm:$0xff]
        %v2190 = vld [vmem:[%s2188 + $0x8] sm:$0xff]
        %v2191 = vmul.f32 %v2183, 2.0
        %v2192 = vmul.f32 %v2186, 2.0
        %2194 = vset.pattern.permute.xlu0 0
        %2195 = vperm.xlu0 %2194, %v2189
        %v2196 = vpop.permute.xlu0 %2195
        %2199 = vset.pattern.permute.xlu0 0
        %2200 = vperm.xlu0 %2199, %v2190
        %v2201 = vpop.permute.xlu0 %2200
        %v2203 = vsub.f32 %v2196, %v2191
        %v2204 = vsub.f32 %v2201, %v2192
        %v2205 = vsel %vm929, %v2203, inf
        %v2206 = vsel %vm929, %v2204, inf
        %v2207 = vmin.f32 %v2205, %v2206
        %v2208 = vrot.slane %v2207, 4
        %v2209 = vmin.f32 %v2207, %v2208
        %v2210 = vrot.slane %v2209, 2
        %v2211 = vmin.f32 %v2209, %v2210
        %v2212 = vrot.slane %v2211, 1
        %v2213 = vmin.f32 %v2211, %v2212
        %vm2214 = vcmp.le.f32.partialorder %v2203, %v2213
        %vm2215 = vcmp.le.f32.partialorder %v2204, %v2213
        %v2216 = vsel %vm2214, %v1086, 16
        %v2217 = vsel %vm2215, %v1087, 16
        %v2218 = vsel %vm929, %v2216, 2147483647
        %v2219 = vsel %vm929, %v2217, 2147483647
        %vm2220 = vcmp.lt.s32.totalorder %v2218, %v2219
        %v2221 = vsel %vm2220, %v2218, %v2219
        %v2222 = vrot.slane %v2221, 4
        %vm2223 = vcmp.lt.s32.totalorder %v2221, %v2222
        %v2224 = vsel %vm2223, %v2221, %v2222
        %v2225 = vrot.slane %v2224, 2
        %vm2226 = vcmp.lt.s32.totalorder %v2224, %v2225
        %v2227 = vsel %vm2226, %v2224, %v2225
        %v2228 = vrot.slane %v2227, 1
        %vm2229 = vcmp.lt.s32.totalorder %v2227, %v2228
        %v2230 = vsel %vm2229, %v2227, %v2228
        %vm2231 = vcmp.lt.s32.totalorder %v2230, 15
        %v2232 = vsel %vm2231, %v2230, 15
        %vm2233 = vcmp.eq.s32.totalorder %v1086, %v2232
        %vm2234 = vcmp.eq.s32.totalorder %v1087, %v2232
        %v2235 = vsel %vm2233, 1, 0
        %v2236 = vsel %vm2234, 1, 0
        %v2237 = vcvt.s32.f32 %v2235
        %v2238 = vcvt.s32.f32 %v2236
        %s2239 = scalar_lea.vmem %s10, 96
        %v2240 = vld [vmem:[%s2239] sm:$0xff]
        %v2241 = vld [vmem:[%s2239 + $0x8] sm:$0xff]
        %v2242 = vld [vmem:[%s2239 + $0x10] sm:$0xff]
        %v2243 = vld [vmem:[%s2239 + $0x18] sm:$0xff]
        %v2245 = vsel %vm929, %v2240, 0
        %v2248 = vsel %vm929, %v2241, 0
        %v2251 = vsel %vm929, %v2242, 0
        %v2254 = vsel %vm929, %v2243, 0
        %2256 = vmatpush.msra.mxu0 0.0
        %2257 = vmatpush.msra.mxu0 0.0
        %2258 = vmatpush.msra.mxu0 0.0
        %2259 = vmatpush.msra.mxu0 0.0
        %2260 = vmatpush.msra.mxu0 0.0
        %2261 = vmatpush.msra.mxu0 0.0
        %2262 = vmatpush.msra.mxu0 0.0
        %2263 = vmatpush.msra.mxu0 0.0
        %2264 = vmatpush.msra.mxu0 0.0
        %2265 = vmatpush.msra.mxu0 0.0
        %2266 = vmatpush.msra.mxu0 0.0
        %2267 = vmatpush.msra.mxu0 0.0
        %2268 = vmatpush.msra.mxu0 0.0
        %2269 = vmatpush.msra.mxu0 0.0
        %2270 = vmatpush.msra.mxu0 %v2238
        %2271 = vmatpush.msra.mxu0 %v2237
        %2272 = vmatmul.f32.gmra.mxu0 %v2245
        %v2273 = vpop.f32.mrf.mxu0
        %v2274 = vadd.f32 0.0, %v2273
        %2275 = vmatmul.f32.gmra.mxu0 %v2248
        %v2276 = vpop.f32.mrf.mxu0
        %v2277 = vadd.f32 0.0, %v2276
        %2278 = vmatmul.f32.gmra.mxu0 %v2251
        %v2279 = vpop.f32.mrf.mxu0
        %v2280 = vadd.f32 0.0, %v2279
        %2281 = vmatmul.f32.gmra.mxu0 %v2254
        %v2282 = vpop.f32.mrf.mxu0
        %v2283 = vadd.f32 0.0, %v2282
        %2284 = vdwg.mxu0
        %v2285 = vadd.f32 %v2152, %v2274
        %v2286 = vadd.f32 %v2153, %v2277
        %v2287 = vadd.f32 %v2154, %v2280
        %v2288 = vadd.f32 %v2155, %v2283
        %vm2289 = vcmask 1040384
        %v2290 = vsel %vm2289, %v1822, %v1958
        %vm2291 = vcmask 1041408
        %v2292 = vsel %vm2291, %v2290, %v2095
        %vm2293 = vcmask 1042432
        %v2294 = vsel %vm2293, %v2292, %v2232
        %2299 = vrot.lane.b32.xlu0 %v2285, 2
        %v2300 = vpop.permute.xlu0 %2299
        %2301 = vrot.lane.b32.xlu0 %v2286, 2
        %v2302 = vpop.permute.xlu0 %2301
        %2303 = vrot.lane.b32.xlu0 %v2287, 2
        %v2304 = vpop.permute.xlu0 %2303
        %2305 = vrot.lane.b32.xlu0 %v2288, 2
        %v2306 = vpop.permute.xlu0 %2305
        %v2311 = vsel %vm897, 0.0, %v2300
        %v2312 = vsel %vm897, 0.0, %v2302
        %v2313 = vsel %vm897, 0.0, %v2304
        %v2314 = vsel %vm897, 0.0, %v2306
        %v2315 = vpack.c.bf16 %v2311, %v2311
        %v2316 = vpack.c.bf16 %v2312, %v2312
        %v2317 = vpack.c.bf16 %v2313, %v2313
        %v2318 = vpack.c.bf16 %v2314, %v2314
        %v2319 = vld [vmem:[%s12] sm:$0xf]
        %v2320 = vld [vmem:[%s12 + $0x4] sm:$0xf]
        %v2321 = vld [vmem:[%s12 + $0x8] sm:$0xf]
        %v2322 = vld [vmem:[%s12 + $0xc] sm:$0xf]
        %s2323 = scalar_lea.vmem %s12, 16
        %v2324 = vld [vmem:[%s2323] sm:$0xf]
        %v2325 = vld [vmem:[%s2323 + $0x4] sm:$0xf]
        %v2326 = vld [vmem:[%s2323 + $0x8] sm:$0xf]
        %v2327 = vld [vmem:[%s2323 + $0xc] sm:$0xf]
        %v2332 = vunpack.c.l.b16 %v2324
        %v2333 = vunpack.c.l.b16 %v2325
        %v2334 = vunpack.c.l.b16 %v2326
        %v2335 = vunpack.c.l.b16 %v2327
        %v2336 = vpack.c.b16 %v2333, %v2332
        %v2337 = vpack.c.b16 %v2335, %v2334
        %v2342 = vunpack.c.l.b16 %v2315
        %v2343 = vunpack.c.l.b16 %v2316
        %v2344 = vunpack.c.l.b16 %v2317
        %v2345 = vunpack.c.l.b16 %v2318
        %v2346 = vpack.c.b16 %v2343, %v2342
        %v2347 = vpack.c.b16 %v2345, %v2344
        %2348 = vrot.lane.b32.xlu0 %v2346, 127
        %v2349 = vpop.permute.xlu0 %2348
        %2350 = vrot.lane.b32.xlu0 %v2347, 127
        %v2351 = vpop.permute.xlu0 %2350
        %v2355 = vsel %vm1287, %v2336, 0
        %v2358 = vsel %vm1287, %v2337, 0
        %2360 = vmatpush.bf16.msra.mxu0 0
        %2361 = vmatpush.bf16.msra.mxu0 0
        %2362 = vmatpush.bf16.msra.mxu0 0
        %2363 = vmatpush.bf16.msra.mxu0 0
        %2364 = vmatpush.bf16.msra.mxu0 0
        %2365 = vmatpush.bf16.msra.mxu0 0
        %2366 = vmatpush.bf16.msra.mxu0 %v2351
        %2367 = vmatpush.bf16.msra.mxu0 %v2349
        %2368 = vmatmul.bf16.gmra.mxu0 %v2355
        %v2369 = vpop.f32.mrf.mxu0
        %v2370 = vadd.f32 0.0, %v2369
        %v2371 = vpop.f32.mrf.mxu0
        %v2372 = vadd.f32 0.0, %v2371
        %2373 = vmatmul.bf16.gmra.mxu0 %v2358
        %v2374 = vpop.f32.mrf.mxu0
        %v2375 = vadd.f32 0.0, %v2374
        %v2376 = vpop.f32.mrf.mxu0
        %v2377 = vadd.f32 0.0, %v2376
        %2378 = vdwg.mxu0
        %v2383 = vunpack.c.l.b16 %v2319
        %v2384 = vunpack.c.l.b16 %v2320
        %v2385 = vunpack.c.l.b16 %v2321
        %v2386 = vunpack.c.l.b16 %v2322
        %v2387 = vpack.c.b16 %v2384, %v2383
        %v2388 = vpack.c.b16 %v2386, %v2385
        %v2392 = vsel %vm1287, %v2387, 0
        %v2395 = vsel %vm1287, %v2388, 0
        %2397 = vmatpush.bf16.msra.mxu0 0
        %2398 = vmatpush.bf16.msra.mxu0 0
        %2399 = vmatpush.bf16.msra.mxu0 0
        %2400 = vmatpush.bf16.msra.mxu0 0
        %2401 = vmatpush.bf16.msra.mxu0 0
        %2402 = vmatpush.bf16.msra.mxu0 0
        %2403 = vmatpush.bf16.msra.mxu0 %v2347
        %2404 = vmatpush.bf16.msra.mxu0 %v2346
        %2405 = vmatmul.bf16.gmra.mxu0 %v2392
        %v2406 = vpop.f32.mrf.mxu0
        %v2407 = vadd.f32 %v2370, %v2406
        %v2408 = vpop.f32.mrf.mxu0
        %v2409 = vadd.f32 %v2372, %v2408
        %2410 = vmatmul.bf16.gmra.mxu0 %v2395
        %v2411 = vpop.f32.mrf.mxu0
        %v2412 = vadd.f32 %v2375, %v2411
        %v2413 = vpop.f32.mrf.mxu0
        %v2414 = vadd.f32 %v2377, %v2413
        %2415 = vdwg.mxu0
        %s2416 = scalar_lea.vmem %s12, 32
        %v2417 = vld [vmem:[%s2416] sm:$0xf]
        %v2418 = vld [vmem:[%s2416 + $0x4] sm:$0xf]
        %v2419 = vld [vmem:[%s2416 + $0x8] sm:$0xf]
        %v2420 = vld [vmem:[%s2416 + $0xc] sm:$0xf]
        %v2425 = vunpack.c.l.b16 %v2417
        %v2426 = vunpack.c.l.b16 %v2418
        %v2427 = vunpack.c.l.b16 %v2419
        %v2428 = vunpack.c.l.b16 %v2420
        %v2429 = vpack.c.b16 %v2426, %v2425
        %v2430 = vpack.c.b16 %v2428, %v2427
        %2431 = vrot.lane.b32.xlu0 %v2346, 126
        %v2432 = vpop.permute.xlu0 %2431
        %2433 = vrot.lane.b32.xlu0 %v2347, 126
        %v2434 = vpop.permute.xlu0 %2433
        %v2438 = vsel %vm1287, %v2429, 0
        %v2441 = vsel %vm1287, %v2430, 0
        %2443 = vmatpush.bf16.msra.mxu0 0
        %2444 = vmatpush.bf16.msra.mxu0 0
        %2445 = vmatpush.bf16.msra.mxu0 0
        %2446 = vmatpush.bf16.msra.mxu0 0
        %2447 = vmatpush.bf16.msra.mxu0 0
        %2448 = vmatpush.bf16.msra.mxu0 0
        %2449 = vmatpush.bf16.msra.mxu0 %v2434
        %2450 = vmatpush.bf16.msra.mxu0 %v2432
        %2451 = vmatmul.bf16.gmra.mxu0 %v2438
        %v2452 = vpop.f32.mrf.mxu0
        %v2453 = vadd.f32 0.0, %v2452
        %v2454 = vpop.f32.mrf.mxu0
        %v2455 = vadd.f32 0.0, %v2454
        %2456 = vmatmul.bf16.gmra.mxu0 %v2441
        %v2457 = vpop.f32.mrf.mxu0
        %v2458 = vadd.f32 0.0, %v2457
        %v2459 = vpop.f32.mrf.mxu0
        %v2460 = vadd.f32 0.0, %v2459
        %2461 = vdwg.mxu0
        %v2462 = vadd.f32 %v2407, %v2453
        %v2463 = vadd.f32 %v2409, %v2455
        %v2464 = vadd.f32 %v2412, %v2458
        %v2465 = vadd.f32 %v2414, %v2460
        %v2466 = vld [vmem:[%s13] sm:$0xff]
        %v2467 = vld [vmem:[%s13 + $0x8] sm:$0xff]
        %v2468 = vld [vmem:[%s13 + $0x10] sm:$0xff]
        %v2469 = vld [vmem:[%s13 + $0x18] sm:$0xff]
        %2471 = vset.pattern.permute.xlu0 0
        %2472 = vperm.xlu0 %2471, %v2466
        %v2473 = vpop.permute.xlu0 %2472
        %2476 = vset.pattern.permute.xlu0 0
        %2477 = vperm.xlu0 %2476, %v2467
        %v2478 = vpop.permute.xlu0 %2477
        %2481 = vset.pattern.permute.xlu0 0
        %2482 = vperm.xlu0 %2481, %v2468
        %v2483 = vpop.permute.xlu0 %2482
        %2486 = vset.pattern.permute.xlu0 0
        %2487 = vperm.xlu0 %2486, %v2469
        %v2488 = vpop.permute.xlu0 %2487
        %v2490 = vadd.f32 %v2462, %v2473
        %v2491 = vadd.f32 %v2463, %v2478
        %v2492 = vadd.f32 %v2464, %v2483
        %v2493 = vadd.f32 %v2465, %v2488
        %v2494 = vmul.f32 %v2490, 1.442695
        %v2495 = vpow.pop %v2494
        %v2496 = vmul.f32 %v2491, 1.442695
        %v2497 = vpow.pop %v2496
        %v2498 = vmul.f32 %v2492, 1.442695
        %v2499 = vpow.pop %v2498
        %v2500 = vmul.f32 %v2493, 1.442695
        %v2501 = vpow.pop %v2500
        %v2502 = vsub.f32 %v2495, 1.0
        %v2503 = vsub.f32 %v2497, 1.0
        %v2504 = vsub.f32 %v2499, 1.0
        %v2505 = vsub.f32 %v2501, 1.0
        %vm2506 = vcmp.gt.f32.partialorder %v2490, 0.0
        %vm2507 = vcmp.gt.f32.partialorder %v2491, 0.0
        %vm2508 = vcmp.gt.f32.partialorder %v2492, 0.0
        %vm2509 = vcmp.gt.f32.partialorder %v2493, 0.0
        %v2510 = vand.u32 2147483647, %v2490
        %v2511 = vand.u32 2147483647, %v2491
        %v2512 = vand.u32 2147483647, %v2492
        %v2513 = vand.u32 2147483647, %v2493
        %vm2514 = vcmp.lt.f32.partialorder %v2510, 0.0001
        %vm2515 = vcmp.lt.f32.partialorder %v2511, 0.0001
        %vm2516 = vcmp.lt.f32.partialorder %v2512, 0.0001
        %vm2517 = vcmp.lt.f32.partialorder %v2513, 0.0001
        %v2518 = vmul.f32 %v2490, 0.5
        %v2519 = vmul.f32 %v2491, 0.5
        %v2520 = vmul.f32 %v2492, 0.5
        %v2521 = vmul.f32 %v2493, 0.5
        %v2522 = vmul.f32 %v2518, %v2490
        %v2523 = vmul.f32 %v2519, %v2491
        %v2524 = vmul.f32 %v2520, %v2492
        %v2525 = vmul.f32 %v2521, %v2493
        %v2526 = vadd.f32 %v2490, %v2522
        %v2527 = vadd.f32 %v2491, %v2523
        %v2528 = vadd.f32 %v2492, %v2524
        %v2529 = vadd.f32 %v2493, %v2525
        %v2530 = vsel %vm2514, %v2526, %v2502
        %v2531 = vsel %vm2515, %v2527, %v2503
        %v2532 = vsel %vm2516, %v2528, %v2504
        %v2533 = vsel %vm2517, %v2529, %v2505
        %v2534 = vsel %vm2506, %v2490, %v2530
        %v2535 = vsel %vm2507, %v2491, %v2531
        %v2536 = vsel %vm2508, %v2492, %v2532
        %v2537 = vsel %vm2509, %v2493, %v2533
        %2542 = vrot.lane.b32.xlu0 %v2534, 1
        %v2543 = vpop.permute.xlu0 %2542
        %2544 = vrot.lane.b32.xlu0 %v2535, 1
        %v2545 = vpop.permute.xlu0 %2544
        %2546 = vrot.lane.b32.xlu0 %v2536, 1
        %v2547 = vpop.permute.xlu0 %2546
        %2548 = vrot.lane.b32.xlu0 %v2537, 1
        %v2549 = vpop.permute.xlu0 %2548
        %vm2554 = vcmask 7168
        %v2555 = vsel %vm2554, 0.0, %v2543
        %v2556 = vsel %vm2554, 0.0, %v2545
        %v2557 = vsel %vm2554, 0.0, %v2547
        %v2558 = vsel %vm2554, 0.0, %v2549
        %v2559 = vpack.c.bf16 %v2555, %v2555
        %v2560 = vpack.c.bf16 %v2556, %v2556
        %v2561 = vpack.c.bf16 %v2557, %v2557
        %v2562 = vpack.c.bf16 %v2558, %v2558
        %v2563 = vld [vmem:[%s14] sm:$0xf]
        %v2564 = vld [vmem:[%s14 + $0x4] sm:$0xf]
        %s2565 = scalar_lea.vmem %s14, 16
        %v2566 = vld [vmem:[%s2565] sm:$0xf]
        %v2567 = vld [vmem:[%s2565 + $0x4] sm:$0xf]
        %v2570 = vunpack.c.l.b16 %v2566
        %v2571 = vunpack.c.l.b16 %v2567
        %v2572 = vpack.c.b16 %v2571, %v2570
        %v2577 = vunpack.c.l.b16 %v2559
        %v2578 = vunpack.c.l.b16 %v2560
        %v2579 = vunpack.c.l.b16 %v2561
        %v2580 = vunpack.c.l.b16 %v2562
        %v2581 = vpack.c.b16 %v2578, %v2577
        %v2582 = vpack.c.b16 %v2580, %v2579
        %v2586 = vsel %vm1287, %v2572, 0
        %2588 = vmatpush.bf16.msra.mxu0 0
        %2589 = vmatpush.bf16.msra.mxu0 0
        %2590 = vmatpush.bf16.msra.mxu0 0
        %2591 = vmatpush.bf16.msra.mxu0 0
        %2592 = vmatpush.bf16.msra.mxu0 0
        %2593 = vmatpush.bf16.msra.mxu0 0
        %2594 = vmatpush.bf16.msra.mxu0 %v2582
        %2595 = vmatpush.bf16.msra.mxu0 %v2581
        %2596 = vmatmul.bf16.gmra.mxu0 %v2586
        %v2597 = vpop.f32.mrf.mxu0
        %v2598 = vadd.f32 0.0, %v2597
        %v2599 = vpop.f32.mrf.mxu0
        %v2600 = vadd.f32 0.0, %v2599
        %2601 = vdwg.mxu0
        %v2604 = vunpack.c.l.b16 %v2563
        %v2605 = vunpack.c.l.b16 %v2564
        %v2606 = vpack.c.b16 %v2605, %v2604
        %2607 = vrot.lane.b32.xlu0 %v2581, 127
        %v2608 = vpop.permute.xlu0 %2607
        %2609 = vrot.lane.b32.xlu0 %v2582, 127
        %v2610 = vpop.permute.xlu0 %2609
        %v2614 = vsel %vm1287, %v2606, 0
        %2616 = vmatpush.bf16.msra.mxu0 0
        %2617 = vmatpush.bf16.msra.mxu0 0
        %2618 = vmatpush.bf16.msra.mxu0 0
        %2619 = vmatpush.bf16.msra.mxu0 0
        %2620 = vmatpush.bf16.msra.mxu0 0
        %2621 = vmatpush.bf16.msra.mxu0 0
        %2622 = vmatpush.bf16.msra.mxu0 %v2610
        %2623 = vmatpush.bf16.msra.mxu0 %v2608
        %2624 = vmatmul.bf16.gmra.mxu0 %v2614
        %v2625 = vpop.f32.mrf.mxu0
        %v2626 = vadd.f32 %v2598, %v2625
        %v2627 = vpop.f32.mrf.mxu0
        %v2628 = vadd.f32 %v2600, %v2627
        %2629 = vdwg.mxu0
        %s2630 = scalar_lea.vmem %s14, 8
        %v2631 = vld [vmem:[%s2630] sm:$0xf]
        %v2632 = vld [vmem:[%s2630 + $0x4] sm:$0xf]
        %s2633 = scalar_lea.vmem %s14, 24
        %v2634 = vld [vmem:[%s2633] sm:$0xf]
        %v2635 = vld [vmem:[%s2633 + $0x4] sm:$0xf]
        %v2638 = vunpack.c.l.b16 %v2634
        %v2639 = vunpack.c.l.b16 %v2635
        %v2640 = vpack.c.b16 %v2639, %v2638
        %v2642 = vsel %vm1287, %v2640, 0
        %2644 = vmatpush.bf16.msra.mxu0 0
        %2645 = vmatpush.bf16.msra.mxu0 0
        %2646 = vmatpush.bf16.msra.mxu0 0
        %2647 = vmatpush.bf16.msra.mxu0 0
        %2648 = vmatpush.bf16.msra.mxu0 0
        %2649 = vmatpush.bf16.msra.mxu0 0
        %2650 = vmatpush.bf16.msra.mxu0 %v2582
        %2651 = vmatpush.bf16.msra.mxu0 %v2581
        %2652 = vmatmul.bf16.gmra.mxu0 %v2642
        %v2653 = vpop.f32.mrf.mxu0
        %v2654 = vadd.f32 0.0, %v2653
        %v2655 = vpop.f32.mrf.mxu0
        %v2656 = vadd.f32 0.0, %v2655
        %2657 = vdwg.mxu0
        %v2660 = vunpack.c.l.b16 %v2631
        %v2661 = vunpack.c.l.b16 %v2632
        %v2662 = vpack.c.b16 %v2661, %v2660
        %v2664 = vsel %vm1287, %v2662, 0
        %2666 = vmatpush.bf16.msra.mxu0 0
        %2667 = vmatpush.bf16.msra.mxu0 0
        %2668 = vmatpush.bf16.msra.mxu0 0
        %2669 = vmatpush.bf16.msra.mxu0 0
        %2670 = vmatpush.bf16.msra.mxu0 0
        %2671 = vmatpush.bf16.msra.mxu0 0
        %2672 = vmatpush.bf16.msra.mxu0 %v2610
        %2673 = vmatpush.bf16.msra.mxu0 %v2608
        %2674 = vmatmul.bf16.gmra.mxu0 %v2664
        %v2675 = vpop.f32.mrf.mxu0
        %v2676 = vadd.f32 %v2654, %v2675
        %v2677 = vpop.f32.mrf.mxu0
        %v2678 = vadd.f32 %v2656, %v2677
        %2679 = vdwg.mxu0
        %v2680 = vmul.u32 %v1086, 2
        %v2681 = vmul.u32 %v1087, 2
        %vm2682 = vcmp.eq.s32.totalorder %v1095, %v2680
        %vm2683 = vcmp.eq.s32.totalorder %v1095, %v2681
        %v2684 = vsel %vm2682, 1, 0
        %v2685 = vsel %vm2683, 1, 0
        %v2686 = vcvt.s32.f32 %v2684
        %v2687 = vcvt.s32.f32 %v2685
        %v2688 = vpack.c.bf16 %v2687, %v2686
        %v2689 = vadd.s32 %v2680, 1
        %v2690 = vadd.s32 %v2681, 1
        %vm2691 = vcmp.eq.s32.totalorder %v1095, %v2689
        %vm2692 = vcmp.eq.s32.totalorder %v1095, %v2690
        %v2693 = vsel %vm2691, 1, 0
        %v2694 = vsel %vm2692, 1, 0
        %v2695 = vcvt.s32.f32 %v2693
        %v2696 = vcvt.s32.f32 %v2694
        %v2697 = vpack.c.bf16 %v2696, %v2695
        %v2698 = vpack.c.bf16 %v2628, %v2626
        %v2699 = vpack.c.bf16 %v2678, %v2676
        %v2701 = vsel %vm929, %v2699, 0
        %2703 = vmatpush.bf16.msra.mxu0 0
        %2704 = vmatpush.bf16.msra.mxu0 0
        %2705 = vmatpush.bf16.msra.mxu0 0
        %2706 = vmatpush.bf16.msra.mxu0 0
        %2707 = vmatpush.bf16.msra.mxu0 0
        %2708 = vmatpush.bf16.msra.mxu0 0
        %2709 = vmatpush.bf16.msra.mxu0 0
        %2710 = vmatpush.bf16.msra.mxu0 %v2697
        %2711 = vmatmul.bf16.gmra.mxu0 %v2701
        %v2712 = vpop.f32.mrf.mxu0
        %v2713 = vadd.f32 0.0, %v2712
        %v2714 = vpop.f32.mrf.mxu0
        %v2715 = vadd.f32 0.0, %v2714
        %2716 = vdwg.mxu0
        %v2718 = vsel %vm929, %v2698, 0
        %2720 = vmatpush.bf16.msra.mxu0 0
        %2721 = vmatpush.bf16.msra.mxu0 0
        %2722 = vmatpush.bf16.msra.mxu0 0
        %2723 = vmatpush.bf16.msra.mxu0 0
        %2724 = vmatpush.bf16.msra.mxu0 0
        %2725 = vmatpush.bf16.msra.mxu0 0
        %2726 = vmatpush.bf16.msra.mxu0 0
        %2727 = vmatpush.bf16.msra.mxu0 %v2688
        %2728 = vmatmul.bf16.gmra.mxu0 %v2718
        %v2729 = vpop.f32.mrf.mxu0
        %v2730 = vadd.f32 %v2713, %v2729
        %v2731 = vpop.f32.mrf.mxu0
        %v2732 = vadd.f32 %v2715, %v2731
        %2733 = vdwg.mxu0
        %v2734 = vld [vmem:[%s15] sm:$0xff]
        %v2735 = vld [vmem:[%s15 + $0x8] sm:$0xff]
        %2737 = vset.pattern.permute.xlu0 0
        %2738 = vperm.xlu0 %2737, %v2734
        %v2739 = vpop.permute.xlu0 %2738
        %2742 = vset.pattern.permute.xlu0 0
        %2743 = vperm.xlu0 %2742, %v2735
        %v2744 = vpop.permute.xlu0 %2743
        %v2746 = vadd.f32 %v2730, %v2739
        %v2747 = vadd.f32 %v2732, %v2744
        %v2748 = vmul.f32 %v2746, 1.442695
        %v2749 = vpow.pop %v2748
        %v2750 = vmul.f32 %v2747, 1.442695
        %v2751 = vpow.pop %v2750
        %v2752 = vsub.f32 %v2749, 1.0
        %v2753 = vsub.f32 %v2751, 1.0
        %vm2754 = vcmp.gt.f32.partialorder %v2746, 0.0
        %vm2755 = vcmp.gt.f32.partialorder %v2747, 0.0
        %v2756 = vand.u32 2147483647, %v2746
        %v2757 = vand.u32 2147483647, %v2747
        %vm2758 = vcmp.lt.f32.partialorder %v2756, 0.0001
        %vm2759 = vcmp.lt.f32.partialorder %v2757, 0.0001
        %v2760 = vmul.f32 %v2746, 0.5
        %v2761 = vmul.f32 %v2747, 0.5
        %v2762 = vmul.f32 %v2760, %v2746
        %v2763 = vmul.f32 %v2761, %v2747
        %v2764 = vadd.f32 %v2746, %v2762
        %v2765 = vadd.f32 %v2747, %v2763
        %v2766 = vsel %vm2758, %v2764, %v2752
        %v2767 = vsel %vm2759, %v2765, %v2753
        %v2768 = vsel %vm2754, %v2746, %v2766
        %v2769 = vsel %vm2755, %v2747, %v2767
        %2772 = vrot.lane.b32.xlu0 %v2768, 1
        %v2773 = vpop.permute.xlu0 %2772
        %2774 = vrot.lane.b32.xlu0 %v2769, 1
        %v2775 = vpop.permute.xlu0 %2774
        %v2778 = vsel %vm2554, 0.0, %v2773
        %v2779 = vsel %vm2554, 0.0, %v2775
        %v2780 = vpack.c.bf16 %v2778, %v2778
        %v2781 = vpack.c.bf16 %v2779, %v2779
        %v2782 = vld [vmem:[%s16] sm:$0xf]
        %v2783 = vld [vmem:[%s16 + $0x4] sm:$0xf]
        %s2784 = scalar_lea.vmem %s16, 16
        %v2785 = vld [vmem:[%s2784] sm:$0xf]
        %v2786 = vld [vmem:[%s2784 + $0x4] sm:$0xf]
        %v2789 = vunpack.c.l.b16 %v2785
        %v2790 = vunpack.c.l.b16 %v2786
        %v2791 = vpack.c.b16 %v2790, %v2789
        %v2794 = vunpack.c.l.b16 %v2780
        %v2795 = vunpack.c.l.b16 %v2781
        %v2796 = vpack.c.b16 %v2795, %v2794
        %v2799 = vsel %vm929, %v2791, 0
        %2801 = vmatpush.bf16.msra.mxu0 0
        %2802 = vmatpush.bf16.msra.mxu0 0
        %2803 = vmatpush.bf16.msra.mxu0 0
        %2804 = vmatpush.bf16.msra.mxu0 0
        %2805 = vmatpush.bf16.msra.mxu0 0
        %2806 = vmatpush.bf16.msra.mxu0 0
        %2807 = vmatpush.bf16.msra.mxu0 0
        %2808 = vmatpush.bf16.msra.mxu0 %v2796
        %2809 = vmatmul.bf16.gmra.mxu0 %v2799
        %v2810 = vpop.f32.mrf.mxu0
        %v2811 = vadd.f32 0.0, %v2810
        %v2812 = vpop.f32.mrf.mxu0
        %v2813 = vadd.f32 0.0, %v2812
        %2814 = vdwg.mxu0
        %v2817 = vunpack.c.l.b16 %v2782
        %v2818 = vunpack.c.l.b16 %v2783
        %v2819 = vpack.c.b16 %v2818, %v2817
        %2820 = vrot.lane.b32.xlu0 %v2796, 127
        %v2821 = vpop.permute.xlu0 %2820
        %v2824 = vsel %vm929, %v2819, 0
        %2826 = vmatpush.bf16.msra.mxu0 0
        %2827 = vmatpush.bf16.msra.mxu0 0
        %2828 = vmatpush.bf16.msra.mxu0 0
        %2829 = vmatpush.bf16.msra.mxu0 0
        %2830 = vmatpush.bf16.msra.mxu0 0
        %2831 = vmatpush.bf16.msra.mxu0 0
        %2832 = vmatpush.bf16.msra.mxu0 0
        %2833 = vmatpush.bf16.msra.mxu0 %v2821
        %2834 = vmatmul.bf16.gmra.mxu0 %v2824
        %v2835 = vpop.f32.mrf.mxu0
        %v2836 = vadd.f32 %v2811, %v2835
        %v2837 = vpop.f32.mrf.mxu0
        %v2838 = vadd.f32 %v2813, %v2837
        %2839 = vdwg.mxu0
        %s2840 = scalar_lea.vmem %s16, 8
        %v2841 = vld [vmem:[%s2840] sm:$0xf]
        %v2842 = vld [vmem:[%s2840 + $0x4] sm:$0xf]
        %s2843 = scalar_lea.vmem %s16, 24
        %v2844 = vld [vmem:[%s2843] sm:$0xf]
        %v2845 = vld [vmem:[%s2843 + $0x4] sm:$0xf]
        %v2848 = vunpack.c.l.b16 %v2844
        %v2849 = vunpack.c.l.b16 %v2845
        %v2850 = vpack.c.b16 %v2849, %v2848
        %v2852 = vsel %vm929, %v2850, 0
        %2854 = vmatpush.bf16.msra.mxu0 0
        %2855 = vmatpush.bf16.msra.mxu0 0
        %2856 = vmatpush.bf16.msra.mxu0 0
        %2857 = vmatpush.bf16.msra.mxu0 0
        %2858 = vmatpush.bf16.msra.mxu0 0
        %2859 = vmatpush.bf16.msra.mxu0 0
        %2860 = vmatpush.bf16.msra.mxu0 0
        %2861 = vmatpush.bf16.msra.mxu0 %v2796
        %2862 = vmatmul.bf16.gmra.mxu0 %v2852
        %v2863 = vpop.f32.mrf.mxu0
        %v2864 = vadd.f32 0.0, %v2863
        %v2865 = vpop.f32.mrf.mxu0
        %v2866 = vadd.f32 0.0, %v2865
        %2867 = vdwg.mxu0
        %v2870 = vunpack.c.l.b16 %v2841
        %v2871 = vunpack.c.l.b16 %v2842
        %v2872 = vpack.c.b16 %v2871, %v2870
        %v2874 = vsel %vm929, %v2872, 0
        %2876 = vmatpush.bf16.msra.mxu0 0
        %2877 = vmatpush.bf16.msra.mxu0 0
        %2878 = vmatpush.bf16.msra.mxu0 0
        %2879 = vmatpush.bf16.msra.mxu0 0
        %2880 = vmatpush.bf16.msra.mxu0 0
        %2881 = vmatpush.bf16.msra.mxu0 0
        %2882 = vmatpush.bf16.msra.mxu0 0
        %2883 = vmatpush.bf16.msra.mxu0 %v2821
        %2884 = vmatmul.bf16.gmra.mxu0 %v2874
        %v2885 = vpop.f32.mrf.mxu0
        %v2886 = vadd.f32 %v2864, %v2885
        %v2887 = vpop.f32.mrf.mxu0
        %v2888 = vadd.f32 %v2866, %v2887
        %2889 = vdwg.mxu0
        %v2890 = vmul.u32 %v1088, 2
        %v2891 = vmul.u32 %v1089, 2
        %vm2892 = vcmp.eq.s32.totalorder %v1095, %v2890
        %vm2893 = vcmp.eq.s32.totalorder %v1095, %v2891
        %v2894 = vsel %vm2892, 1, 0
        %v2895 = vsel %vm2893, 1, 0
        %v2896 = vcvt.s32.f32 %v2894
        %v2897 = vcvt.s32.f32 %v2895
        %v2898 = vpack.c.bf16 %v2897, %v2896
        %v2899 = vadd.s32 %v2890, 1
        %v2900 = vadd.s32 %v2891, 1
        %vm2901 = vcmp.eq.s32.totalorder %v1095, %v2899
        %vm2902 = vcmp.eq.s32.totalorder %v1095, %v2900
        %v2903 = vsel %vm2901, 1, 0
        %v2904 = vsel %vm2902, 1, 0
        %v2905 = vcvt.s32.f32 %v2903
        %v2906 = vcvt.s32.f32 %v2904
        %v2907 = vpack.c.bf16 %v2906, %v2905
        %v2908 = vpack.c.bf16 %v2838, %v2836
        %v2909 = vpack.c.bf16 %v2888, %v2886
        %v2911 = vsel %vm1287, %v2909, 0
        %2913 = vmatpush.bf16.msra.mxu0 0
        %2914 = vmatpush.bf16.msra.mxu0 0
        %2915 = vmatpush.bf16.msra.mxu0 0
        %2916 = vmatpush.bf16.msra.mxu0 0
        %2917 = vmatpush.bf16.msra.mxu0 0
        %2918 = vmatpush.bf16.msra.mxu0 0
        %2919 = vmatpush.bf16.msra.mxu0 %v2907
        %2920 = vmatpush.bf16.msra.mxu0 %v2697
        %2921 = vmatmul.bf16.gmra.mxu0 %v2911
        %v2922 = vpop.f32.mrf.mxu0
        %v2923 = vadd.f32 0.0, %v2922
        %v2924 = vpop.f32.mrf.mxu0
        %v2925 = vadd.f32 0.0, %v2924
        %2926 = vdwg.mxu0
        %v2928 = vsel %vm1287, %v2908, 0
        %2930 = vmatpush.bf16.msra.mxu0 0
        %2931 = vmatpush.bf16.msra.mxu0 0
        %2932 = vmatpush.bf16.msra.mxu0 0
        %2933 = vmatpush.bf16.msra.mxu0 0
        %2934 = vmatpush.bf16.msra.mxu0 0
        %2935 = vmatpush.bf16.msra.mxu0 0
        %2936 = vmatpush.bf16.msra.mxu0 %v2898
        %2937 = vmatpush.bf16.msra.mxu0 %v2688
        %2938 = vmatmul.bf16.gmra.mxu0 %v2928
        %v2939 = vpop.f32.mrf.mxu0
        %v2940 = vadd.f32 %v2923, %v2939
        %v2941 = vpop.f32.mrf.mxu0
        %v2942 = vadd.f32 %v2925, %v2941
        %2943 = vdwg.mxu0
        %v2944 = vld [vmem:[%s17] sm:$0xff]
        %v2945 = vld [vmem:[%s17 + $0x8] sm:$0xff]
        %2947 = vset.pattern.permute.xlu0 0
        %2948 = vperm.xlu0 %2947, %v2944
        %v2949 = vpop.permute.xlu0 %2948
        %2952 = vset.pattern.permute.xlu0 0
        %2953 = vperm.xlu0 %2952, %v2945
        %v2954 = vpop.permute.xlu0 %2953
        %v2956 = vadd.f32 %v2940, %v2949
        %v2957 = vadd.f32 %v2942, %v2954
        %v2958 = vmul.f32 %v2956, 1.442695
        %v2959 = vpow.pop %v2958
        %v2960 = vmul.f32 %v2957, 1.442695
        %v2961 = vpow.pop %v2960
        %v2962 = vsub.f32 %v2959, 1.0
        %v2963 = vsub.f32 %v2961, 1.0
        %vm2964 = vcmp.gt.f32.partialorder %v2956, 0.0
        %vm2965 = vcmp.gt.f32.partialorder %v2957, 0.0
        %v2966 = vand.u32 2147483647, %v2956
        %v2967 = vand.u32 2147483647, %v2957
        %vm2968 = vcmp.lt.f32.partialorder %v2966, 0.0001
        %vm2969 = vcmp.lt.f32.partialorder %v2967, 0.0001
        %v2970 = vmul.f32 %v2956, 0.5
        %v2971 = vmul.f32 %v2957, 0.5
        %v2972 = vmul.f32 %v2970, %v2956
        %v2973 = vmul.f32 %v2971, %v2957
        %v2974 = vadd.f32 %v2956, %v2972
        %v2975 = vadd.f32 %v2957, %v2973
        %v2976 = vsel %vm2968, %v2974, %v2962
        %v2977 = vsel %vm2969, %v2975, %v2963
        %v2978 = vsel %vm2964, %v2956, %v2976
        %v2979 = vsel %vm2965, %v2957, %v2977
        %2982 = vrot.lane.b32.xlu0 %v2978, 6
        %v2983 = vpop.permute.xlu0 %2982
        %2984 = vrot.lane.b32.xlu0 %v2979, 6
        %v2985 = vpop.permute.xlu0 %2984
        %v2988 = vsel %vm668, 0.0, %v2983
        %v2989 = vsel %vm668, 0.0, %v2985
        %v2990 = vpack.c.bf16 %v2988, %v2988
        %v2991 = vpack.c.bf16 %v2989, %v2989
        %v2992 = vld [vmem:[%s18] sm:$0x1]
        %s2993 = scalar_lea.vmem %s18, 1
        %v2994 = vld [vmem:[%s2993] sm:$0x1]
        %v2997 = vunpack.c.l.b16 %v2990
        %v2998 = vunpack.c.l.b16 %v2991
        %v2999 = vpack.c.b16 %v2998, %v2997
        %3000 = vrot.lane.b32.xlu0 %v2999, 127
        %v3001 = vpop.permute.xlu0 %3000
        %v3004 = vsel %vm929, %v2994, 0
        %3006 = vmatpush.bf16.msra.mxu0 0
        %3007 = vmatpush.bf16.msra.mxu0 0
        %3008 = vmatpush.bf16.msra.mxu0 0
        %3009 = vmatpush.bf16.msra.mxu0 0
        %3010 = vmatpush.bf16.msra.mxu0 0
        %3011 = vmatpush.bf16.msra.mxu0 0
        %3012 = vmatpush.bf16.msra.mxu0 0
        %3013 = vmatpush.bf16.msra.mxu0 %v3001
        %3014 = vmatmul.bf16.gmra.mxu0 %v3004
        %v3015 = vpop.f32.mrf.mxu0
        %v3016 = vadd.f32 0.0, %v3015
        %v3017 = vpop.f32.mrf.mxu0
        %3018 = vdwg.mxu0
        %v3021 = vsel %vm929, %v2992, 0
        %3023 = vmatpush.bf16.msra.mxu0 0
        %3024 = vmatpush.bf16.msra.mxu0 0
        %3025 = vmatpush.bf16.msra.mxu0 0
        %3026 = vmatpush.bf16.msra.mxu0 0
        %3027 = vmatpush.bf16.msra.mxu0 0
        %3028 = vmatpush.bf16.msra.mxu0 0
        %3029 = vmatpush.bf16.msra.mxu0 0
        %3030 = vmatpush.bf16.msra.mxu0 %v2999
        %3031 = vmatmul.bf16.gmra.mxu0 %v3021
        %v3032 = vpop.f32.mrf.mxu0
        %v3033 = vadd.f32 %v3016, %v3032
        %v3034 = vpop.f32.mrf.mxu0
        %3035 = vdwg.mxu0
        %s3036 = scalar_lea.vmem %s18, 2
        %v3037 = vld [vmem:[%s3036] sm:$0x1]
        %3038 = vrot.lane.b32.xlu0 %v2999, 126
        %v3039 = vpop.permute.xlu0 %3038
        %v3042 = vsel %vm929, %v3037, 0
        %3044 = vmatpush.bf16.msra.mxu0 0
        %3045 = vmatpush.bf16.msra.mxu0 0
        %3046 = vmatpush.bf16.msra.mxu0 0
        %3047 = vmatpush.bf16.msra.mxu0 0
        %3048 = vmatpush.bf16.msra.mxu0 0
        %3049 = vmatpush.bf16.msra.mxu0 0
        %3050 = vmatpush.bf16.msra.mxu0 0
        %3051 = vmatpush.bf16.msra.mxu0 %v3039
        %3052 = vmatmul.bf16.gmra.mxu0 %v3042
        %v3053 = vpop.f32.mrf.mxu0
        %v3054 = vadd.f32 0.0, %v3053
        %v3055 = vpop.f32.mrf.mxu0
        %3056 = vdwg.mxu0
        %v3057 = vadd.f32 %v3033, %v3054
        %s3058 = scalar_lea.vmem %s18, 3
        %v3059 = vld [vmem:[%s3058] sm:$0x1]
        %3060 = vrot.lane.b32.xlu0 %v2999, 125
        %v3061 = vpop.permute.xlu0 %3060
        %v3064 = vsel %vm929, %v3059, 0
        %3066 = vmatpush.bf16.msra.mxu0 0
        %3067 = vmatpush.bf16.msra.mxu0 0
        %3068 = vmatpush.bf16.msra.mxu0 0
        %3069 = vmatpush.bf16.msra.mxu0 0
        %3070 = vmatpush.bf16.msra.mxu0 0
        %3071 = vmatpush.bf16.msra.mxu0 0
        %3072 = vmatpush.bf16.msra.mxu0 0
        %3073 = vmatpush.bf16.msra.mxu0 %v3061
        %3074 = vmatmul.bf16.gmra.mxu0 %v3064
        %v3075 = vpop.f32.mrf.mxu0
        %v3076 = vadd.f32 0.0, %v3075
        %v3077 = vpop.f32.mrf.mxu0
        %3078 = vdwg.mxu0
        %v3079 = vadd.f32 %v3057, %v3076
        %s3080 = scalar_lea.vmem %s18, 4
        %v3081 = vld [vmem:[%s3080] sm:$0x1]
        %3082 = vrot.lane.b32.xlu0 %v2999, 124
        %v3083 = vpop.permute.xlu0 %3082
        %v3086 = vsel %vm929, %v3081, 0
        %3088 = vmatpush.bf16.msra.mxu0 0
        %3089 = vmatpush.bf16.msra.mxu0 0
        %3090 = vmatpush.bf16.msra.mxu0 0
        %3091 = vmatpush.bf16.msra.mxu0 0
        %3092 = vmatpush.bf16.msra.mxu0 0
        %3093 = vmatpush.bf16.msra.mxu0 0
        %3094 = vmatpush.bf16.msra.mxu0 0
        %3095 = vmatpush.bf16.msra.mxu0 %v3083
        %3096 = vmatmul.bf16.gmra.mxu0 %v3086
        %v3097 = vpop.f32.mrf.mxu0
        %v3098 = vadd.f32 0.0, %v3097
        %v3099 = vpop.f32.mrf.mxu0
        %3100 = vdwg.mxu0
        %v3101 = vadd.f32 %v3079, %v3098
        %s3102 = scalar_lea.vmem %s18, 5
        %v3103 = vld [vmem:[%s3102] sm:$0x1]
        %3104 = vrot.lane.b32.xlu0 %v2999, 123
        %v3105 = vpop.permute.xlu0 %3104
        %v3108 = vsel %vm929, %v3103, 0
        %3110 = vmatpush.bf16.msra.mxu0 0
        %3111 = vmatpush.bf16.msra.mxu0 0
        %3112 = vmatpush.bf16.msra.mxu0 0
        %3113 = vmatpush.bf16.msra.mxu0 0
        %3114 = vmatpush.bf16.msra.mxu0 0
        %3115 = vmatpush.bf16.msra.mxu0 0
        %3116 = vmatpush.bf16.msra.mxu0 0
        %3117 = vmatpush.bf16.msra.mxu0 %v3105
        %3118 = vmatmul.bf16.gmra.mxu0 %v3108
        %v3119 = vpop.f32.mrf.mxu0
        %v3120 = vadd.f32 0.0, %v3119
        %v3121 = vpop.f32.mrf.mxu0
        %3122 = vdwg.mxu0
        %v3123 = vadd.f32 %v3101, %v3120
        %s3124 = scalar_lea.vmem %s18, 6
        %v3125 = vld [vmem:[%s3124] sm:$0x1]
        %3126 = vrot.lane.b32.xlu0 %v2999, 122
        %v3127 = vpop.permute.xlu0 %3126
        %v3130 = vsel %vm929, %v3125, 0
        %3132 = vmatpush.bf16.msra.mxu0 0
        %3133 = vmatpush.bf16.msra.mxu0 0
        %3134 = vmatpush.bf16.msra.mxu0 0
        %3135 = vmatpush.bf16.msra.mxu0 0
        %3136 = vmatpush.bf16.msra.mxu0 0
        %3137 = vmatpush.bf16.msra.mxu0 0
        %3138 = vmatpush.bf16.msra.mxu0 0
        %3139 = vmatpush.bf16.msra.mxu0 %v3127
        %3140 = vmatmul.bf16.gmra.mxu0 %v3130
        %v3141 = vpop.f32.mrf.mxu0
        %v3142 = vadd.f32 0.0, %v3141
        %v3143 = vpop.f32.mrf.mxu0
        %3144 = vdwg.mxu0
        %v3145 = vadd.f32 %v3123, %v3142
        %v3146 = vld [vmem:[#allocation2] sm:$0x1]
        %3148 = vset.pattern.permute.xlu0 0
        %3149 = vperm.xlu0 %3148, %v3146
        %v3150 = vpop.permute.xlu0 %3149
        %v3152 = vperm.slane %v3150, 0
        %v3153 = vadd.f32 %v3145, %v3152
        %vm3154 = vcmask 516096
        %3155 = vst.msk [vmem:[%s650] sm:$0x1] %vm3154, %v3153
        %vm3156 = vcmask 125952
        %3157 = vst.msk [vmem:[%s657] sm:$0xf] %vm3156, %v2294
        %s3158 = sand.u32 %s474, 1
        %s3159 = scalar_lea.sflag [#allocation4], %s3158
        %s3160 = sand.u32 %s474, 1
        %s3161 = scalar_lea.vmem [#allocation3], %s3160
        %s3162 = sand.u32 %s500, 1
        %s3163 = scalar_lea.sflag [#allocation6], %s3162
        %s3164 = sand.u32 %s500, 1
        %s3165 = smul.addr %s3164, 4
        %s3166 = scalar_lea.vmem [#allocation5], %s3165
        // Predicated region
        $region101: #{encodec_forward.1} parent=99 // pred_check
          %p3167 = pneg %p484
        $region102: #{encodec_forward.1} parent=99 // pred_check_branch
          %3169 = sbr.rel (%p3167) target = $region104
        $region103: #{encodec_forward.1} parent=99 // pred_region
          %3171 = vsyncadd %s3159, 0
          %s3172 = scalar_lea.hbm %s20, %s41
          %s3174 = sshll.u32 %s3161, 4
          %s3175 = int_to_ptr.vmem [resolvable:$true] %s3174
          %s3176 = sshll.u32 %s3172, 4
          %s3177 = int_to_ptr.hbm [resolvable:$true] %s3176
          %3179 = dma.vmem_to_hbm [thread:$0]  %s3175, 16, %s3177, %s3159
        $region104: #{encodec_forward.1} parent=99 // pred_fallthru
          _
        // Predicated region
        $region105: #{encodec_forward.1} parent=99 // pred_check
          %p3180 = pneg %p510
        $region106: #{encodec_forward.1} parent=99 // pred_check_branch
          %3182 = sbr.rel (%p3180) target = $region108
        $region107: #{encodec_forward.1} parent=99 // pred_region
          %3184 = vsyncadd %s3163, 0
          %s3185 = smul.addr %s41, 4
          %s3186 = scalar_lea.hbm %s21, %s3185
          %s3188 = sshll.u32 %s3166, 4
          %s3189 = int_to_ptr.vmem [resolvable:$true] %s3188
          %s3190 = sshll.u32 %s3186, 4
          %s3191 = int_to_ptr.hbm [resolvable:$true] %s3190
          %3193 = dma.vmem_to_hbm [thread:$0]  %s3189, 64, %s3191, %s3163
        $region108: #{encodec_forward.1} parent=99 // pred_fallthru
          _
      $region100: #{encodec_forward.1} parent=5 // pred_fallthru
        _
      %p3194 = scmp.le.s32.totalorder 2, %s36
      // Predicated region
      $region109: #{encodec_forward.1} parent=5 // pred_check
        %p3195 = pneg %p3194
      $region110: #{encodec_forward.1} parent=5 // pred_check_branch
        %3197 = sbr.rel (%p3195) target = $region112
      $region111: #{encodec_forward.1} parent=5 // pred_region
        %s3198 = ssub.s32 %s36, 2
        // Predicated region
        $region113: #{encodec_forward.1} parent=111 // pred_check
          %p3199 = pneg %p490
        $region114: #{encodec_forward.1} parent=111 // pred_check_branch
          %3201 = sbr.rel (%p3199) target = $region116
        $region115: #{encodec_forward.1} parent=111 // pred_region
          %s3202 = sand.u32 %s475, 1
          %s3203 = scalar_lea.sflag [#allocation4], %s3202
          %s3204 = sand.u32 %s475, 1
          %s3205 = scalar_lea.vmem [#allocation3], %s3204
          %3207 = dma.done %s3203, 16
        $region116: #{encodec_forward.1} parent=111 // pred_fallthru
          _
        // Predicated region
        $region117: #{encodec_forward.1} parent=111 // pred_check
          %p3208 = pneg %p516
        $region118: #{encodec_forward.1} parent=111 // pred_check_branch
          %3210 = sbr.rel (%p3208) target = $region120
        $region119: #{encodec_forward.1} parent=111 // pred_region
          %s3211 = sand.u32 %s501, 1
          %s3212 = scalar_lea.sflag [#allocation6], %s3211
          %s3213 = sand.u32 %s501, 1
          %s3214 = smul.addr %s3213, 4
          %s3215 = scalar_lea.vmem [#allocation5], %s3214
          %3217 = dma.done %s3212, 64
        $region120: #{encodec_forward.1} parent=111 // pred_fallthru
          _
      $region112: #{encodec_forward.1} parent=5 // pred_fallthru
        _
    $region6: #{encodec_forward.1} parent=1 // loop_footer
      %s40 = sadd.s32 1, %s36
    $region7: #{encodec_forward.1} parent=1 // loop_footer_branch
      %35 = sbr.rel target = $region3
    $region8: #{encodec_forward.1} parent=1 // loop_exit
      _
    %3218 = vsyncpa [#allocation4], 1
    %s3219 = scalar_lea.sflag [#allocation4], 1
    %3220 = vsyncpa %s3219, 1
    %3221 = vsyncpa [#allocation6], 1
    %s3222 = scalar_lea.sflag [#allocation6], 1
    %3223 = vsyncpa %s3222, 1

</llo_original>
